<compile_context>
chip_gen: v6e
topology: v6e:2x2x1
jax: 0.10.0
libtpu: 0.0.40
codegen_flags: <defaults>
</compile_context>

<pallas_src>
import jax
import jax.numpy as jnp
from jax.experimental import pallas as pl
from jax.experimental.pallas import tpu as pltpu

LANE = 128  # TPU vreg lane width


def kgnet_kernel(alpha_ref, slab_ref,
                 w1_ref, b1_ref,
                 wih_ref, whh_ref, bih_ref, bhh_ref,
                 w2_ref, b2_ref,
                 w3_ref, b3_ref,
                 out_ref):
    f32 = jnp.float32
    a1 = alpha_ref[0, 0]
    a2 = alpha_ref[0, 1]
    slab = slab_ref[...]          # (nb, 128): [h_rr|h_ir|h_ri|h_ii | 0 | x_r|x_i | 0]

    # ---- fc_in: ComplexDense(Din -> F) + shared ComplexPReLU (halves fused) ---------
    u = jnp.dot(slab, w1_ref[...].astype(f32), preferred_element_type=f32) + b1_ref[...]
    a = jnp.where(u >= 0, u, a1 * u)                       # (nb, 256) = [a_r | a_i]

    # ---- ComplexGRU: four GRU cells fused into two block-structured matmuls ---------
    # gi/gh layout: three 128-lane gate groups (r | z | n); each group holds the four
    # cells (rr, ir, ri, ii) packed at lanes [0:H, H:2H, 2H:3H, 3H:4H].
    gi = jnp.dot(a, wih_ref[...].astype(f32), preferred_element_type=f32) + bih_ref[...]
    gh = jnp.dot(slab, whh_ref[...].astype(f32), preferred_element_type=f32) + bhh_ref[...]

    rz = jax.nn.sigmoid(gi[:, :2 * LANE] + gh[:, :2 * LANE])
    r = rz[:, :LANE]
    z = rz[:, LANE:]
    n = jnp.tanh(gi[:, 2 * LANE:] + r * gh[:, 2 * LANE:])
    # h_prev occupies the same lanes of the input slab as the gate-group cell packing,
    # so the GRU update is a single lane-aligned expression. Lanes >= 4H of hnew are
    # either exactly zero or unread (weight rows there are zero).
    hnew = (1.0 - z) * n + z * slab                        # lanes 0:4H = [frr|fir|fri|fii]

    # ---- fc_out: y_r = frr - fii / y_i = fri + fir folded into W2's rows -------------
    v = jnp.dot(hnew, w2_ref[...].astype(f32), preferred_element_type=f32) + b2_ref[...]
    p = jnp.where(v >= 0, v, a2 * v)
    o = jnp.dot(p, w3_ref[...].astype(f32), preferred_element_type=f32) + b3_ref[...]
    # o is exactly zero outside lanes [4H, 4H+2L); hnew is exactly zero on those lanes,
    # so one dense add assembles the packed output stripe (no mask / concat / copy).
    out_ref[...] = hnew + o


def pack_params(p, Din, F, H, L):
    """Pack all weights into the single-stripe lane layout (bf16) with fused complex pairs."""
    Fp = LANE
    H4 = 4 * H
    assert F <= Fp and H4 + 2 * L + 2 * Din <= LANE, "feature dims exceed one lane stripe"
    o_r0, o_i0 = H4, H4 + L                      # output lanes for o_r / o_i
    x_r0, x_i0 = H4 + 2 * L, H4 + 2 * L + Din    # input lanes for x_r / x_i
    f32, wdt = jnp.float32, jnp.bfloat16         # weights stored bf16, math stays f32

    # fc_in consumes the packed input slab directly (x rows only) -> [a_r | a_i]
    W1 = jnp.zeros((LANE, 2 * Fp), f32)
    W1 = W1.at[x_r0:x_r0 + Din, 0:F].set(p["w1r"])
    W1 = W1.at[x_i0:x_i0 + Din, Fp:Fp + F].set(p["w1i"])
    B1 = jnp.zeros((1, 2 * Fp), f32).at[:, 0:F].set(p["b1r"]).at[:, Fp:Fp + F].set(p["b1i"])

    # GRU: 4 cells x 3 gates; each 128-lane gate group packs the 4 cells at 18 lanes each.
    Wih = jnp.zeros((2 * Fp, 3 * LANE), f32)
    Whh = jnp.zeros((LANE, 3 * LANE), f32)
    Bih = jnp.zeros((1, 3 * LANE), f32)
    Bhh = jnp.zeros((1, 3 * LANE), f32)
    # (cell slot, a-row offset (a_r vs a_i), which GRU's weights): rr, ir, ri, ii
    cells = [(0, 0, "r"), (1, Fp, "r"), (2, 0, "i"), (3, Fp, "i")]
    for g in range(3):                           # PyTorch gate order r, z, n
        col0 = g * LANE
        for slot, arow, which in cells:
            c0 = col0 + slot * H
            Wih = Wih.at[arow:arow + F, c0:c0 + H].set(p["wih" + which][:, g * H:(g + 1) * H])
            Whh = Whh.at[slot * H:(slot + 1) * H, c0:c0 + H].set(p["whh" + which][:, g * H:(g + 1) * H])
            Bih = Bih.at[:, c0:c0 + H].set(p["bih" + which][:, g * H:(g + 1) * H])
            Bhh = Bhh.at[:, c0:c0 + H].set(p["bhh" + which][:, g * H:(g + 1) * H])

    # fc_out stage 1: y_r = frr - fii and y_i = fri + fir folded into the weight rows.
    W2 = jnp.zeros((LANE, 2 * Fp), f32)
    W2 = W2.at[0:H, 0:F].set(p["w2r"])                 # +frr -> real branch
    W2 = W2.at[3 * H:4 * H, 0:F].set(-p["w2r"])        # -fii -> real branch
    W2 = W2.at[2 * H:3 * H, Fp:Fp + F].set(p["w2i"])   # +fri -> imag branch
    W2 = W2.at[H:2 * H, Fp:Fp + F].set(p["w2i"])       # +fir -> imag branch
    B2 = jnp.zeros((1, 2 * Fp), f32).at[:, 0:F].set(p["b2r"]).at[:, Fp:Fp + F].set(p["b2i"])

    # fc_out stage 2: lands o_r / o_i straight onto their packed output lanes.
    W3 = jnp.zeros((2 * Fp, LANE), f32)
    W3 = W3.at[0:F, o_r0:o_r0 + L].set(p["w3r"])
    W3 = W3.at[Fp:Fp + F, o_i0:o_i0 + L].set(p["w3i"])
    B3 = jnp.zeros((1, LANE), f32).at[:, o_r0:o_r0 + L].set(p["b3r"]).at[:, o_i0:o_i0 + L].set(p["b3i"])

    alphas = jnp.concatenate([p["alpha1"].reshape(1, 1),
                              p["alpha2"].reshape(1, 1)], axis=1)   # (1, 2) SMEM scalars
    return dict(alphas=alphas,
                W1=W1.astype(wdt), B1=B1,
                Wih=Wih.astype(wdt), Whh=Whh.astype(wdt), Bih=Bih, Bhh=Bhh,
                W2=W2.astype(wdt), B2=B2, W3=W3.astype(wdt), B3=B3)


def kgnet_forward(packed, dims, input_real, in_imag, h_rr, h_ir, h_ri, h_ii, *, num_blocks=4):
    """dims = (Din, F, H, L) logical (unpadded) sizes."""
    Din, F, H, L = dims
    B = input_real.shape[0]

    block_rows = ((-(-B // num_blocks) + 7) // 8) * 8
    Bp = block_rows * num_blocks
    pad = Bp - B

    # Single lane-dense input stripe: [h_rr|h_ir|h_ri|h_ii | zeros(2L) | x_r|x_i | zeros].
    # TODO(synk): upstream op could emit this layout directly to skip this packing pass.
    body = jnp.concatenate([
        h_rr.reshape(B, H), h_ir.reshape(B, H), h_ri.reshape(B, H), h_ii.reshape(B, H),
        jnp.zeros((B, 2 * L), jnp.float32),
        input_real.reshape(B, Din), in_imag.reshape(B, Din),
    ], axis=1)
    slab = jnp.pad(body, ((0, pad), (0, LANE - body.shape[1])))      # (Bp, 128)

    full = lambda arr: pl.BlockSpec(arr.shape, lambda i: (0, 0))
    tile = pl.BlockSpec((block_rows, LANE), lambda i: (i, 0))

    in_specs = [
        pl.BlockSpec(memory_space=pltpu.SMEM),                        # alphas
        tile,                                                         # packed input slab
        full(packed["W1"]), full(packed["B1"]),
        full(packed["Wih"]), full(packed["Whh"]),
        full(packed["Bih"]), full(packed["Bhh"]),
        full(packed["W2"]), full(packed["B2"]),
        full(packed["W3"]), full(packed["B3"]),
    ]

    out = pl.pallas_call(
        kgnet_kernel,
        grid=(num_blocks,),
        in_specs=in_specs,
        out_specs=tile,
        out_shape=jax.ShapeDtypeStruct((Bp, LANE), jnp.float32),
        compiler_params=pltpu.CompilerParams(dimension_semantics=("parallel",)),
    )(packed["alphas"], slab,
      packed["W1"], packed["B1"],
      packed["Wih"], packed["Whh"], packed["Bih"], packed["Bhh"],
      packed["W2"], packed["B2"],
      packed["W3"], packed["B3"])

    H4 = 4 * H
    frr = out[:B, 0:H]
    fir = out[:B, H:2 * H]
    fri = out[:B, 2 * H:3 * H]
    fii = out[:B, 3 * H:4 * H]
    o_r = out[:B, H4:H4 + L]
    o_i = out[:B, H4 + L:H4 + 2 * L]
    # kg_outfeat[:, :1, :].permute(0, 2, 1) -> (B, L, 1); hidden -> (1, B, H)
    return (o_r.reshape(B, L, 1), o_i.reshape(B, L, 1),
            frr.reshape(1, B, H), fir.reshape(1, B, H),
            fri.reshape(1, B, H), fii.reshape(1, B, H))


def init_params(key, L, fc_dim, rnn_dim):
    # Deterministic synthetic init (PyTorch-equivalent shapes); weights stored
    # pre-transposed as [in, out].
    Din = 2 * L + 1
    ks = jax.random.split(key, 20)
    s = 0.1
    nrm = lambda k, shape: (s * jax.random.normal(k, shape)).astype(jnp.float32)
    H = rnn_dim
    return dict(
        w1r=nrm(ks[0], (Din, fc_dim)), b1r=nrm(ks[1], (1, fc_dim)),
        w1i=nrm(ks[2], (Din, fc_dim)), b1i=nrm(ks[3], (1, fc_dim)),
        alpha1=jnp.full((1, 1), 0.25, jnp.float32),
        wihr=nrm(ks[4], (fc_dim, 3 * H)), whhr=nrm(ks[5], (H, 3 * H)),
        bihr=nrm(ks[6], (1, 3 * H)), bhhr=nrm(ks[7], (1, 3 * H)),
        wihi=nrm(ks[8], (fc_dim, 3 * H)), whhi=nrm(ks[9], (H, 3 * H)),
        bihi=nrm(ks[10], (1, 3 * H)), bhhi=nrm(ks[11], (1, 3 * H)),
        w2r=nrm(ks[12], (H, fc_dim)), b2r=nrm(ks[13], (1, fc_dim)),
        w2i=nrm(ks[14], (H, fc_dim)), b2i=nrm(ks[15], (1, fc_dim)),
        alpha2=jnp.full((1, 1), 0.25, jnp.float32),
        w3r=nrm(ks[16], (fc_dim, L)), b3r=nrm(ks[17], (1, L)),
        w3i=nrm(ks[18], (fc_dim, L)), b3i=nrm(ks[19], (1, L)),
    )


def _reference(params, input_real, in_imag, h_rr, h_ir, h_ri, h_ii):
    # pure-JAX reference of the same math, for a correctness check
    B, _, Din = input_real.shape
    H = params["whhr"].shape[0]
    x_r = input_real.reshape(B, Din)
    x_i = in_imag.reshape(B, Din)

    def prelu(x, a):
        return jnp.where(x >= 0, x, a * x)

    def gru(x, h, wih, whh, bih, bhh):
        gi = x @ wih + bih
        gh = h @ whh + bhh
        r = jax.nn.sigmoid(gi[:, :H] + gh[:, :H])
        z = jax.nn.sigmoid(gi[:, H:2 * H] + gh[:, H:2 * H])
        n = jnp.tanh(gi[:, 2 * H:] + r * gh[:, 2 * H:])
        return (1 - z) * n + z * h

    a1 = params["alpha1"][0, 0]
    a2 = params["alpha2"][0, 0]
    ar = prelu(x_r @ params["w1r"] + params["b1r"], a1)
    ai = prelu(x_i @ params["w1i"] + params["b1i"], a1)
    frr = gru(ar, h_rr.reshape(B, H), params["wihr"], params["whhr"], params["bihr"], params["bhhr"])
    fir = gru(ai, h_ir.reshape(B, H), params["wihr"], params["whhr"], params["bihr"], params["bhhr"])
    fri = gru(ar, h_ri.reshape(B, H), params["wihi"], params["whhi"], params["bihi"], params["bhhi"])
    fii = gru(ai, h_ii.reshape(B, H), params["wihi"], params["whhi"], params["bihi"], params["bhhi"])
    yr, yi = frr - fii, fri + fir
    pr = prelu(yr @ params["w2r"] + params["b2r"], a2)
    pi = prelu(yi @ params["w2i"] + params["b2i"], a2)
    o_r = pr @ params["w3r"] + params["b3r"]
    o_i = pi @ params["w3i"] + params["b3i"]
    L = o_r.shape[1]
    return (o_r.reshape(B, L, 1), o_i.reshape(B, L, 1),
            frr.reshape(1, B, H), fir.reshape(1, B, H),
            fri.reshape(1, B, H), fii.reshape(1, B, H))


if __name__ == "__main__":
    # TODO(synk): rnn_layers > 1 (stacked GRU) and an in-kernel streaming time loop
    # (grid axis over T with h kept resident in VMEM scratch) are not implemented; the
    # spec's hidden shapes (1, 513, 18) and single-frame input imply 1 layer / 1 step.
    L, fc_dim, rnn_layers, rnn_dim = 4, 32, 1, 18
    B = 513                      # frequency bins (PyTorch batch dim, as in the spec)
    Din = 2 * L + 1

    key = jax.random.PRNGKey(0)
    kp, kx = jax.random.split(key)
    params = init_params(kp, L, fc_dim, rnn_dim)
    packed = pack_params(params, Din, fc_dim, rnn_dim, L)
    dims = (Din, fc_dim, rnn_dim, L)

    kxs = jax.random.split(kx, 6)
    input_real = jax.random.normal(kxs[0], (B, 1, Din), jnp.float32)
    in_imag = jax.random.normal(kxs[1], (B, 1, Din), jnp.float32)
    h_rr = jax.random.normal(kxs[2], (rnn_layers, B, rnn_dim), jnp.float32)
    h_ir = jax.random.normal(kxs[3], (rnn_layers, B, rnn_dim), jnp.float32)
    h_ri = jax.random.normal(kxs[4], (rnn_layers, B, rnn_dim), jnp.float32)
    h_ii = jax.random.normal(kxs[5], (rnn_layers, B, rnn_dim), jnp.float32)

    outs = kgnet_forward(packed, dims, input_real, in_imag, h_rr, h_ir, h_ri, h_ii)
    outs = jax.block_until_ready(outs)

    # Reference uses the same bf16-rounded weight values the kernel streams from HBM
    # (bf16 weight storage is the only deviation from pure-f32 weights; math is f32).
    wkeys = ("w1r", "w1i", "wihr", "wihi", "whhr", "whhi", "w2r", "w2i", "w3r", "w3i")
    params_q = {k: (v.astype(jnp.bfloat16).astype(jnp.float32) if k in wkeys else v)
                for k, v in params.items()}
    refs = _reference(params_q, input_real, in_imag, h_rr, h_ir, h_ri, h_ii)

    names = ("out_real", "out_imag", "h_rr", "h_ir", "h_ri", "h_ii")
    for name, got, want in zip(names, outs, refs):
        assert got.shape == want.shape, (name, got.shape, want.shape)
        assert jnp.allclose(got, want, atol=1e-4, rtol=1e-4), (
            name, float(jnp.max(jnp.abs(got - want))))

    assert outs[0].shape == (B, L, 1) and outs[2].shape == (1, B, rnn_dim)
    print("KERNEL_OK")
</pallas_src>

<mosaic_0001>
module attributes {stable_mosaic.version = 11 : i64} {
  func.func @kgnet_kernel(%arg0: i32, %arg1: memref<1x2xf32, #tpu.memory_space<smem>>, %arg2: memref<136x128xf32, #tpu.memory_space<vmem>>, %arg3: memref<128x256xbf16, #tpu.memory_space<vmem>>, %arg4: memref<1x256xf32, #tpu.memory_space<vmem>>, %arg5: memref<256x384xbf16, #tpu.memory_space<vmem>>, %arg6: memref<128x384xbf16, #tpu.memory_space<vmem>>, %arg7: memref<1x384xf32, #tpu.memory_space<vmem>>, %arg8: memref<1x384xf32, #tpu.memory_space<vmem>>, %arg9: memref<128x256xbf16, #tpu.memory_space<vmem>>, %arg10: memref<1x256xf32, #tpu.memory_space<vmem>>, %arg11: memref<256x128xbf16, #tpu.memory_space<vmem>>, %arg12: memref<1x128xf32, #tpu.memory_space<vmem>>, %arg13: memref<136x128xf32, #tpu.memory_space<vmem>>) attributes {dimension_semantics = [#tpu.dimension_semantics<parallel>], iteration_bounds = array<i64: 4>, scalar_prefetch = 0 : i64, scratch_operands = 0 : i64, tpu.core_type = #tpu.core_type<tc>, window_params = [{transform_indices = @transform_0, window_bounds = array<i64: 1, 2>}, {transform_indices = @transform_1, window_bounds = array<i64: 136, 128>}, {pipeline_mode = #tpu.pipeline_mode<synchronous>, transform_indices = @transform_2, window_bounds = array<i64: 128, 256>}, {pipeline_mode = #tpu.pipeline_mode<synchronous>, transform_indices = @transform_3, window_bounds = array<i64: 1, 256>}, {pipeline_mode = #tpu.pipeline_mode<synchronous>, transform_indices = @transform_4, window_bounds = array<i64: 256, 384>}, {pipeline_mode = #tpu.pipeline_mode<synchronous>, transform_indices = @transform_5, window_bounds = array<i64: 128, 384>}, {pipeline_mode = #tpu.pipeline_mode<synchronous>, transform_indices = @transform_6, window_bounds = array<i64: 1, 384>}, {pipeline_mode = #tpu.pipeline_mode<synchronous>, transform_indices = @transform_7, window_bounds = array<i64: 1, 384>}, {pipeline_mode = #tpu.pipeline_mode<synchronous>, transform_indices = @transform_8, window_bounds = array<i64: 128, 256>}, {pipeline_mode = #tpu.pipeline_mode<synchronous>, transform_indices = @transform_9, window_bounds = array<i64: 1, 256>}, {pipeline_mode = #tpu.pipeline_mode<synchronous>, transform_indices = @transform_10, window_bounds = array<i64: 256, 128>}, {pipeline_mode = #tpu.pipeline_mode<synchronous>, transform_indices = @transform_11, window_bounds = array<i64: 1, 128>}, {transform_indices = @transform_12, window_bounds = array<i64: 136, 128>}]} {
    %c0 = arith.constant 0 : index
    %c0_0 = arith.constant 0 : index
    %0 = memref.load %arg1[%c0, %c0_0] : memref<1x2xf32, #tpu.memory_space<smem>>
    %c0_1 = arith.constant 0 : index
    %c1 = arith.constant 1 : index
    %1 = memref.load %arg1[%c0_1, %c1] : memref<1x2xf32, #tpu.memory_space<smem>>
    %c0_2 = arith.constant 0 : index
    %c0_3 = arith.constant 0 : index
    %2 = vector.load %arg2[%c0_2, %c0_3] : memref<136x128xf32, #tpu.memory_space<vmem>>, vector<136x128xf32>
    %c0_4 = arith.constant 0 : index
    %c0_5 = arith.constant 0 : index
    %3 = vector.load %arg3[%c0_4, %c0_5] : memref<128x256xbf16, #tpu.memory_space<vmem>>, vector<128x256xbf16>
    %4 = arith.extf %3 : vector<128x256xbf16> to vector<128x256xf32>
    %cst = arith.constant dense<0.000000e+00> : vector<136x256xf32>
    %5 = tpu.matmul %2, %4, %cst {dimension_numbers = #tpu.dot_dimension_numbers<[1], [0], [0], [1], [0, 0, 1, 1], [], []>} : vector<136x128xf32>, vector<128x256xf32>, vector<136x256xf32> -> vector<136x256xf32>
    %c0_6 = arith.constant 0 : index
    %c0_7 = arith.constant 0 : index
    %6 = vector.load %arg4[%c0_6, %c0_7] : memref<1x256xf32, #tpu.memory_space<vmem>>, vector<1x256xf32>
    %7 = vector.broadcast %6 : vector<1x256xf32> to vector<136x256xf32>
    %8 = arith.addf %5, %7 : vector<136x256xf32>
    %cst_8 = arith.constant 0.000000e+00 : f32
    %9 = vector.broadcast %cst_8 : f32 to vector<136x256xf32>
    %10 = arith.cmpf oge, %8, %9 : vector<136x256xf32>
    %11 = vector.broadcast %0 : f32 to vector<136x256xf32>
    %12 = arith.mulf %11, %8 : vector<136x256xf32>
    %13 = arith.select %10, %8, %12 : vector<136x256xi1>, vector<136x256xf32>
    %c0_9 = arith.constant 0 : index
    %c0_10 = arith.constant 0 : index
    %14 = vector.load %arg5[%c0_9, %c0_10] : memref<256x384xbf16, #tpu.memory_space<vmem>>, vector<256x384xbf16>
    %15 = arith.extf %14 : vector<256x384xbf16> to vector<256x384xf32>
    %cst_11 = arith.constant dense<0.000000e+00> : vector<136x384xf32>
    %16 = tpu.matmul %13, %15, %cst_11 {dimension_numbers = #tpu.dot_dimension_numbers<[1], [0], [0], [1], [0, 0, 1, 1], [], []>} : vector<136x256xf32>, vector<256x384xf32>, vector<136x384xf32> -> vector<136x384xf32>
    %c0_12 = arith.constant 0 : index
    %c0_13 = arith.constant 0 : index
    %17 = vector.load %arg7[%c0_12, %c0_13] : memref<1x384xf32, #tpu.memory_space<vmem>>, vector<1x384xf32>
    %18 = vector.broadcast %17 : vector<1x384xf32> to vector<136x384xf32>
    %19 = arith.addf %16, %18 : vector<136x384xf32>
    %c0_14 = arith.constant 0 : index
    %c0_15 = arith.constant 0 : index
    %20 = vector.load %arg6[%c0_14, %c0_15] : memref<128x384xbf16, #tpu.memory_space<vmem>>, vector<128x384xbf16>
    %21 = arith.extf %20 : vector<128x384xbf16> to vector<128x384xf32>
    %cst_16 = arith.constant dense<0.000000e+00> : vector<136x384xf32>
    %22 = tpu.matmul %2, %21, %cst_16 {dimension_numbers = #tpu.dot_dimension_numbers<[1], [0], [0], [1], [0, 0, 1, 1], [], []>} : vector<136x128xf32>, vector<128x384xf32>, vector<136x384xf32> -> vector<136x384xf32>
    %c0_17 = arith.constant 0 : index
    %c0_18 = arith.constant 0 : index
    %23 = vector.load %arg8[%c0_17, %c0_18] : memref<1x384xf32, #tpu.memory_space<vmem>>, vector<1x384xf32>
    %24 = vector.broadcast %23 : vector<1x384xf32> to vector<136x384xf32>
    %25 = arith.addf %22, %24 : vector<136x384xf32>
    %26 = vector.extract_strided_slice %19 {offsets = [0, 0], sizes = [136, 256], strides = [1, 1]} : vector<136x384xf32> to vector<136x256xf32>
    %27 = vector.extract_strided_slice %25 {offsets = [0, 0], sizes = [136, 256], strides = [1, 1]} : vector<136x384xf32> to vector<136x256xf32>
    %28 = arith.addf %26, %27 : vector<136x256xf32>
    %29 = arith.negf %28 : vector<136x256xf32>
    %30 = math.exp %29 : vector<136x256xf32>
    %cst_19 = arith.constant 1.000000e+00 : f32
    %31 = vector.broadcast %cst_19 : f32 to vector<136x256xf32>
    %32 = arith.addf %31, %30 : vector<136x256xf32>
    %33 = arith.divf %31, %32 : vector<136x256xf32>
    %34 = vector.extract_strided_slice %33 {offsets = [0, 0], sizes = [136, 128], strides = [1, 1]} : vector<136x256xf32> to vector<136x128xf32>
    %35 = vector.extract_strided_slice %33 {offsets = [0, 128], sizes = [136, 128], strides = [1, 1]} : vector<136x256xf32> to vector<136x128xf32>
    %36 = vector.extract_strided_slice %19 {offsets = [0, 256], sizes = [136, 128], strides = [1, 1]} : vector<136x384xf32> to vector<136x128xf32>
    %37 = vector.extract_strided_slice %25 {offsets = [0, 256], sizes = [136, 128], strides = [1, 1]} : vector<136x384xf32> to vector<136x128xf32>
    %38 = arith.mulf %34, %37 : vector<136x128xf32>
    %39 = arith.addf %36, %38 : vector<136x128xf32>
    %40 = math.tanh %39 : vector<136x128xf32>
    %cst_20 = arith.constant 1.000000e+00 : f32
    %41 = vector.broadcast %cst_20 : f32 to vector<136x128xf32>
    %42 = arith.subf %41, %35 : vector<136x128xf32>
    %43 = arith.mulf %42, %40 : vector<136x128xf32>
    %44 = arith.mulf %35, %2 : vector<136x128xf32>
    %45 = arith.addf %43, %44 : vector<136x128xf32>
    %c0_21 = arith.constant 0 : index
    %c0_22 = arith.constant 0 : index
    %46 = vector.load %arg9[%c0_21, %c0_22] : memref<128x256xbf16, #tpu.memory_space<vmem>>, vector<128x256xbf16>
    %47 = arith.extf %46 : vector<128x256xbf16> to vector<128x256xf32>
    %cst_23 = arith.constant dense<0.000000e+00> : vector<136x256xf32>
    %48 = tpu.matmul %45, %47, %cst_23 {dimension_numbers = #tpu.dot_dimension_numbers<[1], [0], [0], [1], [0, 0, 1, 1], [], []>} : vector<136x128xf32>, vector<128x256xf32>, vector<136x256xf32> -> vector<136x256xf32>
    %c0_24 = arith.constant 0 : index
    %c0_25 = arith.constant 0 : index
    %49 = vector.load %arg10[%c0_24, %c0_25] : memref<1x256xf32, #tpu.memory_space<vmem>>, vector<1x256xf32>
    %50 = vector.broadcast %49 : vector<1x256xf32> to vector<136x256xf32>
    %51 = arith.addf %48, %50 : vector<136x256xf32>
    %cst_26 = arith.constant 0.000000e+00 : f32
    %52 = vector.broadcast %cst_26 : f32 to vector<136x256xf32>
    %53 = arith.cmpf oge, %51, %52 : vector<136x256xf32>
    %54 = vector.broadcast %1 : f32 to vector<136x256xf32>
    %55 = arith.mulf %54, %51 : vector<136x256xf32>
    %56 = arith.select %53, %51, %55 : vector<136x256xi1>, vector<136x256xf32>
    %c0_27 = arith.constant 0 : index
    %c0_28 = arith.constant 0 : index
    %57 = vector.load %arg11[%c0_27, %c0_28] : memref<256x128xbf16, #tpu.memory_space<vmem>>, vector<256x128xbf16>
    %58 = arith.extf %57 : vector<256x128xbf16> to vector<256x128xf32>
    %cst_29 = arith.constant dense<0.000000e+00> : vector<136x128xf32>
    %59 = tpu.matmul %56, %58, %cst_29 {dimension_numbers = #tpu.dot_dimension_numbers<[1], [0], [0], [1], [0, 0, 1, 1], [], []>} : vector<136x256xf32>, vector<256x128xf32>, vector<136x128xf32> -> vector<136x128xf32>
    %c0_30 = arith.constant 0 : index
    %c0_31 = arith.constant 0 : index
    %60 = vector.load %arg12[%c0_30, %c0_31] : memref<1x128xf32, #tpu.memory_space<vmem>>, vector<1x128xf32>
    %61 = vector.broadcast %60 : vector<1x128xf32> to vector<136x128xf32>
    %62 = arith.addf %59, %61 : vector<136x128xf32>
    %63 = arith.addf %45, %62 : vector<136x128xf32>
    %c0_32 = arith.constant 0 : index
    %c0_33 = arith.constant 0 : index
    %64 = vector.load %arg13[%c0_32, %c0_33] : memref<136x128xf32, #tpu.memory_space<vmem>>, vector<136x128xf32>
    tpu.vector_store %arg13[%c0_32, %c0_33], %63 {strides = array<i32>} : memref<136x128xf32, #tpu.memory_space<vmem>>, vector<136x128xf32>,
    return
  }
  func.func @transform_0(%arg0: i32) -> (i32, i32) {
    %c0_i32 = arith.constant 0 : i32
    %c0_i32_0 = arith.constant 0 : i32
    %c0_i32_1 = arith.constant 0 : i32
    return %c0_i32, %c0_i32_0 : i32, i32
  }
  func.func @transform_1(%arg0: i32) -> (i32, i32) {
    %c0_i32 = arith.constant 0 : i32
    %c0_i32_0 = arith.constant 0 : i32
    return %arg0, %c0_i32 : i32, i32
  }
  func.func @transform_2(%arg0: i32) -> (i32, i32) {
    %c0_i32 = arith.constant 0 : i32
    %c0_i32_0 = arith.constant 0 : i32
    %c0_i32_1 = arith.constant 0 : i32
    return %c0_i32, %c0_i32_0 : i32, i32
  }
  func.func @transform_3(%arg0: i32) -> (i32, i32) {
    %c0_i32 = arith.constant 0 : i32
    %c0_i32_0 = arith.constant 0 : i32
    %c0_i32_1 = arith.constant 0 : i32
    return %c0_i32, %c0_i32_0 : i32, i32
  }
  func.func @transform_4(%arg0: i32) -> (i32, i32) {
    %c0_i32 = arith.constant 0 : i32
    %c0_i32_0 = arith.constant 0 : i32
    %c0_i32_1 = arith.constant 0 : i32
    return %c0_i32, %c0_i32_0 : i32, i32
  }
  func.func @transform_5(%arg0: i32) -> (i32, i32) {
    %c0_i32 = arith.constant 0 : i32
    %c0_i32_0 = arith.constant 0 : i32
    %c0_i32_1 = arith.constant 0 : i32
    return %c0_i32, %c0_i32_0 : i32, i32
  }
  func.func @transform_6(%arg0: i32) -> (i32, i32) {
    %c0_i32 = arith.constant 0 : i32
    %c0_i32_0 = arith.constant 0 : i32
    %c0_i32_1 = arith.constant 0 : i32
    return %c0_i32, %c0_i32_0 : i32, i32
  }
  func.func @transform_7(%arg0: i32) -> (i32, i32) {
    %c0_i32 = arith.constant 0 : i32
    %c0_i32_0 = arith.constant 0 : i32
    %c0_i32_1 = arith.constant 0 : i32
    return %c0_i32, %c0_i32_0 : i32, i32
  }
  func.func @transform_8(%arg0: i32) -> (i32, i32) {
    %c0_i32 = arith.constant 0 : i32
    %c0_i32_0 = arith.constant 0 : i32
    %c0_i32_1 = arith.constant 0 : i32
    return %c0_i32, %c0_i32_0 : i32, i32
  }
  func.func @transform_9(%arg0: i32) -> (i32, i32) {
    %c0_i32 = arith.constant 0 : i32
    %c0_i32_0 = arith.constant 0 : i32
    %c0_i32_1 = arith.constant 0 : i32
    return %c0_i32, %c0_i32_0 : i32, i32
  }
  func.func @transform_10(%arg0: i32) -> (i32, i32) {
    %c0_i32 = arith.constant 0 : i32
    %c0_i32_0 = arith.constant 0 : i32
    %c0_i32_1 = arith.constant 0 : i32
    return %c0_i32, %c0_i32_0 : i32, i32
  }
  func.func @transform_11(%arg0: i32) -> (i32, i32) {
    %c0_i32 = arith.constant 0 : i32
    %c0_i32_0 = arith.constant 0 : i32
    %c0_i32_1 = arith.constant 0 : i32
    return %c0_i32, %c0_i32_0 : i32, i32
  }
  func.func @transform_12(%arg0: i32) -> (i32, i32) {
    %c0_i32 = arith.constant 0 : i32
    %c0_i32_0 = arith.constant 0 : i32
    return %arg0, %c0_i32 : i32, i32
  }
}

</mosaic_0001>

<llo_original>
// kernel: tpu_custom_call.1
$region0: #{tpu_custom_call.1}
  #allocation0 [shape = 'u32[]', space=smem, size = 0x4, offset = 0x4, fixed_abs, tag = 'smem constant byte address 0x4 - core index']
  #allocation1 [shape = 'u32[144,128]{1,0:T(1,128)}', space=vmem, size = 0x12000, scoped, tag = 'internal scratch']
  %s0 = inlined_call_operand.hbm [shape: f32[1,2], index: 0, kind: input, shape index: {}]
  %s1 = inlined_call_operand.hbm [shape: f32[544,128], index: 1, kind: input, shape index: {}]
  %s2 = inlined_call_operand.hbm [shape: bf16[128,256], index: 2, kind: input, shape index: {}]
  %s3 = inlined_call_operand.hbm [shape: f32[1,256], index: 3, kind: input, shape index: {}]
  %s4 = inlined_call_operand.hbm [shape: bf16[256,384], index: 4, kind: input, shape index: {}]
  %s5 = inlined_call_operand.hbm [shape: bf16[128,384], index: 5, kind: input, shape index: {}]
  %s6 = inlined_call_operand.vmem [shape: f32[1,384], index: 6, kind: input, shape index: {}]
  %s7 = inlined_call_operand.vmem [shape: f32[1,384], index: 7, kind: input, shape index: {}]
  %s8 = inlined_call_operand.hbm [shape: bf16[128,256], index: 8, kind: input, shape index: {}]
  %s9 = inlined_call_operand.vmem [shape: f32[1,256], index: 9, kind: input, shape index: {}]
  %s10 = inlined_call_operand.hbm [shape: bf16[256,128], index: 10, kind: input, shape index: {}]
  %s11 = inlined_call_operand.vmem [shape: f32[1,128], index: 11, kind: input, shape index: {}]
  %s12 = inlined_call_operand.hbm [shape: f32[544,128], index: 12, kind: output, shape index: {}]
  %s13 = sld [smem:[#allocation0]]
  $region113: #{tpu_custom_call.1} parent=0
    _
  %s15 = ssub.s32 1, %s13
  %s16 = scalar_select 0, %s15, %s13
  $region1: #{tpu_custom_call.1} parent=0
    #allocation2 [shape = 'u8[512]{0}', space=smem, size = 0x200, scoped, tag = 'input window, operand 0, single buffered']
    #allocation3 [shape = 's32[2]{0}', space=sflag, size = 0x8, scoped, tag = 'scoped memory for tpu_custom_call.1']
    #allocation4 [shape = 's32[2]{0}', space=sflag, size = 0x8, scoped, tag = 'scoped memory for tpu_custom_call.1']
    #allocation5 [shape = 's32[2]{0}', space=sflag, size = 0x8, scoped, tag = 'scoped memory for tpu_custom_call.1']
    #allocation6 [shape = 'u8[139264]{0}', space=vmem, size = 0x22000, scoped, tag = 'input window, operand 1']
    #allocation7 [shape = 'u8[65536]{0}', space=vmem, size = 0x10000, scoped, tag = 'input window, operand 2, single buffered']
    #allocation8 [shape = 's32[1]{0}', space=sflag, size = 0x4, scoped, tag = 'scoped memory for tpu_custom_call.1']
    #allocation9 [shape = 'u8[1024]{0}', space=vmem, size = 0x400, scoped, tag = 'input window, operand 3, single buffered']
    #allocation10 [shape = 'u8[196608]{0}', space=vmem, size = 0x30000, scoped, tag = 'input window, operand 4, single buffered']
    #allocation11 [shape = 's32[1]{0}', space=sflag, size = 0x4, scoped, tag = 'scoped memory for tpu_custom_call.1']
    #allocation12 [shape = 'u8[98304]{0}', space=vmem, size = 0x18000, scoped, tag = 'input window, operand 5, single buffered']
    #allocation13 [shape = 'u8[65536]{0}', space=vmem, size = 0x10000, scoped, tag = 'input window, operand 8, single buffered']
    #allocation14 [shape = 's32[1]{0}', space=sflag, size = 0x4, scoped, tag = 'scoped memory for tpu_custom_call.1']
    #allocation15 [shape = 'u8[65536]{0}', space=vmem, size = 0x10000, scoped, tag = 'input window, operand 10, single buffered']
    #allocation16 [shape = 'u8[139264]{0}', space=vmem, size = 0x22000, scoped, tag = 'output window, operand 0']
    %17 = vsyncpa [#allocation5], 0
    %18 = vsyncpa [#allocation3], 0
    %s19 = scalar_lea.sflag [#allocation3], 1
    %20 = vsyncpa %s19, 0
    %21 = vsyncpa [#allocation8], 0
    %22 = vsyncpa [#allocation11], 0
    %23 = vsyncpa [#allocation14], 0
    %24 = vsyncpa [#allocation4], 0
    %s25 = scalar_lea.sflag [#allocation4], 1
    %26 = vsyncpa %s25, 0
    loop: start=0, step=1, limit=6
    $region2: #{tpu_custom_call.1} parent=1 // loop_pre_header
      _
    $region3: #{tpu_custom_call.1} parent=1 // loop_header
      %s28 = sphi 0, %s32
      %p29 = scmp.ge.s32.totalorder %s28, 6
      %s36 = sphi 0, %s36
      %s38 = sphi 0, %s36
      %s39 = sphi 0, %s38
      %s53 = sphi 0, %s39
      %s59 = sphi 0, %s61
      %s62 = sphi 0, %s59
      %s63 = sphi 0, %s62
      %s79 = sphi 0, %s63
      %s83 = sphi 0, %s83
      %s85 = sphi 0, %s83
      %s86 = sphi 0, %s85
      %s100 = sphi 0, %s86
      %s104 = sphi 0, %s104
      %s106 = sphi 0, %s104
      %s107 = sphi 0, %s106
      %s121 = sphi 0, %s107
      %s125 = sphi 0, %s125
      %s127 = sphi 0, %s125
      %s128 = sphi 0, %s127
      %s142 = sphi 0, %s128
      %s146 = sphi 0, %s146
      %s148 = sphi 0, %s146
      %s149 = sphi 0, %s148
      %s163 = sphi 0, %s149
      %s167 = sphi 0, %s167
      %s169 = sphi 0, %s167
      %s170 = sphi 0, %s169
      %s184 = sphi 0, %s170
      %s188 = sphi 0, %s188
      %s190 = sphi 0, %s188
      %s191 = sphi 0, %s190
      %s205 = sphi 0, %s191
      %s209 = sphi 0, %s209
      %s211 = sphi 0, %s209
      %s212 = sphi 0, %s211
      %s226 = sphi 0, %s212
      %s230 = sphi 0, %s230
      %s232 = sphi 0, %s230
      %s233 = sphi 0, %s232
      %s247 = sphi 0, %s233
      %s251 = sphi 0, %s251
      %s253 = sphi 0, %s251
      %s254 = sphi 0, %s253
      %s268 = sphi 0, %s254
      %s272 = sphi 0, %s272
      %s274 = sphi 0, %s272
      %s275 = sphi 0, %s274
      %s289 = sphi 0, %s275
      %s295 = sphi 0, %s297
      %s298 = sphi 0, %s295
      %s299 = sphi 0, %s298
      %s315 = sphi 0, %s299
    $region4: #{tpu_custom_call.1} parent=1 // loop_header_branch
      %31 = sbr.rel (%p29) target = $region8
    $region5: #{tpu_custom_call.1} parent=1 // loop_body
      %s33 = ssub.s32 %s28, 1
      %s34 = ssub.s32 %s28, 2
      %s35 = sadd.s32 %s28, 1
      %s37 = sadd.s32 %s36, 1
      %p40 = scmp.eq.s32.totalorder %s28, 3
      %p41 = scmp.ne.s32.totalorder %s36, %s38
      %p42 = scmp.eq.s32.totalorder %s28, 0
      %p43 = por %p41, %p42
      %p44 = scmp.ne.s32.totalorder %s36, %s38
      %p45 = scmp.eq.s32.totalorder %s33, 3
      %p46 = por %p44, %p45
      %p47 = scmp.ne.s32.totalorder %s38, %s39
      %p48 = scmp.eq.s32.totalorder %s33, 0
      %p49 = por %p47, %p48
      %p50 = scmp.ne.s32.totalorder %s38, %s39
      %p51 = scmp.eq.s32.totalorder %s34, 3
      %p52 = por %p50, %p51
      %p54 = scmp.ne.s32.totalorder %s39, %s53
      %p55 = scmp.eq.s32.totalorder %s34, 0
      %p56 = por %p54, %p55
      %s57 = ssub.s32 %s28, %s35
      %p58 = scmp.eq.s32.totalorder %s57, 0
      %s60 = sadd.s32 %s59, 1
      %s61 = scalar_select %p58, %s59, %s60
      %p64 = pneg %p58
      %p65 = scmp.eq.s32.totalorder %s28, 3
      %p66 = por %p64, %p65
      %p67 = scmp.ne.s32.totalorder %s59, %s62
      %p68 = scmp.eq.s32.totalorder %s28, 0
      %p69 = por %p67, %p68
      %p70 = scmp.ne.s32.totalorder %s59, %s62
      %p71 = scmp.eq.s32.totalorder %s33, 3
      %p72 = por %p70, %p71
      %p73 = scmp.ne.s32.totalorder %s62, %s63
      %p74 = scmp.eq.s32.totalorder %s33, 0
      %p75 = por %p73, %p74
      %p76 = scmp.ne.s32.totalorder %s62, %s63
      %p77 = scmp.eq.s32.totalorder %s34, 3
      %p78 = por %p76, %p77
      %p80 = scmp.ne.s32.totalorder %s63, %s79
      %p81 = scmp.eq.s32.totalorder %s34, 0
      %p82 = por %p80, %p81
      %s84 = sadd.s32 %s83, 1
      %p87 = scmp.eq.s32.totalorder %s28, 3
      %p88 = scmp.ne.s32.totalorder %s83, %s85
      %p89 = scmp.eq.s32.totalorder %s28, 0
      %p90 = por %p88, %p89
      %p91 = scmp.ne.s32.totalorder %s83, %s85
      %p92 = scmp.eq.s32.totalorder %s33, 3
      %p93 = por %p91, %p92
      %p94 = scmp.ne.s32.totalorder %s85, %s86
      %p95 = scmp.eq.s32.totalorder %s33, 0
      %p96 = por %p94, %p95
      %p97 = scmp.ne.s32.totalorder %s85, %s86
      %p98 = scmp.eq.s32.totalorder %s34, 3
      %p99 = por %p97, %p98
      %p101 = scmp.ne.s32.totalorder %s86, %s100
      %p102 = scmp.eq.s32.totalorder %s34, 0
      %p103 = por %p101, %p102
      %s105 = sadd.s32 %s104, 1
      %p108 = scmp.eq.s32.totalorder %s28, 3
      %p109 = scmp.ne.s32.totalorder %s104, %s106
      %p110 = scmp.eq.s32.totalorder %s28, 0
      %p111 = por %p109, %p110
      %p112 = scmp.ne.s32.totalorder %s104, %s106
      %p113 = scmp.eq.s32.totalorder %s33, 3
      %p114 = por %p112, %p113
      %p115 = scmp.ne.s32.totalorder %s106, %s107
      %p116 = scmp.eq.s32.totalorder %s33, 0
      %p117 = por %p115, %p116
      %p118 = scmp.ne.s32.totalorder %s106, %s107
      %p119 = scmp.eq.s32.totalorder %s34, 3
      %p120 = por %p118, %p119
      %p122 = scmp.ne.s32.totalorder %s107, %s121
      %p123 = scmp.eq.s32.totalorder %s34, 0
      %p124 = por %p122, %p123
      %s126 = sadd.s32 %s125, 1
      %p129 = scmp.eq.s32.totalorder %s28, 3
      %p130 = scmp.ne.s32.totalorder %s125, %s127
      %p131 = scmp.eq.s32.totalorder %s28, 0
      %p132 = por %p130, %p131
      %p133 = scmp.ne.s32.totalorder %s125, %s127
      %p134 = scmp.eq.s32.totalorder %s33, 3
      %p135 = por %p133, %p134
      %p136 = scmp.ne.s32.totalorder %s127, %s128
      %p137 = scmp.eq.s32.totalorder %s33, 0
      %p138 = por %p136, %p137
      %p139 = scmp.ne.s32.totalorder %s127, %s128
      %p140 = scmp.eq.s32.totalorder %s34, 3
      %p141 = por %p139, %p140
      %p143 = scmp.ne.s32.totalorder %s128, %s142
      %p144 = scmp.eq.s32.totalorder %s34, 0
      %p145 = por %p143, %p144
      %s147 = sadd.s32 %s146, 1
      %p150 = scmp.eq.s32.totalorder %s28, 3
      %p151 = scmp.ne.s32.totalorder %s146, %s148
      %p152 = scmp.eq.s32.totalorder %s28, 0
      %p153 = por %p151, %p152
      %p154 = scmp.ne.s32.totalorder %s146, %s148
      %p155 = scmp.eq.s32.totalorder %s33, 3
      %p156 = por %p154, %p155
      %p157 = scmp.ne.s32.totalorder %s148, %s149
      %p158 = scmp.eq.s32.totalorder %s33, 0
      %p159 = por %p157, %p158
      %p160 = scmp.ne.s32.totalorder %s148, %s149
      %p161 = scmp.eq.s32.totalorder %s34, 3
      %p162 = por %p160, %p161
      %p164 = scmp.ne.s32.totalorder %s149, %s163
      %p165 = scmp.eq.s32.totalorder %s34, 0
      %p166 = por %p164, %p165
      %s168 = sadd.s32 %s167, 1
      %p171 = scmp.eq.s32.totalorder %s28, 3
      %p172 = scmp.ne.s32.totalorder %s167, %s169
      %p173 = scmp.eq.s32.totalorder %s28, 0
      %p174 = por %p172, %p173
      %p175 = scmp.ne.s32.totalorder %s167, %s169
      %p176 = scmp.eq.s32.totalorder %s33, 3
      %p177 = por %p175, %p176
      %p178 = scmp.ne.s32.totalorder %s169, %s170
      %p179 = scmp.eq.s32.totalorder %s33, 0
      %p180 = por %p178, %p179
      %p181 = scmp.ne.s32.totalorder %s169, %s170
      %p182 = scmp.eq.s32.totalorder %s34, 3
      %p183 = por %p181, %p182
      %p185 = scmp.ne.s32.totalorder %s170, %s184
      %p186 = scmp.eq.s32.totalorder %s34, 0
      %p187 = por %p185, %p186
      %s189 = sadd.s32 %s188, 1
      %p192 = scmp.eq.s32.totalorder %s28, 3
      %p193 = scmp.ne.s32.totalorder %s188, %s190
      %p194 = scmp.eq.s32.totalorder %s28, 0
      %p195 = por %p193, %p194
      %p196 = scmp.ne.s32.totalorder %s188, %s190
      %p197 = scmp.eq.s32.totalorder %s33, 3
      %p198 = por %p196, %p197
      %p199 = scmp.ne.s32.totalorder %s190, %s191
      %p200 = scmp.eq.s32.totalorder %s33, 0
      %p201 = por %p199, %p200
      %p202 = scmp.ne.s32.totalorder %s190, %s191
      %p203 = scmp.eq.s32.totalorder %s34, 3
      %p204 = por %p202, %p203
      %p206 = scmp.ne.s32.totalorder %s191, %s205
      %p207 = scmp.eq.s32.totalorder %s34, 0
      %p208 = por %p206, %p207
      %s210 = sadd.s32 %s209, 1
      %p213 = scmp.eq.s32.totalorder %s28, 3
      %p214 = scmp.ne.s32.totalorder %s209, %s211
      %p215 = scmp.eq.s32.totalorder %s28, 0
      %p216 = por %p214, %p215
      %p217 = scmp.ne.s32.totalorder %s209, %s211
      %p218 = scmp.eq.s32.totalorder %s33, 3
      %p219 = por %p217, %p218
      %p220 = scmp.ne.s32.totalorder %s211, %s212
      %p221 = scmp.eq.s32.totalorder %s33, 0
      %p222 = por %p220, %p221
      %p223 = scmp.ne.s32.totalorder %s211, %s212
      %p224 = scmp.eq.s32.totalorder %s34, 3
      %p225 = por %p223, %p224
      %p227 = scmp.ne.s32.totalorder %s212, %s226
      %p228 = scmp.eq.s32.totalorder %s34, 0
      %p229 = por %p227, %p228
      %s231 = sadd.s32 %s230, 1
      %p234 = scmp.eq.s32.totalorder %s28, 3
      %p235 = scmp.ne.s32.totalorder %s230, %s232
      %p236 = scmp.eq.s32.totalorder %s28, 0
      %p237 = por %p235, %p236
      %p238 = scmp.ne.s32.totalorder %s230, %s232
      %p239 = scmp.eq.s32.totalorder %s33, 3
      %p240 = por %p238, %p239
      %p241 = scmp.ne.s32.totalorder %s232, %s233
      %p242 = scmp.eq.s32.totalorder %s33, 0
      %p243 = por %p241, %p242
      %p244 = scmp.ne.s32.totalorder %s232, %s233
      %p245 = scmp.eq.s32.totalorder %s34, 3
      %p246 = por %p244, %p245
      %p248 = scmp.ne.s32.totalorder %s233, %s247
      %p249 = scmp.eq.s32.totalorder %s34, 0
      %p250 = por %p248, %p249
      %s252 = sadd.s32 %s251, 1
      %p255 = scmp.eq.s32.totalorder %s28, 3
      %p256 = scmp.ne.s32.totalorder %s251, %s253
      %p257 = scmp.eq.s32.totalorder %s28, 0
      %p258 = por %p256, %p257
      %p259 = scmp.ne.s32.totalorder %s251, %s253
      %p260 = scmp.eq.s32.totalorder %s33, 3
      %p261 = por %p259, %p260
      %p262 = scmp.ne.s32.totalorder %s253, %s254
      %p263 = scmp.eq.s32.totalorder %s33, 0
      %p264 = por %p262, %p263
      %p265 = scmp.ne.s32.totalorder %s253, %s254
      %p266 = scmp.eq.s32.totalorder %s34, 3
      %p267 = por %p265, %p266
      %p269 = scmp.ne.s32.totalorder %s254, %s268
      %p270 = scmp.eq.s32.totalorder %s34, 0
      %p271 = por %p269, %p270
      %s273 = sadd.s32 %s272, 1
      %p276 = scmp.eq.s32.totalorder %s28, 3
      %p277 = scmp.ne.s32.totalorder %s272, %s274
      %p278 = scmp.eq.s32.totalorder %s28, 0
      %p279 = por %p277, %p278
      %p280 = scmp.ne.s32.totalorder %s272, %s274
      %p281 = scmp.eq.s32.totalorder %s33, 3
      %p282 = por %p280, %p281
      %p283 = scmp.ne.s32.totalorder %s274, %s275
      %p284 = scmp.eq.s32.totalorder %s33, 0
      %p285 = por %p283, %p284
      %p286 = scmp.ne.s32.totalorder %s274, %s275
      %p287 = scmp.eq.s32.totalorder %s34, 3
      %p288 = por %p286, %p287
      %p290 = scmp.ne.s32.totalorder %s275, %s289
      %p291 = scmp.eq.s32.totalorder %s34, 0
      %p292 = por %p290, %p291
      %s293 = ssub.s32 %s28, %s35
      %p294 = scmp.eq.s32.totalorder %s293, 0
      %s296 = sadd.s32 %s295, 1
      %s297 = scalar_select %p294, %s295, %s296
      %p300 = pneg %p294
      %p301 = scmp.eq.s32.totalorder %s28, 3
      %p302 = por %p300, %p301
      %p303 = scmp.ne.s32.totalorder %s295, %s298
      %p304 = scmp.eq.s32.totalorder %s28, 0
      %p305 = por %p303, %p304
      %p306 = scmp.ne.s32.totalorder %s295, %s298
      %p307 = scmp.eq.s32.totalorder %s33, 3
      %p308 = por %p306, %p307
      %p309 = scmp.ne.s32.totalorder %s298, %s299
      %p310 = scmp.eq.s32.totalorder %s33, 0
      %p311 = por %p309, %p310
      %p312 = scmp.ne.s32.totalorder %s298, %s299
      %p313 = scmp.eq.s32.totalorder %s34, 3
      %p314 = por %p312, %p313
      %p316 = scmp.ne.s32.totalorder %s299, %s315
      %p317 = scmp.eq.s32.totalorder %s34, 0
      %p318 = por %p316, %p317
      %p319 = scmp.le.s32.totalorder 1, %s28
      %p320 = scmp.lt.s32.totalorder %s28, 5
      %p321 = pnand %p319, %p320
      %p322 = pneg %p321
      // Predicated region
      $region9: #{tpu_custom_call.1} parent=5 // pred_check
        _
      $region10: #{tpu_custom_call.1} parent=5 // pred_check_branch
        %324 = sbr.rel (%p321) target = $region12
      $region11: #{tpu_custom_call.1} parent=5 // pred_region
        %s325 = ssub.s32 %s28, 1
        // Predicated region
        $region13: #{tpu_custom_call.1} parent=11 // pred_check
          %p326 = pneg %p49
        $region14: #{tpu_custom_call.1} parent=11 // pred_check_branch
          %328 = sbr.rel (%p326) target = $region16
        $region15: #{tpu_custom_call.1} parent=11 // pred_region
          %s330 = ssub.s32 16, 16
          %331 = vsyncadd [#allocation5], %s330
          %334 = dma.hbm_to_smem %s0, 16, [#allocation2], [#allocation5]
        $region16: #{tpu_custom_call.1} parent=11 // pred_fallthru
          _
        // Predicated region
        $region17: #{tpu_custom_call.1} parent=11 // pred_check
          %p335 = pneg %p96
        $region18: #{tpu_custom_call.1} parent=11 // pred_check_branch
          %337 = sbr.rel (%p335) target = $region20
        $region19: #{tpu_custom_call.1} parent=11 // pred_region
          %s339 = ssub.s32 2048, 2048
          %340 = vsyncadd [#allocation8], %s339
          %s341 = sshll.u32 [#allocation7], 4
          %s342 = int_to_ptr.vmem [resolvable:$true] %s341
          %347 = dma.hbm_to_vmem [thread:$0]  %s2, 2048, %s342, [#allocation8], 128, 128, 8
        $region20: #{tpu_custom_call.1} parent=11 // pred_fallthru
          _
        // Predicated region
        $region21: #{tpu_custom_call.1} parent=11 // pred_check
          %p348 = pneg %p117
        $region22: #{tpu_custom_call.1} parent=11 // pred_check_branch
          %350 = sbr.rel (%p348) target = $region24
        $region23: #{tpu_custom_call.1} parent=11 // pred_region
          %s352 = ssub.s32 32, 32
          %353 = vsyncadd [#allocation8], %s352
          %s355 = sshll.u32 [#allocation9], 4
          %s356 = int_to_ptr.vmem [resolvable:$true] %s355
          %358 = dma.hbm_to_vmem [thread:$0]  %s3, 32, %s356, [#allocation8]
        $region24: #{tpu_custom_call.1} parent=11 // pred_fallthru
          _
        // Predicated region
        $region25: #{tpu_custom_call.1} parent=11 // pred_check
          %p359 = pneg %p138
        $region26: #{tpu_custom_call.1} parent=11 // pred_check_branch
          %361 = sbr.rel (%p359) target = $region28
        $region27: #{tpu_custom_call.1} parent=11 // pred_region
          %s363 = ssub.s32 6144, 6144
          %364 = vsyncadd [#allocation11], %s363
          %s365 = sshll.u32 [#allocation10], 4
          %s366 = int_to_ptr.vmem [resolvable:$true] %s365
          %371 = dma.hbm_to_vmem [thread:$0]  %s4, 6144, %s366, [#allocation11], 192, 192, 12
        $region28: #{tpu_custom_call.1} parent=11 // pred_fallthru
          _
        // Predicated region
        $region29: #{tpu_custom_call.1} parent=11 // pred_check
          %p372 = pneg %p159
        $region30: #{tpu_custom_call.1} parent=11 // pred_check_branch
          %374 = sbr.rel (%p372) target = $region32
        $region31: #{tpu_custom_call.1} parent=11 // pred_region
          %s376 = ssub.s32 3072, 3072
          %377 = vsyncadd [#allocation11], %s376
          %s378 = sshll.u32 [#allocation12], 4
          %s379 = int_to_ptr.vmem [resolvable:$true] %s378
          %384 = dma.hbm_to_vmem [thread:$0]  %s5, 3072, %s379, [#allocation11], 192, 192, 12
        $region32: #{tpu_custom_call.1} parent=11 // pred_fallthru
          _
        // Predicated region
        $region33: #{tpu_custom_call.1} parent=11 // pred_check
          %p385 = pneg %p180
        $region34: #{tpu_custom_call.1} parent=11 // pred_check_branch
          %387 = sbr.rel (%p385) target = $region36
        $region35: #{tpu_custom_call.1} parent=11 // pred_region
          _
        $region36: #{tpu_custom_call.1} parent=11 // pred_fallthru
          _
        // Predicated region
        $region37: #{tpu_custom_call.1} parent=11 // pred_check
          %p388 = pneg %p201
        $region38: #{tpu_custom_call.1} parent=11 // pred_check_branch
          %390 = sbr.rel (%p388) target = $region40
        $region39: #{tpu_custom_call.1} parent=11 // pred_region
          _
        $region40: #{tpu_custom_call.1} parent=11 // pred_fallthru
          _
        // Predicated region
        $region41: #{tpu_custom_call.1} parent=11 // pred_check
          %p391 = pneg %p222
        $region42: #{tpu_custom_call.1} parent=11 // pred_check_branch
          %393 = sbr.rel (%p391) target = $region44
        $region43: #{tpu_custom_call.1} parent=11 // pred_region
          %s395 = ssub.s32 2048, 2048
          %396 = vsyncadd [#allocation14], %s395
          %s397 = sshll.u32 [#allocation13], 4
          %s398 = int_to_ptr.vmem [resolvable:$true] %s397
          %403 = dma.hbm_to_vmem [thread:$0]  %s8, 2048, %s398, [#allocation14], 128, 128, 8
        $region44: #{tpu_custom_call.1} parent=11 // pred_fallthru
          _
        // Predicated region
        $region45: #{tpu_custom_call.1} parent=11 // pred_check
          %p404 = pneg %p243
        $region46: #{tpu_custom_call.1} parent=11 // pred_check_branch
          %406 = sbr.rel (%p404) target = $region48
        $region47: #{tpu_custom_call.1} parent=11 // pred_region
          _
        $region48: #{tpu_custom_call.1} parent=11 // pred_fallthru
          _
        // Predicated region
        $region49: #{tpu_custom_call.1} parent=11 // pred_check
          %p407 = pneg %p264
        $region50: #{tpu_custom_call.1} parent=11 // pred_check_branch
          %409 = sbr.rel (%p407) target = $region52
        $region51: #{tpu_custom_call.1} parent=11 // pred_region
          %s411 = ssub.s32 2048, 2048
          %412 = vsyncadd [#allocation14], %s411
          %s413 = sshll.u32 [#allocation15], 4
          %s414 = int_to_ptr.vmem [resolvable:$true] %s413
          %419 = dma.hbm_to_vmem [thread:$0]  %s10, 2048, %s414, [#allocation14], 64, 64, 4
        $region52: #{tpu_custom_call.1} parent=11 // pred_fallthru
          _
        // Predicated region
        $region53: #{tpu_custom_call.1} parent=11 // pred_check
          %p420 = pneg %p285
        $region54: #{tpu_custom_call.1} parent=11 // pred_check_branch
          %422 = sbr.rel (%p420) target = $region56
        $region55: #{tpu_custom_call.1} parent=11 // pred_region
          _
        $region56: #{tpu_custom_call.1} parent=11 // pred_fallthru
          _
      $region12: #{tpu_custom_call.1} parent=5 // pred_fallthru
        _
      %p423 = scmp.lt.s32.totalorder %s28, 4
      // Predicated region
      $region57: #{tpu_custom_call.1} parent=5 // pred_check
        %p424 = pneg %p423
      $region58: #{tpu_custom_call.1} parent=5 // pred_check_branch
        %426 = sbr.rel (%p424) target = $region60
      $region59: #{tpu_custom_call.1} parent=5 // pred_region
        // Predicated region
        $region61: #{tpu_custom_call.1} parent=59 // pred_check
          %p427 = pneg %p69
        $region62: #{tpu_custom_call.1} parent=59 // pred_check_branch
          %429 = sbr.rel (%p427) target = $region64
        $region63: #{tpu_custom_call.1} parent=59 // pred_region
          %s430 = sand.u32 %s59, 1
          %s431 = scalar_lea.sflag [#allocation3], %s430
          %s432 = sand.u32 %s59, 1
          %s433 = smul.addr %s432, 136
          %s434 = scalar_lea.vmem [#allocation6], %s433
          %s435 = smul.u32 17, %s28
          %s437 = ssub.s32 2176, 2176
          %438 = vsyncadd %s431, %s437
          %s439 = smul.addr %s435, 128
          %s440 = scalar_lea.hbm %s1, %s439
          %s441 = sshll.u32 %s434, 4
          %s442 = int_to_ptr.vmem [resolvable:$true] %s441
          %447 = dma.hbm_to_vmem [thread:$0]  %s440, 2176, %s442, %s431, 128, 128, 8
        $region64: #{tpu_custom_call.1} parent=59 // pred_fallthru
          _
      $region60: #{tpu_custom_call.1} parent=5 // pred_fallthru
        _
      %p448 = scmp.le.s32.totalorder 1, %s28
      %p449 = scmp.lt.s32.totalorder %s28, 5
      %p450 = pnand %p448, %p449
      %p451 = pneg %p450
      // Predicated region
      $region65: #{tpu_custom_call.1} parent=5 // pred_check
        _
      $region66: #{tpu_custom_call.1} parent=5 // pred_check_branch
        %453 = sbr.rel (%p450) target = $region68
      $region67: #{tpu_custom_call.1} parent=5 // pred_region
        %s454 = ssub.s32 %s28, 1
        // Predicated region
        $region69: #{tpu_custom_call.1} parent=67 // pred_check
          %p455 = pneg %p49
        $region70: #{tpu_custom_call.1} parent=67 // pred_check_branch
          %457 = sbr.rel (%p455) target = $region72
        $region71: #{tpu_custom_call.1} parent=67 // pred_region
          %458 = dma.done [#allocation5], 16
        $region72: #{tpu_custom_call.1} parent=67 // pred_fallthru
          _
        %s459 = sand.u32 %s62, 1
        %s460 = scalar_lea.sflag [#allocation3], %s459
        %s461 = sand.u32 %s62, 1
        %s462 = smul.addr %s461, 136
        %s463 = scalar_lea.vmem [#allocation6], %s462
        // Predicated region
        $region73: #{tpu_custom_call.1} parent=67 // pred_check
          %p464 = pneg %p75
        $region74: #{tpu_custom_call.1} parent=67 // pred_check_branch
          %466 = sbr.rel (%p464) target = $region76
        $region75: #{tpu_custom_call.1} parent=67 // pred_region
          %467 = dma.done %s460, 2176
        $region76: #{tpu_custom_call.1} parent=67 // pred_fallthru
          _
        // Predicated region
        $region77: #{tpu_custom_call.1} parent=67 // pred_check
          %p468 = pneg %p96
        $region78: #{tpu_custom_call.1} parent=67 // pred_check_branch
          %470 = sbr.rel (%p468) target = $region80
        $region79: #{tpu_custom_call.1} parent=67 // pred_region
          %471 = dma.done [#allocation8], 2048
        $region80: #{tpu_custom_call.1} parent=67 // pred_fallthru
          _
        // Predicated region
        $region81: #{tpu_custom_call.1} parent=67 // pred_check
          %p472 = pneg %p117
        $region82: #{tpu_custom_call.1} parent=67 // pred_check_branch
          %474 = sbr.rel (%p472) target = $region84
        $region83: #{tpu_custom_call.1} parent=67 // pred_region
          %475 = dma.done [#allocation8], 32
        $region84: #{tpu_custom_call.1} parent=67 // pred_fallthru
          _
        // Predicated region
        $region85: #{tpu_custom_call.1} parent=67 // pred_check
          %p476 = pneg %p138
        $region86: #{tpu_custom_call.1} parent=67 // pred_check_branch
          %478 = sbr.rel (%p476) target = $region88
        $region87: #{tpu_custom_call.1} parent=67 // pred_region
          %479 = dma.done [#allocation11], 6144
        $region88: #{tpu_custom_call.1} parent=67 // pred_fallthru
          _
        // Predicated region
        $region89: #{tpu_custom_call.1} parent=67 // pred_check
          %p480 = pneg %p159
        $region90: #{tpu_custom_call.1} parent=67 // pred_check_branch
          %482 = sbr.rel (%p480) target = $region92
        $region91: #{tpu_custom_call.1} parent=67 // pred_region
          %483 = dma.done [#allocation11], 3072
        $region92: #{tpu_custom_call.1} parent=67 // pred_fallthru
          _
        // Predicated region
        $region93: #{tpu_custom_call.1} parent=67 // pred_check
          %p484 = pneg %p222
        $region94: #{tpu_custom_call.1} parent=67 // pred_check_branch
          %486 = sbr.rel (%p484) target = $region96
        $region95: #{tpu_custom_call.1} parent=67 // pred_region
          %487 = dma.done [#allocation14], 2048
        $region96: #{tpu_custom_call.1} parent=67 // pred_fallthru
          _
        // Predicated region
        $region97: #{tpu_custom_call.1} parent=67 // pred_check
          %p488 = pneg %p264
        $region98: #{tpu_custom_call.1} parent=67 // pred_check_branch
          %490 = sbr.rel (%p488) target = $region100
        $region99: #{tpu_custom_call.1} parent=67 // pred_region
          %491 = dma.done [#allocation14], 2048
        $region100: #{tpu_custom_call.1} parent=67 // pred_fallthru
          _
        %492 = sfence
        %p493 = pneg %p49
        %p494 = pneg %p46
        %s495 = sand.u32 %s62, 1
        %s496 = scalar_lea.sflag [#allocation3], %s495
        %s497 = sand.u32 %s62, 1
        %s498 = smul.addr %s497, 136
        %s499 = scalar_lea.vmem [#allocation6], %s498
        %p500 = pneg %p75
        %p501 = pneg %p72
        %p502 = pneg %p96
        %p503 = pneg %p93
        %p504 = pneg %p117
        %p505 = pneg %p114
        %p506 = pneg %p138
        %p507 = pneg %p135
        %p508 = pneg %p159
        %p509 = pneg %p156
        %p510 = pneg %p180
        %p511 = pneg %p177
        %p512 = pneg %p201
        %p513 = pneg %p198
        %p514 = pneg %p222
        %p515 = pneg %p219
        %p516 = pneg %p243
        %p517 = pneg %p240
        %p518 = pneg %p264
        %p519 = pneg %p261
        %p520 = pneg %p285
        %p521 = pneg %p282
        %p522 = pneg %p311
        %p523 = pneg %p308
        %s524 = sand.u32 %s298, 1
        %s525 = scalar_lea.sflag [#allocation4], %s524
        %s526 = sand.u32 %s298, 1
        %s527 = smul.addr %s526, 136
        %s528 = scalar_lea.vmem [#allocation16], %s527
        %s529 = smul.u32 17, %s33
        %s530 = smul.u32 17, %s33
        %s531 = sld [smem:[#allocation2]]
        %s532 = sld [smem:[#allocation2 + $0x1]]
        %v533 = vld [vmem:[%s463] sm:$0xff]
        %v534 = vld [vmem:[%s463 + $0x8] sm:$0xff]
        %v535 = vld [vmem:[%s463 + $0x10] sm:$0xff]
        %v536 = vld [vmem:[%s463 + $0x18] sm:$0xff]
        %v537 = vld [vmem:[%s463 + $0x20] sm:$0xff]
        %v538 = vld [vmem:[%s463 + $0x28] sm:$0xff]
        %v539 = vld [vmem:[%s463 + $0x30] sm:$0xff]
        %v540 = vld [vmem:[%s463 + $0x38] sm:$0xff]
        %v541 = vld [vmem:[%s463 + $0x40] sm:$0xff]
        %v542 = vld [vmem:[%s463 + $0x48] sm:$0xff]
        %v543 = vld [vmem:[%s463 + $0x50] sm:$0xff]
        %v544 = vld [vmem:[%s463 + $0x58] sm:$0xff]
        %v545 = vld [vmem:[%s463 + $0x60] sm:$0xff]
        %v546 = vld [vmem:[%s463 + $0x68] sm:$0xff]
        %v547 = vld [vmem:[%s463 + $0x70] sm:$0xff]
        %v548 = vld [vmem:[%s463 + $0x78] sm:$0xff]
        %v549 = vld [vmem:[%s463 + $0x80] sm:$0xff]
        %v550 = vld [vmem:[#allocation7] sm:$0xff]
        %v551 = vld [vmem:[#allocation7 + $0x8] sm:$0xff]
        %v552 = vld [vmem:[#allocation7 + $0x10] sm:$0xff]
        %v553 = vld [vmem:[#allocation7 + $0x18] sm:$0xff]
        %v554 = vld [vmem:[#allocation7 + $0x20] sm:$0xff]
        %v555 = vld [vmem:[#allocation7 + $0x28] sm:$0xff]
        %v556 = vld [vmem:[#allocation7 + $0x30] sm:$0xff]
        %v557 = vld [vmem:[#allocation7 + $0x38] sm:$0xff]
        %v558 = vld [vmem:[#allocation7 + $0x40] sm:$0xff]
        %v559 = vld [vmem:[#allocation7 + $0x48] sm:$0xff]
        %v560 = vld [vmem:[#allocation7 + $0x50] sm:$0xff]
        %v561 = vld [vmem:[#allocation7 + $0x58] sm:$0xff]
        %v562 = vld [vmem:[#allocation7 + $0x60] sm:$0xff]
        %v563 = vld [vmem:[#allocation7 + $0x68] sm:$0xff]
        %v564 = vld [vmem:[#allocation7 + $0x70] sm:$0xff]
        %v565 = vld [vmem:[#allocation7 + $0x78] sm:$0xff]
        %v566 = vunpack.c.l.bf16 %v550
        %v567 = vunpack.c.h.bf16 %v550
        %v568 = vunpack.c.l.bf16 %v551
        %v569 = vunpack.c.h.bf16 %v551
        %v570 = vunpack.c.l.bf16 %v552
        %v571 = vunpack.c.h.bf16 %v552
        %v572 = vunpack.c.l.bf16 %v553
        %v573 = vunpack.c.h.bf16 %v553
        %v574 = vunpack.c.l.bf16 %v554
        %v575 = vunpack.c.h.bf16 %v554
        %v576 = vunpack.c.l.bf16 %v555
        %v577 = vunpack.c.h.bf16 %v555
        %v578 = vunpack.c.l.bf16 %v556
        %v579 = vunpack.c.h.bf16 %v556
        %v580 = vunpack.c.l.bf16 %v557
        %v581 = vunpack.c.h.bf16 %v557
        %v582 = vunpack.c.l.bf16 %v558
        %v583 = vunpack.c.h.bf16 %v558
        %v584 = vunpack.c.l.bf16 %v559
        %v585 = vunpack.c.h.bf16 %v559
        %v586 = vunpack.c.l.bf16 %v560
        %v587 = vunpack.c.h.bf16 %v560
        %v588 = vunpack.c.l.bf16 %v561
        %v589 = vunpack.c.h.bf16 %v561
        %v590 = vunpack.c.l.bf16 %v562
        %v591 = vunpack.c.h.bf16 %v562
        %v592 = vunpack.c.l.bf16 %v563
        %v593 = vunpack.c.h.bf16 %v563
        %v594 = vunpack.c.l.bf16 %v564
        %v595 = vunpack.c.h.bf16 %v564
        %v596 = vunpack.c.l.bf16 %v565
        %v597 = vunpack.c.h.bf16 %v565
        %v598 = vld [vmem:[#allocation9] sm:$0x3]
        %v600 = vlaneseq
        %v601 = vshrl.u32 %v600, 7
        %v602 = vsub.s32 0, %v601
        %v603 = vrot.slane %v598, %v602
        %v604 = vlaneseq
        %v605 = vshrl.u32 %v604, 7
        %v606 = vsub.s32 1, %v605
        %v607 = vrot.slane %v598, %v606
        %610 = vmatprep.subr.mxu0 %v597
        %611 = vmatpush1.msra.mxu0 %v596
        %612 = vmatprep.subr.mxu0 %v595
        %613 = vmatpush1.msra.mxu0 %v594
        %614 = vmatprep.subr.mxu0 %v593
        %615 = vmatpush1.msra.mxu0 %v592
        %616 = vmatprep.subr.mxu0 %v591
        %617 = vmatpush1.msra.mxu0 %v590
        %618 = vmatprep.subr.mxu0 %v589
        %619 = vmatpush1.msra.mxu0 %v588
        %620 = vmatprep.subr.mxu0 %v587
        %621 = vmatpush1.msra.mxu0 %v586
        %622 = vmatprep.subr.mxu0 %v585
        %623 = vmatpush1.msra.mxu0 %v584
        %624 = vmatprep.subr.mxu0 %v583
        %625 = vmatpush1.msra.mxu0 %v582
        %626 = vmatprep.subr.mxu0 %v581
        %627 = vmatpush1.msra.mxu0 %v580
        %628 = vmatprep.subr.mxu0 %v579
        %629 = vmatpush1.msra.mxu0 %v578
        %630 = vmatprep.subr.mxu0 %v577
        %631 = vmatpush1.msra.mxu0 %v576
        %632 = vmatprep.subr.mxu0 %v575
        %633 = vmatpush1.msra.mxu0 %v574
        %634 = vmatprep.subr.mxu0 %v573
        %635 = vmatpush1.msra.mxu0 %v572
        %636 = vmatprep.subr.mxu0 %v571
        %637 = vmatpush1.msra.mxu0 %v570
        %638 = vmatprep.subr.mxu0 %v569
        %639 = vmatpush1.msra.mxu0 %v568
        %640 = vmatprep.subr.mxu0 %v567
        %641 = vmatpush1.msra.mxu0 %v566
        %642 = vmatprep.subr.mxu0 0.0
        %643 = vmatpush2.msra.mxu0 0.0
        %644 = vmatprep.subr.mxu0 0.0
        %645 = vmatpush2.msra.mxu0 0.0
        %646 = vmatprep.subr.mxu0 0.0
        %647 = vmatpush2.msra.mxu0 0.0
        %648 = vmatprep.subr.mxu0 0.0
        %649 = vmatpush2.msra.mxu0 0.0
        %650 = vmatprep.subr.mxu0 0.0
        %651 = vmatpush2.msra.mxu0 0.0
        %652 = vmatprep.subr.mxu0 0.0
        %653 = vmatpush2.msra.mxu0 0.0
        %654 = vmatprep.subr.mxu0 0.0
        %655 = vmatpush2.msra.mxu0 0.0
        %656 = vmatprep.subr.mxu0 0.0
        %657 = vmatpush2.msra.mxu0 0.0
        %658 = vmatprep.subr.mxu0 0.0
        %659 = vmatpush2.msra.mxu0 0.0
        %660 = vmatprep.subr.mxu0 0.0
        %661 = vmatpush2.msra.mxu0 0.0
        %662 = vmatprep.subr.mxu0 0.0
        %663 = vmatpush2.msra.mxu0 0.0
        %664 = vmatprep.subr.mxu0 0.0
        %665 = vmatpush2.msra.mxu0 0.0
        %666 = vmatprep.subr.mxu0 0.0
        %667 = vmatpush2.msra.mxu0 0.0
        %668 = vmatprep.subr.mxu0 0.0
        %669 = vmatpush2.msra.mxu0 0.0
        %670 = vmatprep.subr.mxu0 0.0
        %671 = vmatpush2.msra.mxu0 0.0
        %672 = vmatprep.subr.mxu0 0.0
        %673 = vmatpush2.msra.mxu0 0.0
        %674 = vmatprep.mubr.f32.mxu0 0.0
        %675 = vmatmul.mubr.f32.gmra.mxu0 %v533
        %v676 = vpop.f32.mrf.mxu0
        %v677 = vadd.f32 %v603, %v676
        %v678 = vpop.f32.mrf.mxu0
        %v679 = vadd.f32 %v607, %v678
        %680 = vmatprep.mubr.f32.mxu0 0.0
        %681 = vmatmul.mubr.f32.gmra.mxu0 %v534
        %v682 = vpop.f32.mrf.mxu0
        %v683 = vadd.f32 %v603, %v682
        %v684 = vpop.f32.mrf.mxu0
        %v685 = vadd.f32 %v607, %v684
        %686 = vmatprep.mubr.f32.mxu0 0.0
        %687 = vmatmul.mubr.f32.gmra.mxu0 %v535
        %v688 = vpop.f32.mrf.mxu0
        %v689 = vadd.f32 %v603, %v688
        %v690 = vpop.f32.mrf.mxu0
        %v691 = vadd.f32 %v607, %v690
        %692 = vmatprep.mubr.f32.mxu0 0.0
        %693 = vmatmul.mubr.f32.gmra.mxu0 %v536
        %v694 = vpop.f32.mrf.mxu0
        %v695 = vadd.f32 %v603, %v694
        %v696 = vpop.f32.mrf.mxu0
        %v697 = vadd.f32 %v607, %v696
        %698 = vmatprep.mubr.f32.mxu0 0.0
        %699 = vmatmul.mubr.f32.gmra.mxu0 %v537
        %v700 = vpop.f32.mrf.mxu0
        %v701 = vadd.f32 %v603, %v700
        %v702 = vpop.f32.mrf.mxu0
        %v703 = vadd.f32 %v607, %v702
        %704 = vmatprep.mubr.f32.mxu0 0.0
        %705 = vmatmul.mubr.f32.gmra.mxu0 %v538
        %v706 = vpop.f32.mrf.mxu0
        %v707 = vadd.f32 %v603, %v706
        %v708 = vpop.f32.mrf.mxu0
        %v709 = vadd.f32 %v607, %v708
        %710 = vmatprep.mubr.f32.mxu0 0.0
        %711 = vmatmul.mubr.f32.gmra.mxu0 %v539
        %v712 = vpop.f32.mrf.mxu0
        %v713 = vadd.f32 %v603, %v712
        %v714 = vpop.f32.mrf.mxu0
        %v715 = vadd.f32 %v607, %v714
        %716 = vmatprep.mubr.f32.mxu0 0.0
        %717 = vmatmul.mubr.f32.gmra.mxu0 %v540
        %v718 = vpop.f32.mrf.mxu0
        %v719 = vadd.f32 %v603, %v718
        %v720 = vpop.f32.mrf.mxu0
        %v721 = vadd.f32 %v607, %v720
        %722 = vmatprep.mubr.f32.mxu0 0.0
        %723 = vmatmul.mubr.f32.gmra.mxu0 %v541
        %v724 = vpop.f32.mrf.mxu0
        %v725 = vadd.f32 %v603, %v724
        %v726 = vpop.f32.mrf.mxu0
        %v727 = vadd.f32 %v607, %v726
        %728 = vmatprep.mubr.f32.mxu0 0.0
        %729 = vmatmul.mubr.f32.gmra.mxu0 %v542
        %v730 = vpop.f32.mrf.mxu0
        %v731 = vadd.f32 %v603, %v730
        %v732 = vpop.f32.mrf.mxu0
        %v733 = vadd.f32 %v607, %v732
        %734 = vmatprep.mubr.f32.mxu0 0.0
        %735 = vmatmul.mubr.f32.gmra.mxu0 %v543
        %v736 = vpop.f32.mrf.mxu0
        %v737 = vadd.f32 %v603, %v736
        %v738 = vpop.f32.mrf.mxu0
        %v739 = vadd.f32 %v607, %v738
        %740 = vmatprep.mubr.f32.mxu0 0.0
        %741 = vmatmul.mubr.f32.gmra.mxu0 %v544
        %v742 = vpop.f32.mrf.mxu0
        %v743 = vadd.f32 %v603, %v742
        %v744 = vpop.f32.mrf.mxu0
        %v745 = vadd.f32 %v607, %v744
        %746 = vmatprep.mubr.f32.mxu0 0.0
        %747 = vmatmul.mubr.f32.gmra.mxu0 %v545
        %v748 = vpop.f32.mrf.mxu0
        %v749 = vadd.f32 %v603, %v748
        %v750 = vpop.f32.mrf.mxu0
        %v751 = vadd.f32 %v607, %v750
        %752 = vmatprep.mubr.f32.mxu0 0.0
        %753 = vmatmul.mubr.f32.gmra.mxu0 %v546
        %v754 = vpop.f32.mrf.mxu0
        %v755 = vadd.f32 %v603, %v754
        %v756 = vpop.f32.mrf.mxu0
        %v757 = vadd.f32 %v607, %v756
        %758 = vmatprep.mubr.f32.mxu0 0.0
        %759 = vmatmul.mubr.f32.gmra.mxu0 %v547
        %v760 = vpop.f32.mrf.mxu0
        %v761 = vadd.f32 %v603, %v760
        %v762 = vpop.f32.mrf.mxu0
        %v763 = vadd.f32 %v607, %v762
        %764 = vmatprep.mubr.f32.mxu0 0.0
        %765 = vmatmul.mubr.f32.gmra.mxu0 %v548
        %v766 = vpop.f32.mrf.mxu0
        %v767 = vadd.f32 %v603, %v766
        %v768 = vpop.f32.mrf.mxu0
        %v769 = vadd.f32 %v607, %v768
        %770 = vmatprep.mubr.f32.mxu0 0.0
        %771 = vmatmul.mubr.f32.gmra.mxu0 %v549
        %v772 = vpop.f32.mrf.mxu0
        %v773 = vadd.f32 %v603, %v772
        %v774 = vpop.f32.mrf.mxu0
        %v775 = vadd.f32 %v607, %v774
        %776 = vdwg.mxu0
        %vm777 = vcmp.ge.f32.partialorder %v677, 0.0
        %vm778 = vcmp.ge.f32.partialorder %v679, 0.0
        %vm779 = vcmp.ge.f32.partialorder %v683, 0.0
        %vm780 = vcmp.ge.f32.partialorder %v685, 0.0
        %vm781 = vcmp.ge.f32.partialorder %v689, 0.0
        %vm782 = vcmp.ge.f32.partialorder %v691, 0.0
        %vm783 = vcmp.ge.f32.partialorder %v695, 0.0
        %vm784 = vcmp.ge.f32.partialorder %v697, 0.0
        %vm785 = vcmp.ge.f32.partialorder %v701, 0.0
        %vm786 = vcmp.ge.f32.partialorder %v703, 0.0
        %vm787 = vcmp.ge.f32.partialorder %v707, 0.0
        %vm788 = vcmp.ge.f32.partialorder %v709, 0.0
        %vm789 = vcmp.ge.f32.partialorder %v713, 0.0
        %vm790 = vcmp.ge.f32.partialorder %v715, 0.0
        %vm791 = vcmp.ge.f32.partialorder %v719, 0.0
        %vm792 = vcmp.ge.f32.partialorder %v721, 0.0
        %vm793 = vcmp.ge.f32.partialorder %v725, 0.0
        %vm794 = vcmp.ge.f32.partialorder %v727, 0.0
        %vm795 = vcmp.ge.f32.partialorder %v731, 0.0
        %vm796 = vcmp.ge.f32.partialorder %v733, 0.0
        %vm797 = vcmp.ge.f32.partialorder %v737, 0.0
        %vm798 = vcmp.ge.f32.partialorder %v739, 0.0
        %vm799 = vcmp.ge.f32.partialorder %v743, 0.0
        %vm800 = vcmp.ge.f32.partialorder %v745, 0.0
        %vm801 = vcmp.ge.f32.partialorder %v749, 0.0
        %vm802 = vcmp.ge.f32.partialorder %v751, 0.0
        %vm803 = vcmp.ge.f32.partialorder %v755, 0.0
        %vm804 = vcmp.ge.f32.partialorder %v757, 0.0
        %vm805 = vcmp.ge.f32.partialorder %v761, 0.0
        %vm806 = vcmp.ge.f32.partialorder %v763, 0.0
        %vm807 = vcmp.ge.f32.partialorder %v767, 0.0
        %vm808 = vcmp.ge.f32.partialorder %v769, 0.0
        %vm809 = vcmp.ge.f32.partialorder %v773, 0.0
        %vm810 = vcmp.ge.f32.partialorder %v775, 0.0
        %v811 = vstv %s531
        %v812 = vmul.f32 %v811, %v677
        %v813 = vmul.f32 %v811, %v679
        %v814 = vmul.f32 %v811, %v683
        %v815 = vmul.f32 %v811, %v685
        %v816 = vmul.f32 %v811, %v689
        %v817 = vmul.f32 %v811, %v691
        %v818 = vmul.f32 %v811, %v695
        %v819 = vmul.f32 %v811, %v697
        %v820 = vmul.f32 %v811, %v701
        %v821 = vmul.f32 %v811, %v703
        %v822 = vmul.f32 %v811, %v707
        %v823 = vmul.f32 %v811, %v709
        %v824 = vmul.f32 %v811, %v713
        %v825 = vmul.f32 %v811, %v715
        %v826 = vmul.f32 %v811, %v719
        %v827 = vmul.f32 %v811, %v721
        %v828 = vmul.f32 %v811, %v725
        %v829 = vmul.f32 %v811, %v727
        %v830 = vmul.f32 %v811, %v731
        %v831 = vmul.f32 %v811, %v733
        %v832 = vmul.f32 %v811, %v737
        %v833 = vmul.f32 %v811, %v739
        %v834 = vmul.f32 %v811, %v743
        %v835 = vmul.f32 %v811, %v745
        %v836 = vmul.f32 %v811, %v749
        %v837 = vmul.f32 %v811, %v751
        %v838 = vmul.f32 %v811, %v755
        %v839 = vmul.f32 %v811, %v757
        %v840 = vmul.f32 %v811, %v761
        %v841 = vmul.f32 %v811, %v763
        %v842 = vmul.f32 %v811, %v767
        %v843 = vmul.f32 %v811, %v769
        %v844 = vmul.f32 %v811, %v773
        %v845 = vmul.f32 %v811, %v775
        %v846 = vsel %vm777, %v677, %v812
        %v847 = vsel %vm778, %v679, %v813
        %v848 = vsel %vm779, %v683, %v814
        %v849 = vsel %vm780, %v685, %v815
        %v850 = vsel %vm781, %v689, %v816
        %v851 = vsel %vm782, %v691, %v817
        %v852 = vsel %vm783, %v695, %v818
        %v853 = vsel %vm784, %v697, %v819
        %v854 = vsel %vm785, %v701, %v820
        %v855 = vsel %vm786, %v703, %v821
        %v856 = vsel %vm787, %v707, %v822
        %v857 = vsel %vm788, %v709, %v823
        %v858 = vsel %vm789, %v713, %v824
        %v859 = vsel %vm790, %v715, %v825
        %v860 = vsel %vm791, %v719, %v826
        %v861 = vsel %vm792, %v721, %v827
        %v862 = vsel %vm793, %v725, %v828
        %v863 = vsel %vm794, %v727, %v829
        %v864 = vsel %vm795, %v731, %v830
        %v865 = vsel %vm796, %v733, %v831
        %v866 = vsel %vm797, %v737, %v832
        %v867 = vsel %vm798, %v739, %v833
        %v868 = vsel %vm799, %v743, %v834
        %v869 = vsel %vm800, %v745, %v835
        %v870 = vsel %vm801, %v749, %v836
        %v871 = vsel %vm802, %v751, %v837
        %v872 = vsel %vm803, %v755, %v838
        %v873 = vsel %vm804, %v757, %v839
        %v874 = vsel %vm805, %v761, %v840
        %v875 = vsel %vm806, %v763, %v841
        %v876 = vsel %vm807, %v767, %v842
        %v877 = vsel %vm808, %v769, %v843
        %v878 = vsel %vm809, %v773, %v844
        %v879 = vsel %vm810, %v775, %v845
        %v880 = vld [vmem:[#allocation10] sm:$0xff]
        %v881 = vld [vmem:[#allocation10 + $0x8] sm:$0xf]
        %v882 = vld [vmem:[#allocation10 + $0xc] sm:$0xff]
        %v883 = vld [vmem:[#allocation10 + $0x14] sm:$0xf]
        %v884 = vld [vmem:[#allocation10 + $0x18] sm:$0xff]
        %v885 = vld [vmem:[#allocation10 + $0x20] sm:$0xf]
        %v886 = vld [vmem:[#allocation10 + $0x24] sm:$0xff]
        %v887 = vld [vmem:[#allocation10 + $0x2c] sm:$0xf]
        %v888 = vld [vmem:[#allocation10 + $0x30] sm:$0xff]
        %v889 = vld [vmem:[#allocation10 + $0x38] sm:$0xf]
        %v890 = vld [vmem:[#allocation10 + $0x3c] sm:$0xff]
        %v891 = vld [vmem:[#allocation10 + $0x44] sm:$0xf]
        %v892 = vld [vmem:[#allocation10 + $0x48] sm:$0xff]
        %v893 = vld [vmem:[#allocation10 + $0x50] sm:$0xf]
        %v894 = vld [vmem:[#allocation10 + $0x54] sm:$0xff]
        %v895 = vld [vmem:[#allocation10 + $0x5c] sm:$0xf]
        %v896 = vld [vmem:[#allocation10 + $0x60] sm:$0xff]
        %v897 = vld [vmem:[#allocation10 + $0x68] sm:$0xf]
        %v898 = vld [vmem:[#allocation10 + $0x6c] sm:$0xff]
        %v899 = vld [vmem:[#allocation10 + $0x74] sm:$0xf]
        %v900 = vld [vmem:[#allocation10 + $0x78] sm:$0xff]
        %v901 = vld [vmem:[#allocation10 + $0x80] sm:$0xf]
        %v902 = vld [vmem:[#allocation10 + $0x84] sm:$0xff]
        %v903 = vld [vmem:[#allocation10 + $0x8c] sm:$0xf]
        %v904 = vld [vmem:[#allocation10 + $0x90] sm:$0xff]
        %v905 = vld [vmem:[#allocation10 + $0x98] sm:$0xf]
        %v906 = vld [vmem:[#allocation10 + $0x9c] sm:$0xff]
        %v907 = vld [vmem:[#allocation10 + $0xa4] sm:$0xf]
        %v908 = vld [vmem:[#allocation10 + $0xa8] sm:$0xff]
        %v909 = vld [vmem:[#allocation10 + $0xb0] sm:$0xf]
        %v910 = vld [vmem:[#allocation10 + $0xb4] sm:$0xff]
        %v911 = vld [vmem:[#allocation10 + $0xbc] sm:$0xf]
        %v912 = vld [vmem:[#allocation10 + $0xc0] sm:$0xff]
        %v913 = vld [vmem:[#allocation10 + $0xc8] sm:$0xf]
        %v914 = vld [vmem:[#allocation10 + $0xcc] sm:$0xff]
        %v915 = vld [vmem:[#allocation10 + $0xd4] sm:$0xf]
        %v916 = vld [vmem:[#allocation10 + $0xd8] sm:$0xff]
        %v917 = vld [vmem:[#allocation10 + $0xe0] sm:$0xf]
        %v918 = vld [vmem:[#allocation10 + $0xe4] sm:$0xff]
        %v919 = vld [vmem:[#allocation10 + $0xec] sm:$0xf]
        %v920 = vld [vmem:[#allocation10 + $0xf0] sm:$0xff]
        %v921 = vld [vmem:[#allocation10 + $0xf8] sm:$0xf]
        %v922 = vld [vmem:[#allocation10 + $0xfc] sm:$0xff]
        %v923 = vld [vmem:[#allocation10 + $0x104] sm:$0xf]
        %v924 = vld [vmem:[#allocation10 + $0x108] sm:$0xff]
        %v925 = vld [vmem:[#allocation10 + $0x110] sm:$0xf]
        %v926 = vld [vmem:[#allocation10 + $0x114] sm:$0xff]
        %v927 = vld [vmem:[#allocation10 + $0x11c] sm:$0xf]
        %v928 = vld [vmem:[#allocation10 + $0x120] sm:$0xff]
        %v929 = vld [vmem:[#allocation10 + $0x128] sm:$0xf]
        %v930 = vld [vmem:[#allocation10 + $0x12c] sm:$0xff]
        %v931 = vld [vmem:[#allocation10 + $0x134] sm:$0xf]
        %v932 = vld [vmem:[#allocation10 + $0x138] sm:$0xff]
        %v933 = vld [vmem:[#allocation10 + $0x140] sm:$0xf]
        %v934 = vld [vmem:[#allocation10 + $0x144] sm:$0xff]
        %v935 = vld [vmem:[#allocation10 + $0x14c] sm:$0xf]
        %v936 = vld [vmem:[#allocation10 + $0x150] sm:$0xff]
        %v937 = vld [vmem:[#allocation10 + $0x158] sm:$0xf]
        %v938 = vld [vmem:[#allocation10 + $0x15c] sm:$0xff]
        %v939 = vld [vmem:[#allocation10 + $0x164] sm:$0xf]
        %v940 = vld [vmem:[#allocation10 + $0x168] sm:$0xff]
        %v941 = vld [vmem:[#allocation10 + $0x170] sm:$0xf]
        %v942 = vld [vmem:[#allocation10 + $0x174] sm:$0xff]
        %v943 = vld [vmem:[#allocation10 + $0x17c] sm:$0xf]
        %v944 = vunpack.c.l.bf16 %v880
        %v945 = vunpack.c.h.bf16 %v880
        %v946 = vunpack.c.l.bf16 %v881
        %v947 = vunpack.c.l.bf16 %v882
        %v948 = vunpack.c.h.bf16 %v882
        %v949 = vunpack.c.l.bf16 %v883
        %v950 = vunpack.c.l.bf16 %v884
        %v951 = vunpack.c.h.bf16 %v884
        %v952 = vunpack.c.l.bf16 %v885
        %v953 = vunpack.c.l.bf16 %v886
        %v954 = vunpack.c.h.bf16 %v886
        %v955 = vunpack.c.l.bf16 %v887
        %v956 = vunpack.c.l.bf16 %v888
        %v957 = vunpack.c.h.bf16 %v888
        %v958 = vunpack.c.l.bf16 %v889
        %v959 = vunpack.c.l.bf16 %v890
        %v960 = vunpack.c.h.bf16 %v890
        %v961 = vunpack.c.l.bf16 %v891
        %v962 = vunpack.c.l.bf16 %v892
        %v963 = vunpack.c.h.bf16 %v892
        %v964 = vunpack.c.l.bf16 %v893
        %v965 = vunpack.c.l.bf16 %v894
        %v966 = vunpack.c.h.bf16 %v894
        %v967 = vunpack.c.l.bf16 %v895
        %v968 = vunpack.c.l.bf16 %v896
        %v969 = vunpack.c.h.bf16 %v896
        %v970 = vunpack.c.l.bf16 %v897
        %v971 = vunpack.c.l.bf16 %v898
        %v972 = vunpack.c.h.bf16 %v898
        %v973 = vunpack.c.l.bf16 %v899
        %v974 = vunpack.c.l.bf16 %v900
        %v975 = vunpack.c.h.bf16 %v900
        %v976 = vunpack.c.l.bf16 %v901
        %v977 = vunpack.c.l.bf16 %v902
        %v978 = vunpack.c.h.bf16 %v902
        %v979 = vunpack.c.l.bf16 %v903
        %v980 = vunpack.c.l.bf16 %v904
        %v981 = vunpack.c.h.bf16 %v904
        %v982 = vunpack.c.l.bf16 %v905
        %v983 = vunpack.c.l.bf16 %v906
        %v984 = vunpack.c.h.bf16 %v906
        %v985 = vunpack.c.l.bf16 %v907
        %v986 = vunpack.c.l.bf16 %v908
        %v987 = vunpack.c.h.bf16 %v908
        %v988 = vunpack.c.l.bf16 %v909
        %v989 = vunpack.c.l.bf16 %v910
        %v990 = vunpack.c.h.bf16 %v910
        %v991 = vunpack.c.l.bf16 %v911
        %v992 = vunpack.c.l.bf16 %v912
        %v993 = vunpack.c.h.bf16 %v912
        %v994 = vunpack.c.l.bf16 %v913
        %v995 = vunpack.c.l.bf16 %v914
        %v996 = vunpack.c.h.bf16 %v914
        %v997 = vunpack.c.l.bf16 %v915
        %v998 = vunpack.c.l.bf16 %v916
        %v999 = vunpack.c.h.bf16 %v916
        %v1000 = vunpack.c.l.bf16 %v917
        %v1001 = vunpack.c.l.bf16 %v918
        %v1002 = vunpack.c.h.bf16 %v918
        %v1003 = vunpack.c.l.bf16 %v919
        %v1004 = vunpack.c.l.bf16 %v920
        %v1005 = vunpack.c.h.bf16 %v920
        %v1006 = vunpack.c.l.bf16 %v921
        %v1007 = vunpack.c.l.bf16 %v922
        %v1008 = vunpack.c.h.bf16 %v922
        %v1009 = vunpack.c.l.bf16 %v923
        %v1010 = vunpack.c.l.bf16 %v924
        %v1011 = vunpack.c.h.bf16 %v924
        %v1012 = vunpack.c.l.bf16 %v925
        %v1013 = vunpack.c.l.bf16 %v926
        %v1014 = vunpack.c.h.bf16 %v926
        %v1015 = vunpack.c.l.bf16 %v927
        %v1016 = vunpack.c.l.bf16 %v928
        %v1017 = vunpack.c.h.bf16 %v928
        %v1018 = vunpack.c.l.bf16 %v929
        %v1019 = vunpack.c.l.bf16 %v930
        %v1020 = vunpack.c.h.bf16 %v930
        %v1021 = vunpack.c.l.bf16 %v931
        %v1022 = vunpack.c.l.bf16 %v932
        %v1023 = vunpack.c.h.bf16 %v932
        %v1024 = vunpack.c.l.bf16 %v933
        %v1025 = vunpack.c.l.bf16 %v934
        %v1026 = vunpack.c.h.bf16 %v934
        %v1027 = vunpack.c.l.bf16 %v935
        %v1028 = vunpack.c.l.bf16 %v936
        %v1029 = vunpack.c.h.bf16 %v936
        %v1030 = vunpack.c.l.bf16 %v937
        %v1031 = vunpack.c.l.bf16 %v938
        %v1032 = vunpack.c.h.bf16 %v938
        %v1033 = vunpack.c.l.bf16 %v939
        %v1034 = vunpack.c.l.bf16 %v940
        %v1035 = vunpack.c.h.bf16 %v940
        %v1036 = vunpack.c.l.bf16 %v941
        %v1037 = vunpack.c.l.bf16 %v942
        %v1038 = vunpack.c.h.bf16 %v942
        %v1039 = vunpack.c.l.bf16 %v943
        %v1040 = vld [vmem:[%s6] sm:$0x7]
        %v1042 = vlaneseq
        %v1043 = vshrl.u32 %v1042, 7
        %v1044 = vsub.s32 0, %v1043
        %v1045 = vrot.slane %v1040, %v1044
        %v1046 = vlaneseq
        %v1047 = vshrl.u32 %v1046, 7
        %v1048 = vsub.s32 1, %v1047
        %v1049 = vrot.slane %v1040, %v1048
        %v1050 = vlaneseq
        %v1051 = vshrl.u32 %v1050, 7
        %v1052 = vsub.s32 2, %v1051
        %v1053 = vrot.slane %v1040, %v1052
        %1057 = vmatprep.subr.mxu0 %v990
        %1058 = vmatpush1.msra.mxu0 %v989
        %1059 = vmatprep.subr.mxu0 %v987
        %1060 = vmatpush1.msra.mxu0 %v986
        %1061 = vmatprep.subr.mxu0 %v984
        %1062 = vmatpush1.msra.mxu0 %v983
        %1063 = vmatprep.subr.mxu0 %v981
        %1064 = vmatpush1.msra.mxu0 %v980
        %1065 = vmatprep.subr.mxu0 %v978
        %1066 = vmatpush1.msra.mxu0 %v977
        %1067 = vmatprep.subr.mxu0 %v975
        %1068 = vmatpush1.msra.mxu0 %v974
        %1069 = vmatprep.subr.mxu0 %v972
        %1070 = vmatpush1.msra.mxu0 %v971
        %1071 = vmatprep.subr.mxu0 %v969
        %1072 = vmatpush1.msra.mxu0 %v968
        %1073 = vmatprep.subr.mxu0 %v966
        %1074 = vmatpush1.msra.mxu0 %v965
        %1075 = vmatprep.subr.mxu0 %v963
        %1076 = vmatpush1.msra.mxu0 %v962
        %1077 = vmatprep.subr.mxu0 %v960
        %1078 = vmatpush1.msra.mxu0 %v959
        %1079 = vmatprep.subr.mxu0 %v957
        %1080 = vmatpush1.msra.mxu0 %v956
        %1081 = vmatprep.subr.mxu0 %v954
        %1082 = vmatpush1.msra.mxu0 %v953
        %1083 = vmatprep.subr.mxu0 %v951
        %1084 = vmatpush1.msra.mxu0 %v950
        %1085 = vmatprep.subr.mxu0 %v948
        %1086 = vmatpush1.msra.mxu0 %v947
        %1087 = vmatprep.subr.mxu0 %v945
        %1088 = vmatpush1.msra.mxu0 %v944
        %1089 = vmatprep.subr.mxu0 %v1038
        %1090 = vmatpush2.msra.mxu0 %v1037
        %1091 = vmatprep.subr.mxu0 %v1035
        %1092 = vmatpush2.msra.mxu0 %v1034
        %1093 = vmatprep.subr.mxu0 %v1032
        %1094 = vmatpush2.msra.mxu0 %v1031
        %1095 = vmatprep.subr.mxu0 %v1029
        %1096 = vmatpush2.msra.mxu0 %v1028
        %1097 = vmatprep.subr.mxu0 %v1026
        %1098 = vmatpush2.msra.mxu0 %v1025
        %1099 = vmatprep.subr.mxu0 %v1023
        %1100 = vmatpush2.msra.mxu0 %v1022
        %1101 = vmatprep.subr.mxu0 %v1020
        %1102 = vmatpush2.msra.mxu0 %v1019
        %1103 = vmatprep.subr.mxu0 %v1017
        %1104 = vmatpush2.msra.mxu0 %v1016
        %1105 = vmatprep.subr.mxu0 %v1014
        %1106 = vmatpush2.msra.mxu0 %v1013
        %1107 = vmatprep.subr.mxu0 %v1011
        %1108 = vmatpush2.msra.mxu0 %v1010
        %1109 = vmatprep.subr.mxu0 %v1008
        %1110 = vmatpush2.msra.mxu0 %v1007
        %1111 = vmatprep.subr.mxu0 %v1005
        %1112 = vmatpush2.msra.mxu0 %v1004
        %1113 = vmatprep.subr.mxu0 %v1002
        %1114 = vmatpush2.msra.mxu0 %v1001
        %1115 = vmatprep.subr.mxu0 %v999
        %1116 = vmatpush2.msra.mxu0 %v998
        %1117 = vmatprep.subr.mxu0 %v996
        %1118 = vmatpush2.msra.mxu0 %v995
        %1119 = vmatprep.subr.mxu0 %v993
        %1120 = vmatpush2.msra.mxu0 %v992
        %1121 = vmatprep.mubr.f32.mxu0 %v847
        %1122 = vmatmul.mubr.f32.gmra.mxu0 %v846
        %v1123 = vpop.f32.mrf.mxu0
        %v1124 = vadd.f32 %v1045, %v1123
        %v1125 = vpop.f32.mrf.mxu0
        %v1126 = vadd.f32 %v1049, %v1125
        %1127 = vmatprep.mubr.f32.mxu0 %v849
        %1128 = vmatmul.mubr.f32.gmra.mxu0 %v848
        %v1129 = vpop.f32.mrf.mxu0
        %v1130 = vadd.f32 %v1045, %v1129
        %v1131 = vpop.f32.mrf.mxu0
        %v1132 = vadd.f32 %v1049, %v1131
        %1133 = vmatprep.mubr.f32.mxu0 %v851
        %1134 = vmatmul.mubr.f32.gmra.mxu0 %v850
        %v1135 = vpop.f32.mrf.mxu0
        %v1136 = vadd.f32 %v1045, %v1135
        %v1137 = vpop.f32.mrf.mxu0
        %v1138 = vadd.f32 %v1049, %v1137
        %1139 = vmatprep.mubr.f32.mxu0 %v853
        %1140 = vmatmul.mubr.f32.gmra.mxu0 %v852
        %v1141 = vpop.f32.mrf.mxu0
        %v1142 = vadd.f32 %v1045, %v1141
        %v1143 = vpop.f32.mrf.mxu0
        %v1144 = vadd.f32 %v1049, %v1143
        %1145 = vmatprep.mubr.f32.mxu0 %v855
        %1146 = vmatmul.mubr.f32.gmra.mxu0 %v854
        %v1147 = vpop.f32.mrf.mxu0
        %v1148 = vadd.f32 %v1045, %v1147
        %v1149 = vpop.f32.mrf.mxu0
        %v1150 = vadd.f32 %v1049, %v1149
        %1151 = vmatprep.mubr.f32.mxu0 %v857
        %1152 = vmatmul.mubr.f32.gmra.mxu0 %v856
        %v1153 = vpop.f32.mrf.mxu0
        %v1154 = vadd.f32 %v1045, %v1153
        %v1155 = vpop.f32.mrf.mxu0
        %v1156 = vadd.f32 %v1049, %v1155
        %1157 = vmatprep.mubr.f32.mxu0 %v859
        %1158 = vmatmul.mubr.f32.gmra.mxu0 %v858
        %v1159 = vpop.f32.mrf.mxu0
        %v1160 = vadd.f32 %v1045, %v1159
        %v1161 = vpop.f32.mrf.mxu0
        %v1162 = vadd.f32 %v1049, %v1161
        %1163 = vmatprep.mubr.f32.mxu0 %v861
        %1164 = vmatmul.mubr.f32.gmra.mxu0 %v860
        %v1165 = vpop.f32.mrf.mxu0
        %v1166 = vadd.f32 %v1045, %v1165
        %v1167 = vpop.f32.mrf.mxu0
        %v1168 = vadd.f32 %v1049, %v1167
        %1169 = vmatprep.mubr.f32.mxu0 %v863
        %1170 = vmatmul.mubr.f32.gmra.mxu0 %v862
        %v1171 = vpop.f32.mrf.mxu0
        %v1172 = vadd.f32 %v1045, %v1171
        %v1173 = vpop.f32.mrf.mxu0
        %v1174 = vadd.f32 %v1049, %v1173
        %1175 = vmatprep.mubr.f32.mxu0 %v865
        %1176 = vmatmul.mubr.f32.gmra.mxu0 %v864
        %v1177 = vpop.f32.mrf.mxu0
        %v1178 = vadd.f32 %v1045, %v1177
        %v1179 = vpop.f32.mrf.mxu0
        %v1180 = vadd.f32 %v1049, %v1179
        %1181 = vmatprep.mubr.f32.mxu0 %v867
        %1182 = vmatmul.mubr.f32.gmra.mxu0 %v866
        %v1183 = vpop.f32.mrf.mxu0
        %v1184 = vadd.f32 %v1045, %v1183
        %v1185 = vpop.f32.mrf.mxu0
        %v1186 = vadd.f32 %v1049, %v1185
        %1187 = vmatprep.mubr.f32.mxu0 %v869
        %1188 = vmatmul.mubr.f32.gmra.mxu0 %v868
        %v1189 = vpop.f32.mrf.mxu0
        %v1190 = vadd.f32 %v1045, %v1189
        %v1191 = vpop.f32.mrf.mxu0
        %v1192 = vadd.f32 %v1049, %v1191
        %1193 = vmatprep.mubr.f32.mxu0 %v871
        %1194 = vmatmul.mubr.f32.gmra.mxu0 %v870
        %v1195 = vpop.f32.mrf.mxu0
        %v1196 = vadd.f32 %v1045, %v1195
        %v1197 = vpop.f32.mrf.mxu0
        %v1198 = vadd.f32 %v1049, %v1197
        %1199 = vmatprep.mubr.f32.mxu0 %v873
        %1200 = vmatmul.mubr.f32.gmra.mxu0 %v872
        %v1201 = vpop.f32.mrf.mxu0
        %v1202 = vadd.f32 %v1045, %v1201
        %v1203 = vpop.f32.mrf.mxu0
        %v1204 = vadd.f32 %v1049, %v1203
        %1205 = vmatprep.mubr.f32.mxu0 %v875
        %1206 = vmatmul.mubr.f32.gmra.mxu0 %v874
        %v1207 = vpop.f32.mrf.mxu0
        %v1208 = vadd.f32 %v1045, %v1207
        %v1209 = vpop.f32.mrf.mxu0
        %v1210 = vadd.f32 %v1049, %v1209
        %1211 = vmatprep.mubr.f32.mxu0 %v877
        %1212 = vmatmul.mubr.f32.gmra.mxu0 %v876
        %v1213 = vpop.f32.mrf.mxu0
        %v1214 = vadd.f32 %v1045, %v1213
        %v1215 = vpop.f32.mrf.mxu0
        %v1216 = vadd.f32 %v1049, %v1215
        %1217 = vmatprep.mubr.f32.mxu0 %v879
        %1218 = vmatmul.mubr.f32.gmra.mxu0 %v878
        %v1219 = vpop.f32.mrf.mxu0
        %v1220 = vadd.f32 %v1045, %v1219
        %v1221 = vpop.f32.mrf.mxu0
        %v1222 = vadd.f32 %v1049, %v1221
        %1223 = vdwg.mxu0
        %1224 = vmatprep.subr.mxu0 0.0
        %1225 = vmatpush1.msra.mxu0 %v991
        %1226 = vmatprep.subr.mxu0 0.0
        %1227 = vmatpush1.msra.mxu0 %v988
        %1228 = vmatprep.subr.mxu0 0.0
        %1229 = vmatpush1.msra.mxu0 %v985
        %1230 = vmatprep.subr.mxu0 0.0
        %1231 = vmatpush1.msra.mxu0 %v982
        %1232 = vmatprep.subr.mxu0 0.0
        %1233 = vmatpush1.msra.mxu0 %v979
        %1234 = vmatprep.subr.mxu0 0.0
        %1235 = vmatpush1.msra.mxu0 %v976
        %1236 = vmatprep.subr.mxu0 0.0
        %1237 = vmatpush1.msra.mxu0 %v973
        %1238 = vmatprep.subr.mxu0 0.0
        %1239 = vmatpush1.msra.mxu0 %v970
        %1240 = vmatprep.subr.mxu0 0.0
        %1241 = vmatpush1.msra.mxu0 %v967
        %1242 = vmatprep.subr.mxu0 0.0
        %1243 = vmatpush1.msra.mxu0 %v964
        %1244 = vmatprep.subr.mxu0 0.0
        %1245 = vmatpush1.msra.mxu0 %v961
        %1246 = vmatprep.subr.mxu0 0.0
        %1247 = vmatpush1.msra.mxu0 %v958
        %1248 = vmatprep.subr.mxu0 0.0
        %1249 = vmatpush1.msra.mxu0 %v955
        %1250 = vmatprep.subr.mxu0 0.0
        %1251 = vmatpush1.msra.mxu0 %v952
        %1252 = vmatprep.subr.mxu0 0.0
        %1253 = vmatpush1.msra.mxu0 %v949
        %1254 = vmatprep.subr.mxu0 0.0
        %1255 = vmatpush1.msra.mxu0 %v946
        %1256 = vmatprep.subr.mxu0 0.0
        %1257 = vmatpush2.msra.mxu0 %v1039
        %1258 = vmatprep.subr.mxu0 0.0
        %1259 = vmatpush2.msra.mxu0 %v1036
        %1260 = vmatprep.subr.mxu0 0.0
        %1261 = vmatpush2.msra.mxu0 %v1033
        %1262 = vmatprep.subr.mxu0 0.0
        %1263 = vmatpush2.msra.mxu0 %v1030
        %1264 = vmatprep.subr.mxu0 0.0
        %1265 = vmatpush2.msra.mxu0 %v1027
        %1266 = vmatprep.subr.mxu0 0.0
        %1267 = vmatpush2.msra.mxu0 %v1024
        %1268 = vmatprep.subr.mxu0 0.0
        %1269 = vmatpush2.msra.mxu0 %v1021
        %1270 = vmatprep.subr.mxu0 0.0
        %1271 = vmatpush2.msra.mxu0 %v1018
        %1272 = vmatprep.subr.mxu0 0.0
        %1273 = vmatpush2.msra.mxu0 %v1015
        %1274 = vmatprep.subr.mxu0 0.0
        %1275 = vmatpush2.msra.mxu0 %v1012
        %1276 = vmatprep.subr.mxu0 0.0
        %1277 = vmatpush2.msra.mxu0 %v1009
        %1278 = vmatprep.subr.mxu0 0.0
        %1279 = vmatpush2.msra.mxu0 %v1006
        %1280 = vmatprep.subr.mxu0 0.0
        %1281 = vmatpush2.msra.mxu0 %v1003
        %1282 = vmatprep.subr.mxu0 0.0
        %1283 = vmatpush2.msra.mxu0 %v1000
        %1284 = vmatprep.subr.mxu0 0.0
        %1285 = vmatpush2.msra.mxu0 %v997
        %1286 = vmatprep.subr.mxu0 0.0
        %1287 = vmatpush2.msra.mxu0 %v994
        %1288 = vmatprep.mubr.f32.mxu0 %v847
        %1289 = vmatmul.mubr.f32.gmra.mxu0 %v846
        %v1290 = vpop.f32.mrf.mxu0
        %v1291 = vadd.f32 %v1053, %v1290
        %v1292 = vpop.f32.mrf.mxu0
        %1293 = vmatprep.mubr.f32.mxu0 %v849
        %1294 = vmatmul.mubr.f32.gmra.mxu0 %v848
        %v1295 = vpop.f32.mrf.mxu0
        %v1296 = vadd.f32 %v1053, %v1295
        %v1297 = vpop.f32.mrf.mxu0
        %1298 = vmatprep.mubr.f32.mxu0 %v851
        %1299 = vmatmul.mubr.f32.gmra.mxu0 %v850
        %v1300 = vpop.f32.mrf.mxu0
        %v1301 = vadd.f32 %v1053, %v1300
        %v1302 = vpop.f32.mrf.mxu0
        %1303 = vmatprep.mubr.f32.mxu0 %v853
        %1304 = vmatmul.mubr.f32.gmra.mxu0 %v852
        %v1305 = vpop.f32.mrf.mxu0
        %v1306 = vadd.f32 %v1053, %v1305
        %v1307 = vpop.f32.mrf.mxu0
        %1308 = vmatprep.mubr.f32.mxu0 %v855
        %1309 = vmatmul.mubr.f32.gmra.mxu0 %v854
        %v1310 = vpop.f32.mrf.mxu0
        %v1311 = vadd.f32 %v1053, %v1310
        %v1312 = vpop.f32.mrf.mxu0
        %1313 = vmatprep.mubr.f32.mxu0 %v857
        %1314 = vmatmul.mubr.f32.gmra.mxu0 %v856
        %v1315 = vpop.f32.mrf.mxu0
        %v1316 = vadd.f32 %v1053, %v1315
        %v1317 = vpop.f32.mrf.mxu0
        %1318 = vmatprep.mubr.f32.mxu0 %v859
        %1319 = vmatmul.mubr.f32.gmra.mxu0 %v858
        %v1320 = vpop.f32.mrf.mxu0
        %v1321 = vadd.f32 %v1053, %v1320
        %v1322 = vpop.f32.mrf.mxu0
        %1323 = vmatprep.mubr.f32.mxu0 %v861
        %1324 = vmatmul.mubr.f32.gmra.mxu0 %v860
        %v1325 = vpop.f32.mrf.mxu0
        %v1326 = vadd.f32 %v1053, %v1325
        %v1327 = vpop.f32.mrf.mxu0
        %1328 = vmatprep.mubr.f32.mxu0 %v863
        %1329 = vmatmul.mubr.f32.gmra.mxu0 %v862
        %v1330 = vpop.f32.mrf.mxu0
        %v1331 = vadd.f32 %v1053, %v1330
        %v1332 = vpop.f32.mrf.mxu0
        %1333 = vmatprep.mubr.f32.mxu0 %v865
        %1334 = vmatmul.mubr.f32.gmra.mxu0 %v864
        %v1335 = vpop.f32.mrf.mxu0
        %v1336 = vadd.f32 %v1053, %v1335
        %v1337 = vpop.f32.mrf.mxu0
        %1338 = vmatprep.mubr.f32.mxu0 %v867
        %1339 = vmatmul.mubr.f32.gmra.mxu0 %v866
        %v1340 = vpop.f32.mrf.mxu0
        %v1341 = vadd.f32 %v1053, %v1340
        %v1342 = vpop.f32.mrf.mxu0
        %1343 = vmatprep.mubr.f32.mxu0 %v869
        %1344 = vmatmul.mubr.f32.gmra.mxu0 %v868
        %v1345 = vpop.f32.mrf.mxu0
        %v1346 = vadd.f32 %v1053, %v1345
        %v1347 = vpop.f32.mrf.mxu0
        %1348 = vmatprep.mubr.f32.mxu0 %v871
        %1349 = vmatmul.mubr.f32.gmra.mxu0 %v870
        %v1350 = vpop.f32.mrf.mxu0
        %v1351 = vadd.f32 %v1053, %v1350
        %v1352 = vpop.f32.mrf.mxu0
        %1353 = vmatprep.mubr.f32.mxu0 %v873
        %1354 = vmatmul.mubr.f32.gmra.mxu0 %v872
        %v1355 = vpop.f32.mrf.mxu0
        %v1356 = vadd.f32 %v1053, %v1355
        %v1357 = vpop.f32.mrf.mxu0
        %1358 = vmatprep.mubr.f32.mxu0 %v875
        %1359 = vmatmul.mubr.f32.gmra.mxu0 %v874
        %v1360 = vpop.f32.mrf.mxu0
        %v1361 = vadd.f32 %v1053, %v1360
        %v1362 = vpop.f32.mrf.mxu0
        %1363 = vmatprep.mubr.f32.mxu0 %v877
        %1364 = vmatmul.mubr.f32.gmra.mxu0 %v876
        %v1365 = vpop.f32.mrf.mxu0
        %v1366 = vadd.f32 %v1053, %v1365
        %v1367 = vpop.f32.mrf.mxu0
        %1368 = vmatprep.mubr.f32.mxu0 %v879
        %1369 = vmatmul.mubr.f32.gmra.mxu0 %v878
        %v1370 = vpop.f32.mrf.mxu0
        %v1371 = vadd.f32 %v1053, %v1370
        %v1372 = vpop.f32.mrf.mxu0
        %1373 = vdwg.mxu0
        %v1374 = vld [vmem:[#allocation12] sm:$0xff]
        %v1375 = vld [vmem:[#allocation12 + $0x8] sm:$0xf]
        %v1376 = vld [vmem:[#allocation12 + $0xc] sm:$0xff]
        %v1377 = vld [vmem:[#allocation12 + $0x14] sm:$0xf]
        %v1378 = vld [vmem:[#allocation12 + $0x18] sm:$0xff]
        %v1379 = vld [vmem:[#allocation12 + $0x20] sm:$0xf]
        %v1380 = vld [vmem:[#allocation12 + $0x24] sm:$0xff]
        %v1381 = vld [vmem:[#allocation12 + $0x2c] sm:$0xf]
        %v1382 = vld [vmem:[#allocation12 + $0x30] sm:$0xff]
        %v1383 = vld [vmem:[#allocation12 + $0x38] sm:$0xf]
        %v1384 = vld [vmem:[#allocation12 + $0x3c] sm:$0xff]
        %v1385 = vld [vmem:[#allocation12 + $0x44] sm:$0xf]
        %v1386 = vld [vmem:[#allocation12 + $0x48] sm:$0xff]
        %v1387 = vld [vmem:[#allocation12 + $0x50] sm:$0xf]
        %v1388 = vld [vmem:[#allocation12 + $0x54] sm:$0xff]
        %v1389 = vld [vmem:[#allocation12 + $0x5c] sm:$0xf]
        %v1390 = vld [vmem:[#allocation12 + $0x60] sm:$0xff]
        %v1391 = vld [vmem:[#allocation12 + $0x68] sm:$0xf]
        %v1392 = vld [vmem:[#allocation12 + $0x6c] sm:$0xff]
        %v1393 = vld [vmem:[#allocation12 + $0x74] sm:$0xf]
        %v1394 = vld [vmem:[#allocation12 + $0x78] sm:$0xff]
        %v1395 = vld [vmem:[#allocation12 + $0x80] sm:$0xf]
        %v1396 = vld [vmem:[#allocation12 + $0x84] sm:$0xff]
        %v1397 = vld [vmem:[#allocation12 + $0x8c] sm:$0xf]
        %v1398 = vld [vmem:[#allocation12 + $0x90] sm:$0xff]
        %v1399 = vld [vmem:[#allocation12 + $0x98] sm:$0xf]
        %v1400 = vld [vmem:[#allocation12 + $0x9c] sm:$0xff]
        %v1401 = vld [vmem:[#allocation12 + $0xa4] sm:$0xf]
        %v1402 = vld [vmem:[#allocation12 + $0xa8] sm:$0xff]
        %v1403 = vld [vmem:[#allocation12 + $0xb0] sm:$0xf]
        %v1404 = vld [vmem:[#allocation12 + $0xb4] sm:$0xff]
        %v1405 = vld [vmem:[#allocation12 + $0xbc] sm:$0xf]
        %v1406 = vunpack.c.l.bf16 %v1374
        %v1407 = vunpack.c.h.bf16 %v1374
        %v1408 = vunpack.c.l.bf16 %v1375
        %v1409 = vunpack.c.l.bf16 %v1376
        %v1410 = vunpack.c.h.bf16 %v1376
        %v1411 = vunpack.c.l.bf16 %v1377
        %v1412 = vunpack.c.l.bf16 %v1378
        %v1413 = vunpack.c.h.bf16 %v1378
        %v1414 = vunpack.c.l.bf16 %v1379
        %v1415 = vunpack.c.l.bf16 %v1380
        %v1416 = vunpack.c.h.bf16 %v1380
        %v1417 = vunpack.c.l.bf16 %v1381
        %v1418 = vunpack.c.l.bf16 %v1382
        %v1419 = vunpack.c.h.bf16 %v1382
        %v1420 = vunpack.c.l.bf16 %v1383
        %v1421 = vunpack.c.l.bf16 %v1384
        %v1422 = vunpack.c.h.bf16 %v1384
        %v1423 = vunpack.c.l.bf16 %v1385
        %v1424 = vunpack.c.l.bf16 %v1386
        %v1425 = vunpack.c.h.bf16 %v1386
        %v1426 = vunpack.c.l.bf16 %v1387
        %v1427 = vunpack.c.l.bf16 %v1388
        %v1428 = vunpack.c.h.bf16 %v1388
        %v1429 = vunpack.c.l.bf16 %v1389
        %v1430 = vunpack.c.l.bf16 %v1390
        %v1431 = vunpack.c.h.bf16 %v1390
        %v1432 = vunpack.c.l.bf16 %v1391
        %v1433 = vunpack.c.l.bf16 %v1392
        %v1434 = vunpack.c.h.bf16 %v1392
        %v1435 = vunpack.c.l.bf16 %v1393
        %v1436 = vunpack.c.l.bf16 %v1394
        %v1437 = vunpack.c.h.bf16 %v1394
        %v1438 = vunpack.c.l.bf16 %v1395
        %v1439 = vunpack.c.l.bf16 %v1396
        %v1440 = vunpack.c.h.bf16 %v1396
        %v1441 = vunpack.c.l.bf16 %v1397
        %v1442 = vunpack.c.l.bf16 %v1398
        %v1443 = vunpack.c.h.bf16 %v1398
        %v1444 = vunpack.c.l.bf16 %v1399
        %v1445 = vunpack.c.l.bf16 %v1400
        %v1446 = vunpack.c.h.bf16 %v1400
        %v1447 = vunpack.c.l.bf16 %v1401
        %v1448 = vunpack.c.l.bf16 %v1402
        %v1449 = vunpack.c.h.bf16 %v1402
        %v1450 = vunpack.c.l.bf16 %v1403
        %v1451 = vunpack.c.l.bf16 %v1404
        %v1452 = vunpack.c.h.bf16 %v1404
        %v1453 = vunpack.c.l.bf16 %v1405
        %v1454 = vld [vmem:[%s7] sm:$0x7]
        %v1456 = vlaneseq
        %v1457 = vshrl.u32 %v1456, 7
        %v1458 = vsub.s32 0, %v1457
        %v1459 = vrot.slane %v1454, %v1458
        %v1460 = vlaneseq
        %v1461 = vshrl.u32 %v1460, 7
        %v1462 = vsub.s32 1, %v1461
        %v1463 = vrot.slane %v1454, %v1462
        %v1464 = vlaneseq
        %v1465 = vshrl.u32 %v1464, 7
        %v1466 = vsub.s32 2, %v1465
        %v1467 = vrot.slane %v1454, %v1466
        %1471 = vmatprep.subr.mxu0 %v1452
        %1472 = vmatpush1.msra.mxu0 %v1451
        %1473 = vmatprep.subr.mxu0 %v1449
        %1474 = vmatpush1.msra.mxu0 %v1448
        %1475 = vmatprep.subr.mxu0 %v1446
        %1476 = vmatpush1.msra.mxu0 %v1445
        %1477 = vmatprep.subr.mxu0 %v1443
        %1478 = vmatpush1.msra.mxu0 %v1442
        %1479 = vmatprep.subr.mxu0 %v1440
        %1480 = vmatpush1.msra.mxu0 %v1439
        %1481 = vmatprep.subr.mxu0 %v1437
        %1482 = vmatpush1.msra.mxu0 %v1436
        %1483 = vmatprep.subr.mxu0 %v1434
        %1484 = vmatpush1.msra.mxu0 %v1433
        %1485 = vmatprep.subr.mxu0 %v1431
        %1486 = vmatpush1.msra.mxu0 %v1430
        %1487 = vmatprep.subr.mxu0 %v1428
        %1488 = vmatpush1.msra.mxu0 %v1427
        %1489 = vmatprep.subr.mxu0 %v1425
        %1490 = vmatpush1.msra.mxu0 %v1424
        %1491 = vmatprep.subr.mxu0 %v1422
        %1492 = vmatpush1.msra.mxu0 %v1421
        %1493 = vmatprep.subr.mxu0 %v1419
        %1494 = vmatpush1.msra.mxu0 %v1418
        %1495 = vmatprep.subr.mxu0 %v1416
        %1496 = vmatpush1.msra.mxu0 %v1415
        %1497 = vmatprep.subr.mxu0 %v1413
        %1498 = vmatpush1.msra.mxu0 %v1412
        %1499 = vmatprep.subr.mxu0 %v1410
        %1500 = vmatpush1.msra.mxu0 %v1409
        %1501 = vmatprep.subr.mxu0 %v1407
        %1502 = vmatpush1.msra.mxu0 %v1406
        %1503 = vmatprep.subr.mxu0 0.0
        %1504 = vmatpush2.msra.mxu0 0.0
        %1505 = vmatprep.subr.mxu0 0.0
        %1506 = vmatpush2.msra.mxu0 0.0
        %1507 = vmatprep.subr.mxu0 0.0
        %1508 = vmatpush2.msra.mxu0 0.0
        %1509 = vmatprep.subr.mxu0 0.0
        %1510 = vmatpush2.msra.mxu0 0.0
        %1511 = vmatprep.subr.mxu0 0.0
        %1512 = vmatpush2.msra.mxu0 0.0
        %1513 = vmatprep.subr.mxu0 0.0
        %1514 = vmatpush2.msra.mxu0 0.0
        %1515 = vmatprep.subr.mxu0 0.0
        %1516 = vmatpush2.msra.mxu0 0.0
        %1517 = vmatprep.subr.mxu0 0.0
        %1518 = vmatpush2.msra.mxu0 0.0
        %1519 = vmatprep.subr.mxu0 0.0
        %1520 = vmatpush2.msra.mxu0 0.0
        %1521 = vmatprep.subr.mxu0 0.0
        %1522 = vmatpush2.msra.mxu0 0.0
        %1523 = vmatprep.subr.mxu0 0.0
        %1524 = vmatpush2.msra.mxu0 0.0
        %1525 = vmatprep.subr.mxu0 0.0
        %1526 = vmatpush2.msra.mxu0 0.0
        %1527 = vmatprep.subr.mxu0 0.0
        %1528 = vmatpush2.msra.mxu0 0.0
        %1529 = vmatprep.subr.mxu0 0.0
        %1530 = vmatpush2.msra.mxu0 0.0
        %1531 = vmatprep.subr.mxu0 0.0
        %1532 = vmatpush2.msra.mxu0 0.0
        %1533 = vmatprep.subr.mxu0 0.0
        %1534 = vmatpush2.msra.mxu0 0.0
        %1535 = vmatprep.mubr.f32.mxu0 0.0
        %1536 = vmatmul.mubr.f32.gmra.mxu0 %v533
        %v1537 = vpop.f32.mrf.mxu0
        %v1538 = vadd.f32 %v1459, %v1537
        %v1539 = vpop.f32.mrf.mxu0
        %v1540 = vadd.f32 %v1463, %v1539
        %1541 = vmatprep.mubr.f32.mxu0 0.0
        %1542 = vmatmul.mubr.f32.gmra.mxu0 %v534
        %v1543 = vpop.f32.mrf.mxu0
        %v1544 = vadd.f32 %v1459, %v1543
        %v1545 = vpop.f32.mrf.mxu0
        %v1546 = vadd.f32 %v1463, %v1545
        %1547 = vmatprep.mubr.f32.mxu0 0.0
        %1548 = vmatmul.mubr.f32.gmra.mxu0 %v535
        %v1549 = vpop.f32.mrf.mxu0
        %v1550 = vadd.f32 %v1459, %v1549
        %v1551 = vpop.f32.mrf.mxu0
        %v1552 = vadd.f32 %v1463, %v1551
        %1553 = vmatprep.mubr.f32.mxu0 0.0
        %1554 = vmatmul.mubr.f32.gmra.mxu0 %v536
        %v1555 = vpop.f32.mrf.mxu0
        %v1556 = vadd.f32 %v1459, %v1555
        %v1557 = vpop.f32.mrf.mxu0
        %v1558 = vadd.f32 %v1463, %v1557
        %1559 = vmatprep.mubr.f32.mxu0 0.0
        %1560 = vmatmul.mubr.f32.gmra.mxu0 %v537
        %v1561 = vpop.f32.mrf.mxu0
        %v1562 = vadd.f32 %v1459, %v1561
        %v1563 = vpop.f32.mrf.mxu0
        %v1564 = vadd.f32 %v1463, %v1563
        %1565 = vmatprep.mubr.f32.mxu0 0.0
        %1566 = vmatmul.mubr.f32.gmra.mxu0 %v538
        %v1567 = vpop.f32.mrf.mxu0
        %v1568 = vadd.f32 %v1459, %v1567
        %v1569 = vpop.f32.mrf.mxu0
        %v1570 = vadd.f32 %v1463, %v1569
        %1571 = vmatprep.mubr.f32.mxu0 0.0
        %1572 = vmatmul.mubr.f32.gmra.mxu0 %v539
        %v1573 = vpop.f32.mrf.mxu0
        %v1574 = vadd.f32 %v1459, %v1573
        %v1575 = vpop.f32.mrf.mxu0
        %v1576 = vadd.f32 %v1463, %v1575
        %1577 = vmatprep.mubr.f32.mxu0 0.0
        %1578 = vmatmul.mubr.f32.gmra.mxu0 %v540
        %v1579 = vpop.f32.mrf.mxu0
        %v1580 = vadd.f32 %v1459, %v1579
        %v1581 = vpop.f32.mrf.mxu0
        %v1582 = vadd.f32 %v1463, %v1581
        %1583 = vmatprep.mubr.f32.mxu0 0.0
        %1584 = vmatmul.mubr.f32.gmra.mxu0 %v541
        %v1585 = vpop.f32.mrf.mxu0
        %v1586 = vadd.f32 %v1459, %v1585
        %v1587 = vpop.f32.mrf.mxu0
        %v1588 = vadd.f32 %v1463, %v1587
        %1589 = vmatprep.mubr.f32.mxu0 0.0
        %1590 = vmatmul.mubr.f32.gmra.mxu0 %v542
        %v1591 = vpop.f32.mrf.mxu0
        %v1592 = vadd.f32 %v1459, %v1591
        %v1593 = vpop.f32.mrf.mxu0
        %v1594 = vadd.f32 %v1463, %v1593
        %1595 = vmatprep.mubr.f32.mxu0 0.0
        %1596 = vmatmul.mubr.f32.gmra.mxu0 %v543
        %v1597 = vpop.f32.mrf.mxu0
        %v1598 = vadd.f32 %v1459, %v1597
        %v1599 = vpop.f32.mrf.mxu0
        %v1600 = vadd.f32 %v1463, %v1599
        %1601 = vmatprep.mubr.f32.mxu0 0.0
        %1602 = vmatmul.mubr.f32.gmra.mxu0 %v544
        %v1603 = vpop.f32.mrf.mxu0
        %v1604 = vadd.f32 %v1459, %v1603
        %v1605 = vpop.f32.mrf.mxu0
        %v1606 = vadd.f32 %v1463, %v1605
        %1607 = vmatprep.mubr.f32.mxu0 0.0
        %1608 = vmatmul.mubr.f32.gmra.mxu0 %v545
        %v1609 = vpop.f32.mrf.mxu0
        %v1610 = vadd.f32 %v1459, %v1609
        %v1611 = vpop.f32.mrf.mxu0
        %v1612 = vadd.f32 %v1463, %v1611
        %1613 = vmatprep.mubr.f32.mxu0 0.0
        %1614 = vmatmul.mubr.f32.gmra.mxu0 %v546
        %v1615 = vpop.f32.mrf.mxu0
        %v1616 = vadd.f32 %v1459, %v1615
        %v1617 = vpop.f32.mrf.mxu0
        %v1618 = vadd.f32 %v1463, %v1617
        %1619 = vmatprep.mubr.f32.mxu0 0.0
        %1620 = vmatmul.mubr.f32.gmra.mxu0 %v547
        %v1621 = vpop.f32.mrf.mxu0
        %v1622 = vadd.f32 %v1459, %v1621
        %v1623 = vpop.f32.mrf.mxu0
        %v1624 = vadd.f32 %v1463, %v1623
        %1625 = vmatprep.mubr.f32.mxu0 0.0
        %1626 = vmatmul.mubr.f32.gmra.mxu0 %v548
        %v1627 = vpop.f32.mrf.mxu0
        %v1628 = vadd.f32 %v1459, %v1627
        %v1629 = vpop.f32.mrf.mxu0
        %v1630 = vadd.f32 %v1463, %v1629
        %1631 = vmatprep.mubr.f32.mxu0 0.0
        %1632 = vmatmul.mubr.f32.gmra.mxu0 %v549
        %v1633 = vpop.f32.mrf.mxu0
        %v1634 = vadd.f32 %v1459, %v1633
        %v1635 = vpop.f32.mrf.mxu0
        %v1636 = vadd.f32 %v1463, %v1635
        %1637 = vdwg.mxu0
        %1638 = vmatprep.subr.mxu0 0.0
        %1639 = vmatpush1.msra.mxu0 %v1453
        %1640 = vmatprep.subr.mxu0 0.0
        %1641 = vmatpush1.msra.mxu0 %v1450
        %1642 = vmatprep.subr.mxu0 0.0
        %1643 = vmatpush1.msra.mxu0 %v1447
        %1644 = vmatprep.subr.mxu0 0.0
        %1645 = vmatpush1.msra.mxu0 %v1444
        %1646 = vmatprep.subr.mxu0 0.0
        %1647 = vmatpush1.msra.mxu0 %v1441
        %1648 = vmatprep.subr.mxu0 0.0
        %1649 = vmatpush1.msra.mxu0 %v1438
        %1650 = vmatprep.subr.mxu0 0.0
        %1651 = vmatpush1.msra.mxu0 %v1435
        %1652 = vmatprep.subr.mxu0 0.0
        %1653 = vmatpush1.msra.mxu0 %v1432
        %1654 = vmatprep.subr.mxu0 0.0
        %1655 = vmatpush1.msra.mxu0 %v1429
        %1656 = vmatprep.subr.mxu0 0.0
        %1657 = vmatpush1.msra.mxu0 %v1426
        %1658 = vmatprep.subr.mxu0 0.0
        %1659 = vmatpush1.msra.mxu0 %v1423
        %1660 = vmatprep.subr.mxu0 0.0
        %1661 = vmatpush1.msra.mxu0 %v1420
        %1662 = vmatprep.subr.mxu0 0.0
        %1663 = vmatpush1.msra.mxu0 %v1417
        %1664 = vmatprep.subr.mxu0 0.0
        %1665 = vmatpush1.msra.mxu0 %v1414
        %1666 = vmatprep.subr.mxu0 0.0
        %1667 = vmatpush1.msra.mxu0 %v1411
        %1668 = vmatprep.subr.mxu0 0.0
        %1669 = vmatpush1.msra.mxu0 %v1408
        %1670 = vmatprep.subr.mxu0 0.0
        %1671 = vmatpush2.msra.mxu0 0.0
        %1672 = vmatprep.subr.mxu0 0.0
        %1673 = vmatpush2.msra.mxu0 0.0
        %1674 = vmatprep.subr.mxu0 0.0
        %1675 = vmatpush2.msra.mxu0 0.0
        %1676 = vmatprep.subr.mxu0 0.0
        %1677 = vmatpush2.msra.mxu0 0.0
        %1678 = vmatprep.subr.mxu0 0.0
        %1679 = vmatpush2.msra.mxu0 0.0
        %1680 = vmatprep.subr.mxu0 0.0
        %1681 = vmatpush2.msra.mxu0 0.0
        %1682 = vmatprep.subr.mxu0 0.0
        %1683 = vmatpush2.msra.mxu0 0.0
        %1684 = vmatprep.subr.mxu0 0.0
        %1685 = vmatpush2.msra.mxu0 0.0
        %1686 = vmatprep.subr.mxu0 0.0
        %1687 = vmatpush2.msra.mxu0 0.0
        %1688 = vmatprep.subr.mxu0 0.0
        %1689 = vmatpush2.msra.mxu0 0.0
        %1690 = vmatprep.subr.mxu0 0.0
        %1691 = vmatpush2.msra.mxu0 0.0
        %1692 = vmatprep.subr.mxu0 0.0
        %1693 = vmatpush2.msra.mxu0 0.0
        %1694 = vmatprep.subr.mxu0 0.0
        %1695 = vmatpush2.msra.mxu0 0.0
        %1696 = vmatprep.subr.mxu0 0.0
        %1697 = vmatpush2.msra.mxu0 0.0
        %1698 = vmatprep.subr.mxu0 0.0
        %1699 = vmatpush2.msra.mxu0 0.0
        %1700 = vmatprep.subr.mxu0 0.0
        %1701 = vmatpush2.msra.mxu0 0.0
        %1702 = vmatprep.mubr.f32.mxu0 0.0
        %1703 = vmatmul.mubr.f32.gmra.mxu0 %v533
        %v1704 = vpop.f32.mrf.mxu0
        %v1705 = vadd.f32 %v1467, %v1704
        %v1706 = vpop.f32.mrf.mxu0
        %1707 = vmatprep.mubr.f32.mxu0 0.0
        %1708 = vmatmul.mubr.f32.gmra.mxu0 %v534
        %v1709 = vpop.f32.mrf.mxu0
        %v1710 = vadd.f32 %v1467, %v1709
        %v1711 = vpop.f32.mrf.mxu0
        %1712 = vmatprep.mubr.f32.mxu0 0.0
        %1713 = vmatmul.mubr.f32.gmra.mxu0 %v535
        %v1714 = vpop.f32.mrf.mxu0
        %v1715 = vadd.f32 %v1467, %v1714
        %v1716 = vpop.f32.mrf.mxu0
        %1717 = vmatprep.mubr.f32.mxu0 0.0
        %1718 = vmatmul.mubr.f32.gmra.mxu0 %v536
        %v1719 = vpop.f32.mrf.mxu0
        %v1720 = vadd.f32 %v1467, %v1719
        %v1721 = vpop.f32.mrf.mxu0
        %1722 = vmatprep.mubr.f32.mxu0 0.0
        %1723 = vmatmul.mubr.f32.gmra.mxu0 %v537
        %v1724 = vpop.f32.mrf.mxu0
        %v1725 = vadd.f32 %v1467, %v1724
        %v1726 = vpop.f32.mrf.mxu0
        %1727 = vmatprep.mubr.f32.mxu0 0.0
        %1728 = vmatmul.mubr.f32.gmra.mxu0 %v538
        %v1729 = vpop.f32.mrf.mxu0
        %v1730 = vadd.f32 %v1467, %v1729
        %v1731 = vpop.f32.mrf.mxu0
        %1732 = vmatprep.mubr.f32.mxu0 0.0
        %1733 = vmatmul.mubr.f32.gmra.mxu0 %v539
        %v1734 = vpop.f32.mrf.mxu0
        %v1735 = vadd.f32 %v1467, %v1734
        %v1736 = vpop.f32.mrf.mxu0
        %1737 = vmatprep.mubr.f32.mxu0 0.0
        %1738 = vmatmul.mubr.f32.gmra.mxu0 %v540
        %v1739 = vpop.f32.mrf.mxu0
        %v1740 = vadd.f32 %v1467, %v1739
        %v1741 = vpop.f32.mrf.mxu0
        %1742 = vmatprep.mubr.f32.mxu0 0.0
        %1743 = vmatmul.mubr.f32.gmra.mxu0 %v541
        %v1744 = vpop.f32.mrf.mxu0
        %v1745 = vadd.f32 %v1467, %v1744
        %v1746 = vpop.f32.mrf.mxu0
        %1747 = vmatprep.mubr.f32.mxu0 0.0
        %1748 = vmatmul.mubr.f32.gmra.mxu0 %v542
        %v1749 = vpop.f32.mrf.mxu0
        %v1750 = vadd.f32 %v1467, %v1749
        %v1751 = vpop.f32.mrf.mxu0
        %1752 = vmatprep.mubr.f32.mxu0 0.0
        %1753 = vmatmul.mubr.f32.gmra.mxu0 %v543
        %v1754 = vpop.f32.mrf.mxu0
        %v1755 = vadd.f32 %v1467, %v1754
        %v1756 = vpop.f32.mrf.mxu0
        %1757 = vmatprep.mubr.f32.mxu0 0.0
        %1758 = vmatmul.mubr.f32.gmra.mxu0 %v544
        %v1759 = vpop.f32.mrf.mxu0
        %v1760 = vadd.f32 %v1467, %v1759
        %v1761 = vpop.f32.mrf.mxu0
        %1762 = vmatprep.mubr.f32.mxu0 0.0
        %1763 = vmatmul.mubr.f32.gmra.mxu0 %v545
        %v1764 = vpop.f32.mrf.mxu0
        %v1765 = vadd.f32 %v1467, %v1764
        %v1766 = vpop.f32.mrf.mxu0
        %1767 = vmatprep.mubr.f32.mxu0 0.0
        %1768 = vmatmul.mubr.f32.gmra.mxu0 %v546
        %v1769 = vpop.f32.mrf.mxu0
        %v1770 = vadd.f32 %v1467, %v1769
        %v1771 = vpop.f32.mrf.mxu0
        %1772 = vmatprep.mubr.f32.mxu0 0.0
        %1773 = vmatmul.mubr.f32.gmra.mxu0 %v547
        %v1774 = vpop.f32.mrf.mxu0
        %v1775 = vadd.f32 %v1467, %v1774
        %v1776 = vpop.f32.mrf.mxu0
        %1777 = vmatprep.mubr.f32.mxu0 0.0
        %1778 = vmatmul.mubr.f32.gmra.mxu0 %v548
        %v1779 = vpop.f32.mrf.mxu0
        %v1780 = vadd.f32 %v1467, %v1779
        %v1781 = vpop.f32.mrf.mxu0
        %1782 = vmatprep.mubr.f32.mxu0 0.0
        %1783 = vmatmul.mubr.f32.gmra.mxu0 %v549
        %v1784 = vpop.f32.mrf.mxu0
        %v1785 = vadd.f32 %v1467, %v1784
        %v1786 = vpop.f32.mrf.mxu0
        %1787 = vdwg.mxu0
        %v1788 = vadd.f32 %v1124, %v1538
        %v1789 = vadd.f32 %v1126, %v1540
        %v1790 = vadd.f32 %v1130, %v1544
        %v1791 = vadd.f32 %v1132, %v1546
        %v1792 = vadd.f32 %v1136, %v1550
        %v1793 = vadd.f32 %v1138, %v1552
        %v1794 = vadd.f32 %v1142, %v1556
        %v1795 = vadd.f32 %v1144, %v1558
        %v1796 = vadd.f32 %v1148, %v1562
        %v1797 = vadd.f32 %v1150, %v1564
        %v1798 = vadd.f32 %v1154, %v1568
        %v1799 = vadd.f32 %v1156, %v1570
        %v1800 = vadd.f32 %v1160, %v1574
        %v1801 = vadd.f32 %v1162, %v1576
        %v1802 = vadd.f32 %v1166, %v1580
        %v1803 = vadd.f32 %v1168, %v1582
        %v1804 = vadd.f32 %v1172, %v1586
        %v1805 = vadd.f32 %v1174, %v1588
        %v1806 = vadd.f32 %v1178, %v1592
        %v1807 = vadd.f32 %v1180, %v1594
        %v1808 = vadd.f32 %v1184, %v1598
        %v1809 = vadd.f32 %v1186, %v1600
        %v1810 = vadd.f32 %v1190, %v1604
        %v1811 = vadd.f32 %v1192, %v1606
        %v1812 = vadd.f32 %v1196, %v1610
        %v1813 = vadd.f32 %v1198, %v1612
        %v1814 = vadd.f32 %v1202, %v1616
        %v1815 = vadd.f32 %v1204, %v1618
        %v1816 = vadd.f32 %v1208, %v1622
        %v1817 = vadd.f32 %v1210, %v1624
        %v1818 = vadd.f32 %v1214, %v1628
        %v1819 = vadd.f32 %v1216, %v1630
        %v1820 = vadd.f32 %v1220, %v1634
        %v1821 = vadd.f32 %v1222, %v1636
        %v1822 = vxor.u32 %v1788, 2147483648
        %v1823 = vxor.u32 %v1789, 2147483648
        %v1824 = vxor.u32 %v1790, 2147483648
        %v1825 = vxor.u32 %v1791, 2147483648
        %v1826 = vxor.u32 %v1792, 2147483648
        %v1827 = vxor.u32 %v1793, 2147483648
        %v1828 = vxor.u32 %v1794, 2147483648
        %v1829 = vxor.u32 %v1795, 2147483648
        %v1830 = vxor.u32 %v1796, 2147483648
        %v1831 = vxor.u32 %v1797, 2147483648
        %v1832 = vxor.u32 %v1798, 2147483648
        %v1833 = vxor.u32 %v1799, 2147483648
        %v1834 = vxor.u32 %v1800, 2147483648
        %v1835 = vxor.u32 %v1801, 2147483648
        %v1836 = vxor.u32 %v1802, 2147483648
        %v1837 = vxor.u32 %v1803, 2147483648
        %v1838 = vxor.u32 %v1804, 2147483648
        %v1839 = vxor.u32 %v1805, 2147483648
        %v1840 = vxor.u32 %v1806, 2147483648
        %v1841 = vxor.u32 %v1807, 2147483648
        %v1842 = vxor.u32 %v1808, 2147483648
        %v1843 = vxor.u32 %v1809, 2147483648
        %v1844 = vxor.u32 %v1810, 2147483648
        %v1845 = vxor.u32 %v1811, 2147483648
        %v1846 = vxor.u32 %v1812, 2147483648
        %v1847 = vxor.u32 %v1813, 2147483648
        %v1848 = vxor.u32 %v1814, 2147483648
        %v1849 = vxor.u32 %v1815, 2147483648
        %v1850 = vxor.u32 %v1816, 2147483648
        %v1851 = vxor.u32 %v1817, 2147483648
        %v1852 = vxor.u32 %v1818, 2147483648
        %v1853 = vxor.u32 %v1819, 2147483648
        %v1854 = vxor.u32 %v1820, 2147483648
        %v1855 = vxor.u32 %v1821, 2147483648
        %v1856 = vmul.f32 %v1822, 1.442695
        %v1857 = vpow.pop %v1856
        %v1858 = vmul.f32 %v1823, 1.442695
        %v1859 = vpow.pop %v1858
        %v1860 = vmul.f32 %v1824, 1.442695
        %v1861 = vpow.pop %v1860
        %v1862 = vmul.f32 %v1825, 1.442695
        %v1863 = vpow.pop %v1862
        %v1864 = vmul.f32 %v1826, 1.442695
        %v1865 = vpow.pop %v1864
        %v1866 = vmul.f32 %v1827, 1.442695
        %v1867 = vpow.pop %v1866
        %v1868 = vmul.f32 %v1828, 1.442695
        %v1869 = vpow.pop %v1868
        %v1870 = vmul.f32 %v1829, 1.442695
        %v1871 = vpow.pop %v1870
        %v1872 = vmul.f32 %v1830, 1.442695
        %v1873 = vpow.pop %v1872
        %v1874 = vmul.f32 %v1831, 1.442695
        %v1875 = vpow.pop %v1874
        %v1876 = vmul.f32 %v1832, 1.442695
        %v1877 = vpow.pop %v1876
        %v1878 = vmul.f32 %v1833, 1.442695
        %v1879 = vpow.pop %v1878
        %v1880 = vmul.f32 %v1834, 1.442695
        %v1881 = vpow.pop %v1880
        %v1882 = vmul.f32 %v1835, 1.442695
        %v1883 = vpow.pop %v1882
        %v1884 = vmul.f32 %v1836, 1.442695
        %v1885 = vpow.pop %v1884
        %v1886 = vmul.f32 %v1837, 1.442695
        %v1887 = vpow.pop %v1886
        %v1888 = vmul.f32 %v1838, 1.442695
        %v1889 = vpow.pop %v1888
        %v1890 = vmul.f32 %v1839, 1.442695
        %v1891 = vpow.pop %v1890
        %v1892 = vmul.f32 %v1840, 1.442695
        %v1893 = vpow.pop %v1892
        %v1894 = vmul.f32 %v1841, 1.442695
        %v1895 = vpow.pop %v1894
        %v1896 = vmul.f32 %v1842, 1.442695
        %v1897 = vpow.pop %v1896
        %v1898 = vmul.f32 %v1843, 1.442695
        %v1899 = vpow.pop %v1898
        %v1900 = vmul.f32 %v1844, 1.442695
        %v1901 = vpow.pop %v1900
        %v1902 = vmul.f32 %v1845, 1.442695
        %v1903 = vpow.pop %v1902
        %v1904 = vmul.f32 %v1846, 1.442695
        %v1905 = vpow.pop %v1904
        %v1906 = vmul.f32 %v1847, 1.442695
        %v1907 = vpow.pop %v1906
        %v1908 = vmul.f32 %v1848, 1.442695
        %v1909 = vpow.pop %v1908
        %v1910 = vmul.f32 %v1849, 1.442695
        %v1911 = vpow.pop %v1910
        %v1912 = vmul.f32 %v1850, 1.442695
        %v1913 = vpow.pop %v1912
        %v1914 = vmul.f32 %v1851, 1.442695
        %v1915 = vpow.pop %v1914
        %v1916 = vmul.f32 %v1852, 1.442695
        %v1917 = vpow.pop %v1916
        %v1918 = vmul.f32 %v1853, 1.442695
        %v1919 = vpow.pop %v1918
        %v1920 = vmul.f32 %v1854, 1.442695
        %v1921 = vpow.pop %v1920
        %v1922 = vmul.f32 %v1855, 1.442695
        %v1923 = vpow.pop %v1922
        %v1924 = vadd.f32 %v1857, 1.0
        %v1925 = vadd.f32 %v1859, 1.0
        %v1926 = vadd.f32 %v1861, 1.0
        %v1927 = vadd.f32 %v1863, 1.0
        %v1928 = vadd.f32 %v1865, 1.0
        %v1929 = vadd.f32 %v1867, 1.0
        %v1930 = vadd.f32 %v1869, 1.0
        %v1931 = vadd.f32 %v1871, 1.0
        %v1932 = vadd.f32 %v1873, 1.0
        %v1933 = vadd.f32 %v1875, 1.0
        %v1934 = vadd.f32 %v1877, 1.0
        %v1935 = vadd.f32 %v1879, 1.0
        %v1936 = vadd.f32 %v1881, 1.0
        %v1937 = vadd.f32 %v1883, 1.0
        %v1938 = vadd.f32 %v1885, 1.0
        %v1939 = vadd.f32 %v1887, 1.0
        %v1940 = vadd.f32 %v1889, 1.0
        %v1941 = vadd.f32 %v1891, 1.0
        %v1942 = vadd.f32 %v1893, 1.0
        %v1943 = vadd.f32 %v1895, 1.0
        %v1944 = vadd.f32 %v1897, 1.0
        %v1945 = vadd.f32 %v1899, 1.0
        %v1946 = vadd.f32 %v1901, 1.0
        %v1947 = vadd.f32 %v1903, 1.0
        %v1948 = vadd.f32 %v1905, 1.0
        %v1949 = vadd.f32 %v1907, 1.0
        %v1950 = vadd.f32 %v1909, 1.0
        %v1951 = vadd.f32 %v1911, 1.0
        %v1952 = vadd.f32 %v1913, 1.0
        %v1953 = vadd.f32 %v1915, 1.0
        %v1954 = vadd.f32 %v1917, 1.0
        %v1955 = vadd.f32 %v1919, 1.0
        %v1956 = vadd.f32 %v1921, 1.0
        %v1957 = vadd.f32 %v1923, 1.0
        %v1958 = vrcp.pop %v1924
        %v1959 = vmul.f32 1.0, %v1958
        %v1960 = vrcp.pop %v1925
        %v1961 = vmul.f32 1.0, %v1960
        %v1962 = vrcp.pop %v1926
        %v1963 = vmul.f32 1.0, %v1962
        %v1964 = vrcp.pop %v1927
        %v1965 = vmul.f32 1.0, %v1964
        %v1966 = vrcp.pop %v1928
        %v1967 = vmul.f32 1.0, %v1966
        %v1968 = vrcp.pop %v1929
        %v1969 = vmul.f32 1.0, %v1968
        %v1970 = vrcp.pop %v1930
        %v1971 = vmul.f32 1.0, %v1970
        %v1972 = vrcp.pop %v1931
        %v1973 = vmul.f32 1.0, %v1972
        %v1974 = vrcp.pop %v1932
        %v1975 = vmul.f32 1.0, %v1974
        %v1976 = vrcp.pop %v1933
        %v1977 = vmul.f32 1.0, %v1976
        %v1978 = vrcp.pop %v1934
        %v1979 = vmul.f32 1.0, %v1978
        %v1980 = vrcp.pop %v1935
        %v1981 = vmul.f32 1.0, %v1980
        %v1982 = vrcp.pop %v1936
        %v1983 = vmul.f32 1.0, %v1982
        %v1984 = vrcp.pop %v1937
        %v1985 = vmul.f32 1.0, %v1984
        %v1986 = vrcp.pop %v1938
        %v1987 = vmul.f32 1.0, %v1986
        %v1988 = vrcp.pop %v1939
        %v1989 = vmul.f32 1.0, %v1988
        %v1990 = vrcp.pop %v1940
        %v1991 = vmul.f32 1.0, %v1990
        %v1992 = vrcp.pop %v1941
        %v1993 = vmul.f32 1.0, %v1992
        %v1994 = vrcp.pop %v1942
        %v1995 = vmul.f32 1.0, %v1994
        %v1996 = vrcp.pop %v1943
        %v1997 = vmul.f32 1.0, %v1996
        %v1998 = vrcp.pop %v1944
        %v1999 = vmul.f32 1.0, %v1998
        %v2000 = vrcp.pop %v1945
        %v2001 = vmul.f32 1.0, %v2000
        %v2002 = vrcp.pop %v1946
        %v2003 = vmul.f32 1.0, %v2002
        %v2004 = vrcp.pop %v1947
        %v2005 = vmul.f32 1.0, %v2004
        %v2006 = vrcp.pop %v1948
        %v2007 = vmul.f32 1.0, %v2006
        %v2008 = vrcp.pop %v1949
        %v2009 = vmul.f32 1.0, %v2008
        %v2010 = vrcp.pop %v1950
        %v2011 = vmul.f32 1.0, %v2010
        %v2012 = vrcp.pop %v1951
        %v2013 = vmul.f32 1.0, %v2012
        %v2014 = vrcp.pop %v1952
        %v2015 = vmul.f32 1.0, %v2014
        %v2016 = vrcp.pop %v1953
        %v2017 = vmul.f32 1.0, %v2016
        %v2018 = vrcp.pop %v1954
        %v2019 = vmul.f32 1.0, %v2018
        %v2020 = vrcp.pop %v1955
        %v2021 = vmul.f32 1.0, %v2020
        %v2022 = vrcp.pop %v1956
        %v2023 = vmul.f32 1.0, %v2022
        %v2024 = vrcp.pop %v1957
        %v2025 = vmul.f32 1.0, %v2024
        %v2026 = vmul.f32 %v1959, %v1705
        %v2027 = vmul.f32 %v1963, %v1710
        %v2028 = vmul.f32 %v1967, %v1715
        %v2029 = vmul.f32 %v1971, %v1720
        %v2030 = vmul.f32 %v1975, %v1725
        %v2031 = vmul.f32 %v1979, %v1730
        %v2032 = vmul.f32 %v1983, %v1735
        %v2033 = vmul.f32 %v1987, %v1740
        %v2034 = vmul.f32 %v1991, %v1745
        %v2035 = vmul.f32 %v1995, %v1750
        %v2036 = vmul.f32 %v1999, %v1755
        %v2037 = vmul.f32 %v2003, %v1760
        %v2038 = vmul.f32 %v2007, %v1765
        %v2039 = vmul.f32 %v2011, %v1770
        %v2040 = vmul.f32 %v2015, %v1775
        %v2041 = vmul.f32 %v2019, %v1780
        %v2042 = vmul.f32 %v2023, %v1785
        %v2043 = vadd.f32 %v1291, %v2026
        %v2044 = vadd.f32 %v1296, %v2027
        %v2045 = vadd.f32 %v1301, %v2028
        %v2046 = vadd.f32 %v1306, %v2029
        %v2047 = vadd.f32 %v1311, %v2030
        %v2048 = vadd.f32 %v1316, %v2031
        %v2049 = vadd.f32 %v1321, %v2032
        %v2050 = vadd.f32 %v1326, %v2033
        %v2051 = vadd.f32 %v1331, %v2034
        %v2052 = vadd.f32 %v1336, %v2035
        %v2053 = vadd.f32 %v1341, %v2036
        %v2054 = vadd.f32 %v1346, %v2037
        %v2055 = vadd.f32 %v1351, %v2038
        %v2056 = vadd.f32 %v1356, %v2039
        %v2057 = vadd.f32 %v1361, %v2040
        %v2058 = vadd.f32 %v1366, %v2041
        %v2059 = vadd.f32 %v1371, %v2042
        %v2060 = vtanh.pop %v2043
        %v2061 = vtanh.pop %v2044
        %v2062 = vtanh.pop %v2045
        %v2063 = vtanh.pop %v2046
        %v2064 = vtanh.pop %v2047
        %v2065 = vtanh.pop %v2048
        %v2066 = vtanh.pop %v2049
        %v2067 = vtanh.pop %v2050
        %v2068 = vtanh.pop %v2051
        %v2069 = vtanh.pop %v2052
        %v2070 = vtanh.pop %v2053
        %v2071 = vtanh.pop %v2054
        %v2072 = vtanh.pop %v2055
        %v2073 = vtanh.pop %v2056
        %v2074 = vtanh.pop %v2057
        %v2075 = vtanh.pop %v2058
        %v2076 = vtanh.pop %v2059
        %v2077 = vsub.f32 1.0, %v1961
        %v2078 = vsub.f32 1.0, %v1965
        %v2079 = vsub.f32 1.0, %v1969
        %v2080 = vsub.f32 1.0, %v1973
        %v2081 = vsub.f32 1.0, %v1977
        %v2082 = vsub.f32 1.0, %v1981
        %v2083 = vsub.f32 1.0, %v1985
        %v2084 = vsub.f32 1.0, %v1989
        %v2085 = vsub.f32 1.0, %v1993
        %v2086 = vsub.f32 1.0, %v1997
        %v2087 = vsub.f32 1.0, %v2001
        %v2088 = vsub.f32 1.0, %v2005
        %v2089 = vsub.f32 1.0, %v2009
        %v2090 = vsub.f32 1.0, %v2013
        %v2091 = vsub.f32 1.0, %v2017
        %v2092 = vsub.f32 1.0, %v2021
        %v2093 = vsub.f32 1.0, %v2025
        %v2094 = vmul.f32 %v2077, %v2060
        %v2095 = vmul.f32 %v2078, %v2061
        %v2096 = vmul.f32 %v2079, %v2062
        %v2097 = vmul.f32 %v2080, %v2063
        %v2098 = vmul.f32 %v2081, %v2064
        %v2099 = vmul.f32 %v2082, %v2065
        %v2100 = vmul.f32 %v2083, %v2066
        %v2101 = vmul.f32 %v2084, %v2067
        %v2102 = vmul.f32 %v2085, %v2068
        %v2103 = vmul.f32 %v2086, %v2069
        %v2104 = vmul.f32 %v2087, %v2070
        %v2105 = vmul.f32 %v2088, %v2071
        %v2106 = vmul.f32 %v2089, %v2072
        %v2107 = vmul.f32 %v2090, %v2073
        %v2108 = vmul.f32 %v2091, %v2074
        %v2109 = vmul.f32 %v2092, %v2075
        %v2110 = vmul.f32 %v2093, %v2076
        %v2111 = vmul.f32 %v1961, %v533
        %v2112 = vmul.f32 %v1965, %v534
        %v2113 = vmul.f32 %v1969, %v535
        %v2114 = vmul.f32 %v1973, %v536
        %v2115 = vmul.f32 %v1977, %v537
        %v2116 = vmul.f32 %v1981, %v538
        %v2117 = vmul.f32 %v1985, %v539
        %v2118 = vmul.f32 %v1989, %v540
        %v2119 = vmul.f32 %v1993, %v541
        %v2120 = vmul.f32 %v1997, %v542
        %v2121 = vmul.f32 %v2001, %v543
        %v2122 = vmul.f32 %v2005, %v544
        %v2123 = vmul.f32 %v2009, %v545
        %v2124 = vmul.f32 %v2013, %v546
        %v2125 = vmul.f32 %v2017, %v547
        %v2126 = vmul.f32 %v2021, %v548
        %v2127 = vmul.f32 %v2025, %v549
        %v2128 = vadd.f32 %v2094, %v2111
        %v2129 = vadd.f32 %v2095, %v2112
        %v2130 = vadd.f32 %v2096, %v2113
        %v2131 = vadd.f32 %v2097, %v2114
        %v2132 = vadd.f32 %v2098, %v2115
        %v2133 = vadd.f32 %v2099, %v2116
        %v2134 = vadd.f32 %v2100, %v2117
        %v2135 = vadd.f32 %v2101, %v2118
        %v2136 = vadd.f32 %v2102, %v2119
        %v2137 = vadd.f32 %v2103, %v2120
        %v2138 = vadd.f32 %v2104, %v2121
        %v2139 = vadd.f32 %v2105, %v2122
        %v2140 = vadd.f32 %v2106, %v2123
        %v2141 = vadd.f32 %v2107, %v2124
        %v2142 = vadd.f32 %v2108, %v2125
        %v2143 = vadd.f32 %v2109, %v2126
        %v2144 = vadd.f32 %v2110, %v2127
        %v2145 = vld [vmem:[#allocation13] sm:$0xff]
        %v2146 = vld [vmem:[#allocation13 + $0x8] sm:$0xff]
        %v2147 = vld [vmem:[#allocation13 + $0x10] sm:$0xff]
        %v2148 = vld [vmem:[#allocation13 + $0x18] sm:$0xff]
        %v2149 = vld [vmem:[#allocation13 + $0x20] sm:$0xff]
        %v2150 = vld [vmem:[#allocation13 + $0x28] sm:$0xff]
        %v2151 = vld [vmem:[#allocation13 + $0x30] sm:$0xff]
        %v2152 = vld [vmem:[#allocation13 + $0x38] sm:$0xff]
        %v2153 = vld [vmem:[#allocation13 + $0x40] sm:$0xff]
        %v2154 = vld [vmem:[#allocation13 + $0x48] sm:$0xff]
        %v2155 = vld [vmem:[#allocation13 + $0x50] sm:$0xff]
        %v2156 = vld [vmem:[#allocation13 + $0x58] sm:$0xff]
        %v2157 = vld [vmem:[#allocation13 + $0x60] sm:$0xff]
        %v2158 = vld [vmem:[#allocation13 + $0x68] sm:$0xff]
        %v2159 = vld [vmem:[#allocation13 + $0x70] sm:$0xff]
        %v2160 = vld [vmem:[#allocation13 + $0x78] sm:$0xff]
        %v2161 = vunpack.c.l.bf16 %v2145
        %v2162 = vunpack.c.h.bf16 %v2145
        %v2163 = vunpack.c.l.bf16 %v2146
        %v2164 = vunpack.c.h.bf16 %v2146
        %v2165 = vunpack.c.l.bf16 %v2147
        %v2166 = vunpack.c.h.bf16 %v2147
        %v2167 = vunpack.c.l.bf16 %v2148
        %v2168 = vunpack.c.h.bf16 %v2148
        %v2169 = vunpack.c.l.bf16 %v2149
        %v2170 = vunpack.c.h.bf16 %v2149
        %v2171 = vunpack.c.l.bf16 %v2150
        %v2172 = vunpack.c.h.bf16 %v2150
        %v2173 = vunpack.c.l.bf16 %v2151
        %v2174 = vunpack.c.h.bf16 %v2151
        %v2175 = vunpack.c.l.bf16 %v2152
        %v2176 = vunpack.c.h.bf16 %v2152
        %v2177 = vunpack.c.l.bf16 %v2153
        %v2178 = vunpack.c.h.bf16 %v2153
        %v2179 = vunpack.c.l.bf16 %v2154
        %v2180 = vunpack.c.h.bf16 %v2154
        %v2181 = vunpack.c.l.bf16 %v2155
        %v2182 = vunpack.c.h.bf16 %v2155
        %v2183 = vunpack.c.l.bf16 %v2156
        %v2184 = vunpack.c.h.bf16 %v2156
        %v2185 = vunpack.c.l.bf16 %v2157
        %v2186 = vunpack.c.h.bf16 %v2157
        %v2187 = vunpack.c.l.bf16 %v2158
        %v2188 = vunpack.c.h.bf16 %v2158
        %v2189 = vunpack.c.l.bf16 %v2159
        %v2190 = vunpack.c.h.bf16 %v2159
        %v2191 = vunpack.c.l.bf16 %v2160
        %v2192 = vunpack.c.h.bf16 %v2160
        %v2193 = vld [vmem:[%s9] sm:$0x3]
        %v2195 = vlaneseq
        %v2196 = vshrl.u32 %v2195, 7
        %v2197 = vsub.s32 0, %v2196
        %v2198 = vrot.slane %v2193, %v2197
        %v2199 = vlaneseq
        %v2200 = vshrl.u32 %v2199, 7
        %v2201 = vsub.s32 1, %v2200
        %v2202 = vrot.slane %v2193, %v2201
        %2205 = vmatprep.subr.mxu0 %v2192
        %2206 = vmatpush1.msra.mxu0 %v2191
        %2207 = vmatprep.subr.mxu0 %v2190
        %2208 = vmatpush1.msra.mxu0 %v2189
        %2209 = vmatprep.subr.mxu0 %v2188
        %2210 = vmatpush1.msra.mxu0 %v2187
        %2211 = vmatprep.subr.mxu0 %v2186
        %2212 = vmatpush1.msra.mxu0 %v2185
        %2213 = vmatprep.subr.mxu0 %v2184
        %2214 = vmatpush1.msra.mxu0 %v2183
        %2215 = vmatprep.subr.mxu0 %v2182
        %2216 = vmatpush1.msra.mxu0 %v2181
        %2217 = vmatprep.subr.mxu0 %v2180
        %2218 = vmatpush1.msra.mxu0 %v2179
        %2219 = vmatprep.subr.mxu0 %v2178
        %2220 = vmatpush1.msra.mxu0 %v2177
        %2221 = vmatprep.subr.mxu0 %v2176
        %2222 = vmatpush1.msra.mxu0 %v2175
        %2223 = vmatprep.subr.mxu0 %v2174
        %2224 = vmatpush1.msra.mxu0 %v2173
        %2225 = vmatprep.subr.mxu0 %v2172
        %2226 = vmatpush1.msra.mxu0 %v2171
        %2227 = vmatprep.subr.mxu0 %v2170
        %2228 = vmatpush1.msra.mxu0 %v2169
        %2229 = vmatprep.subr.mxu0 %v2168
        %2230 = vmatpush1.msra.mxu0 %v2167
        %2231 = vmatprep.subr.mxu0 %v2166
        %2232 = vmatpush1.msra.mxu0 %v2165
        %2233 = vmatprep.subr.mxu0 %v2164
        %2234 = vmatpush1.msra.mxu0 %v2163
        %2235 = vmatprep.subr.mxu0 %v2162
        %2236 = vmatpush1.msra.mxu0 %v2161
        %2237 = vmatprep.subr.mxu0 0.0
        %2238 = vmatpush2.msra.mxu0 0.0
        %2239 = vmatprep.subr.mxu0 0.0
        %2240 = vmatpush2.msra.mxu0 0.0
        %2241 = vmatprep.subr.mxu0 0.0
        %2242 = vmatpush2.msra.mxu0 0.0
        %2243 = vmatprep.subr.mxu0 0.0
        %2244 = vmatpush2.msra.mxu0 0.0
        %2245 = vmatprep.subr.mxu0 0.0
        %2246 = vmatpush2.msra.mxu0 0.0
        %2247 = vmatprep.subr.mxu0 0.0
        %2248 = vmatpush2.msra.mxu0 0.0
        %2249 = vmatprep.subr.mxu0 0.0
        %2250 = vmatpush2.msra.mxu0 0.0
        %2251 = vmatprep.subr.mxu0 0.0
        %2252 = vmatpush2.msra.mxu0 0.0
        %2253 = vmatprep.subr.mxu0 0.0
        %2254 = vmatpush2.msra.mxu0 0.0
        %2255 = vmatprep.subr.mxu0 0.0
        %2256 = vmatpush2.msra.mxu0 0.0
        %2257 = vmatprep.subr.mxu0 0.0
        %2258 = vmatpush2.msra.mxu0 0.0
        %2259 = vmatprep.subr.mxu0 0.0
        %2260 = vmatpush2.msra.mxu0 0.0
        %2261 = vmatprep.subr.mxu0 0.0
        %2262 = vmatpush2.msra.mxu0 0.0
        %2263 = vmatprep.subr.mxu0 0.0
        %2264 = vmatpush2.msra.mxu0 0.0
        %2265 = vmatprep.subr.mxu0 0.0
        %2266 = vmatpush2.msra.mxu0 0.0
        %2267 = vmatprep.subr.mxu0 0.0
        %2268 = vmatpush2.msra.mxu0 0.0
        %2269 = vmatprep.mubr.f32.mxu0 0.0
        %2270 = vmatmul.mubr.f32.gmra.mxu0 %v2128
        %v2271 = vpop.f32.mrf.mxu0
        %v2272 = vadd.f32 %v2198, %v2271
        %v2273 = vpop.f32.mrf.mxu0
        %v2274 = vadd.f32 %v2202, %v2273
        %2275 = vmatprep.mubr.f32.mxu0 0.0
        %2276 = vmatmul.mubr.f32.gmra.mxu0 %v2129
        %v2277 = vpop.f32.mrf.mxu0
        %v2278 = vadd.f32 %v2198, %v2277
        %v2279 = vpop.f32.mrf.mxu0
        %v2280 = vadd.f32 %v2202, %v2279
        %2281 = vmatprep.mubr.f32.mxu0 0.0
        %2282 = vmatmul.mubr.f32.gmra.mxu0 %v2130
        %v2283 = vpop.f32.mrf.mxu0
        %v2284 = vadd.f32 %v2198, %v2283
        %v2285 = vpop.f32.mrf.mxu0
        %v2286 = vadd.f32 %v2202, %v2285
        %2287 = vmatprep.mubr.f32.mxu0 0.0
        %2288 = vmatmul.mubr.f32.gmra.mxu0 %v2131
        %v2289 = vpop.f32.mrf.mxu0
        %v2290 = vadd.f32 %v2198, %v2289
        %v2291 = vpop.f32.mrf.mxu0
        %v2292 = vadd.f32 %v2202, %v2291
        %2293 = vmatprep.mubr.f32.mxu0 0.0
        %2294 = vmatmul.mubr.f32.gmra.mxu0 %v2132
        %v2295 = vpop.f32.mrf.mxu0
        %v2296 = vadd.f32 %v2198, %v2295
        %v2297 = vpop.f32.mrf.mxu0
        %v2298 = vadd.f32 %v2202, %v2297
        %2299 = vmatprep.mubr.f32.mxu0 0.0
        %2300 = vmatmul.mubr.f32.gmra.mxu0 %v2133
        %v2301 = vpop.f32.mrf.mxu0
        %v2302 = vadd.f32 %v2198, %v2301
        %v2303 = vpop.f32.mrf.mxu0
        %v2304 = vadd.f32 %v2202, %v2303
        %2305 = vmatprep.mubr.f32.mxu0 0.0
        %2306 = vmatmul.mubr.f32.gmra.mxu0 %v2134
        %v2307 = vpop.f32.mrf.mxu0
        %v2308 = vadd.f32 %v2198, %v2307
        %v2309 = vpop.f32.mrf.mxu0
        %v2310 = vadd.f32 %v2202, %v2309
        %2311 = vmatprep.mubr.f32.mxu0 0.0
        %2312 = vmatmul.mubr.f32.gmra.mxu0 %v2135
        %v2313 = vpop.f32.mrf.mxu0
        %v2314 = vadd.f32 %v2198, %v2313
        %v2315 = vpop.f32.mrf.mxu0
        %v2316 = vadd.f32 %v2202, %v2315
        %2317 = vmatprep.mubr.f32.mxu0 0.0
        %2318 = vmatmul.mubr.f32.gmra.mxu0 %v2136
        %v2319 = vpop.f32.mrf.mxu0
        %v2320 = vadd.f32 %v2198, %v2319
        %v2321 = vpop.f32.mrf.mxu0
        %v2322 = vadd.f32 %v2202, %v2321
        %2323 = vmatprep.mubr.f32.mxu0 0.0
        %2324 = vmatmul.mubr.f32.gmra.mxu0 %v2137
        %v2325 = vpop.f32.mrf.mxu0
        %v2326 = vadd.f32 %v2198, %v2325
        %v2327 = vpop.f32.mrf.mxu0
        %v2328 = vadd.f32 %v2202, %v2327
        %2329 = vmatprep.mubr.f32.mxu0 0.0
        %2330 = vmatmul.mubr.f32.gmra.mxu0 %v2138
        %v2331 = vpop.f32.mrf.mxu0
        %v2332 = vadd.f32 %v2198, %v2331
        %v2333 = vpop.f32.mrf.mxu0
        %v2334 = vadd.f32 %v2202, %v2333
        %2335 = vmatprep.mubr.f32.mxu0 0.0
        %2336 = vmatmul.mubr.f32.gmra.mxu0 %v2139
        %v2337 = vpop.f32.mrf.mxu0
        %v2338 = vadd.f32 %v2198, %v2337
        %v2339 = vpop.f32.mrf.mxu0
        %v2340 = vadd.f32 %v2202, %v2339
        %2341 = vmatprep.mubr.f32.mxu0 0.0
        %2342 = vmatmul.mubr.f32.gmra.mxu0 %v2140
        %v2343 = vpop.f32.mrf.mxu0
        %v2344 = vadd.f32 %v2198, %v2343
        %v2345 = vpop.f32.mrf.mxu0
        %v2346 = vadd.f32 %v2202, %v2345
        %2347 = vmatprep.mubr.f32.mxu0 0.0
        %2348 = vmatmul.mubr.f32.gmra.mxu0 %v2141
        %v2349 = vpop.f32.mrf.mxu0
        %v2350 = vadd.f32 %v2198, %v2349
        %v2351 = vpop.f32.mrf.mxu0
        %v2352 = vadd.f32 %v2202, %v2351
        %2353 = vmatprep.mubr.f32.mxu0 0.0
        %2354 = vmatmul.mubr.f32.gmra.mxu0 %v2142
        %v2355 = vpop.f32.mrf.mxu0
        %v2356 = vadd.f32 %v2198, %v2355
        %v2357 = vpop.f32.mrf.mxu0
        %v2358 = vadd.f32 %v2202, %v2357
        %2359 = vmatprep.mubr.f32.mxu0 0.0
        %2360 = vmatmul.mubr.f32.gmra.mxu0 %v2143
        %v2361 = vpop.f32.mrf.mxu0
        %v2362 = vadd.f32 %v2198, %v2361
        %v2363 = vpop.f32.mrf.mxu0
        %v2364 = vadd.f32 %v2202, %v2363
        %2365 = vmatprep.mubr.f32.mxu0 0.0
        %2366 = vmatmul.mubr.f32.gmra.mxu0 %v2144
        %v2367 = vpop.f32.mrf.mxu0
        %v2368 = vadd.f32 %v2198, %v2367
        %v2369 = vpop.f32.mrf.mxu0
        %v2370 = vadd.f32 %v2202, %v2369
        %2371 = vdwg.mxu0
        %vm2372 = vcmp.ge.f32.partialorder %v2272, 0.0
        %vm2373 = vcmp.ge.f32.partialorder %v2274, 0.0
        %vm2374 = vcmp.ge.f32.partialorder %v2278, 0.0
        %vm2375 = vcmp.ge.f32.partialorder %v2280, 0.0
        %vm2376 = vcmp.ge.f32.partialorder %v2284, 0.0
        %vm2377 = vcmp.ge.f32.partialorder %v2286, 0.0
        %vm2378 = vcmp.ge.f32.partialorder %v2290, 0.0
        %vm2379 = vcmp.ge.f32.partialorder %v2292, 0.0
        %vm2380 = vcmp.ge.f32.partialorder %v2296, 0.0
        %vm2381 = vcmp.ge.f32.partialorder %v2298, 0.0
        %vm2382 = vcmp.ge.f32.partialorder %v2302, 0.0
        %vm2383 = vcmp.ge.f32.partialorder %v2304, 0.0
        %vm2384 = vcmp.ge.f32.partialorder %v2308, 0.0
        %vm2385 = vcmp.ge.f32.partialorder %v2310, 0.0
        %vm2386 = vcmp.ge.f32.partialorder %v2314, 0.0
        %vm2387 = vcmp.ge.f32.partialorder %v2316, 0.0
        %vm2388 = vcmp.ge.f32.partialorder %v2320, 0.0
        %vm2389 = vcmp.ge.f32.partialorder %v2322, 0.0
        %vm2390 = vcmp.ge.f32.partialorder %v2326, 0.0
        %vm2391 = vcmp.ge.f32.partialorder %v2328, 0.0
        %vm2392 = vcmp.ge.f32.partialorder %v2332, 0.0
        %vm2393 = vcmp.ge.f32.partialorder %v2334, 0.0
        %vm2394 = vcmp.ge.f32.partialorder %v2338, 0.0
        %vm2395 = vcmp.ge.f32.partialorder %v2340, 0.0
        %vm2396 = vcmp.ge.f32.partialorder %v2344, 0.0
        %vm2397 = vcmp.ge.f32.partialorder %v2346, 0.0
        %vm2398 = vcmp.ge.f32.partialorder %v2350, 0.0
        %vm2399 = vcmp.ge.f32.partialorder %v2352, 0.0
        %vm2400 = vcmp.ge.f32.partialorder %v2356, 0.0
        %vm2401 = vcmp.ge.f32.partialorder %v2358, 0.0
        %vm2402 = vcmp.ge.f32.partialorder %v2362, 0.0
        %vm2403 = vcmp.ge.f32.partialorder %v2364, 0.0
        %vm2404 = vcmp.ge.f32.partialorder %v2368, 0.0
        %vm2405 = vcmp.ge.f32.partialorder %v2370, 0.0
        %v2406 = vstv %s532
        %v2407 = vmul.f32 %v2406, %v2272
        %v2408 = vmul.f32 %v2406, %v2274
        %v2409 = vmul.f32 %v2406, %v2278
        %v2410 = vmul.f32 %v2406, %v2280
        %v2411 = vmul.f32 %v2406, %v2284
        %v2412 = vmul.f32 %v2406, %v2286
        %v2413 = vmul.f32 %v2406, %v2290
        %v2414 = vmul.f32 %v2406, %v2292
        %v2415 = vmul.f32 %v2406, %v2296
        %v2416 = vmul.f32 %v2406, %v2298
        %v2417 = vmul.f32 %v2406, %v2302
        %v2418 = vmul.f32 %v2406, %v2304
        %v2419 = vmul.f32 %v2406, %v2308
        %v2420 = vmul.f32 %v2406, %v2310
        %v2421 = vmul.f32 %v2406, %v2314
        %v2422 = vmul.f32 %v2406, %v2316
        %v2423 = vmul.f32 %v2406, %v2320
        %v2424 = vmul.f32 %v2406, %v2322
        %v2425 = vmul.f32 %v2406, %v2326
        %v2426 = vmul.f32 %v2406, %v2328
        %v2427 = vmul.f32 %v2406, %v2332
        %v2428 = vmul.f32 %v2406, %v2334
        %v2429 = vmul.f32 %v2406, %v2338
        %v2430 = vmul.f32 %v2406, %v2340
        %v2431 = vmul.f32 %v2406, %v2344
        %v2432 = vmul.f32 %v2406, %v2346
        %v2433 = vmul.f32 %v2406, %v2350
        %v2434 = vmul.f32 %v2406, %v2352
        %v2435 = vmul.f32 %v2406, %v2356
        %v2436 = vmul.f32 %v2406, %v2358
        %v2437 = vmul.f32 %v2406, %v2362
        %v2438 = vmul.f32 %v2406, %v2364
        %v2439 = vmul.f32 %v2406, %v2368
        %v2440 = vmul.f32 %v2406, %v2370
        %v2441 = vsel %vm2372, %v2272, %v2407
        %v2442 = vsel %vm2373, %v2274, %v2408
        %v2443 = vsel %vm2374, %v2278, %v2409
        %v2444 = vsel %vm2375, %v2280, %v2410
        %v2445 = vsel %vm2376, %v2284, %v2411
        %v2446 = vsel %vm2377, %v2286, %v2412
        %v2447 = vsel %vm2378, %v2290, %v2413
        %v2448 = vsel %vm2379, %v2292, %v2414
        %v2449 = vsel %vm2380, %v2296, %v2415
        %v2450 = vsel %vm2381, %v2298, %v2416
        %v2451 = vsel %vm2382, %v2302, %v2417
        %v2452 = vsel %vm2383, %v2304, %v2418
        %v2453 = vsel %vm2384, %v2308, %v2419
        %v2454 = vsel %vm2385, %v2310, %v2420
        %v2455 = vsel %vm2386, %v2314, %v2421
        %v2456 = vsel %vm2387, %v2316, %v2422
        %v2457 = vsel %vm2388, %v2320, %v2423
        %v2458 = vsel %vm2389, %v2322, %v2424
        %v2459 = vsel %vm2390, %v2326, %v2425
        %v2460 = vsel %vm2391, %v2328, %v2426
        %v2461 = vsel %vm2392, %v2332, %v2427
        %v2462 = vsel %vm2393, %v2334, %v2428
        %v2463 = vsel %vm2394, %v2338, %v2429
        %v2464 = vsel %vm2395, %v2340, %v2430
        %v2465 = vsel %vm2396, %v2344, %v2431
        %v2466 = vsel %vm2397, %v2346, %v2432
        %v2467 = vsel %vm2398, %v2350, %v2433
        %v2468 = vsel %vm2399, %v2352, %v2434
        %v2469 = vsel %vm2400, %v2356, %v2435
        %v2470 = vsel %vm2401, %v2358, %v2436
        %v2471 = vsel %vm2402, %v2362, %v2437
        %v2472 = vsel %vm2403, %v2364, %v2438
        %v2473 = vsel %vm2404, %v2368, %v2439
        %v2474 = vsel %vm2405, %v2370, %v2440
        %v2475 = vld [vmem:[#allocation15] sm:$0xf]
        %v2476 = vld [vmem:[#allocation15 + $0x4] sm:$0xf]
        %v2477 = vld [vmem:[#allocation15 + $0x8] sm:$0xf]
        %v2478 = vld [vmem:[#allocation15 + $0xc] sm:$0xf]
        %v2479 = vld [vmem:[#allocation15 + $0x10] sm:$0xf]
        %v2480 = vld [vmem:[#allocation15 + $0x14] sm:$0xf]
        %v2481 = vld [vmem:[#allocation15 + $0x18] sm:$0xf]
        %v2482 = vld [vmem:[#allocation15 + $0x1c] sm:$0xf]
        %v2483 = vld [vmem:[#allocation15 + $0x20] sm:$0xf]
        %v2484 = vld [vmem:[#allocation15 + $0x24] sm:$0xf]
        %v2485 = vld [vmem:[#allocation15 + $0x28] sm:$0xf]
        %v2486 = vld [vmem:[#allocation15 + $0x2c] sm:$0xf]
        %v2487 = vld [vmem:[#allocation15 + $0x30] sm:$0xf]
        %v2488 = vld [vmem:[#allocation15 + $0x34] sm:$0xf]
        %v2489 = vld [vmem:[#allocation15 + $0x38] sm:$0xf]
        %v2490 = vld [vmem:[#allocation15 + $0x3c] sm:$0xf]
        %v2491 = vld [vmem:[#allocation15 + $0x40] sm:$0xf]
        %v2492 = vld [vmem:[#allocation15 + $0x44] sm:$0xf]
        %v2493 = vld [vmem:[#allocation15 + $0x48] sm:$0xf]
        %v2494 = vld [vmem:[#allocation15 + $0x4c] sm:$0xf]
        %v2495 = vld [vmem:[#allocation15 + $0x50] sm:$0xf]
        %v2496 = vld [vmem:[#allocation15 + $0x54] sm:$0xf]
        %v2497 = vld [vmem:[#allocation15 + $0x58] sm:$0xf]
        %v2498 = vld [vmem:[#allocation15 + $0x5c] sm:$0xf]
        %v2499 = vld [vmem:[#allocation15 + $0x60] sm:$0xf]
        %v2500 = vld [vmem:[#allocation15 + $0x64] sm:$0xf]
        %v2501 = vld [vmem:[#allocation15 + $0x68] sm:$0xf]
        %v2502 = vld [vmem:[#allocation15 + $0x6c] sm:$0xf]
        %v2503 = vld [vmem:[#allocation15 + $0x70] sm:$0xf]
        %v2504 = vld [vmem:[#allocation15 + $0x74] sm:$0xf]
        %v2505 = vld [vmem:[#allocation15 + $0x78] sm:$0xf]
        %v2506 = vld [vmem:[#allocation15 + $0x7c] sm:$0xf]
        %v2507 = vunpack.c.l.bf16 %v2475
        %v2508 = vunpack.c.l.bf16 %v2476
        %v2509 = vunpack.c.l.bf16 %v2477
        %v2510 = vunpack.c.l.bf16 %v2478
        %v2511 = vunpack.c.l.bf16 %v2479
        %v2512 = vunpack.c.l.bf16 %v2480
        %v2513 = vunpack.c.l.bf16 %v2481
        %v2514 = vunpack.c.l.bf16 %v2482
        %v2515 = vunpack.c.l.bf16 %v2483
        %v2516 = vunpack.c.l.bf16 %v2484
        %v2517 = vunpack.c.l.bf16 %v2485
        %v2518 = vunpack.c.l.bf16 %v2486
        %v2519 = vunpack.c.l.bf16 %v2487
        %v2520 = vunpack.c.l.bf16 %v2488
        %v2521 = vunpack.c.l.bf16 %v2489
        %v2522 = vunpack.c.l.bf16 %v2490
        %v2523 = vunpack.c.l.bf16 %v2491
        %v2524 = vunpack.c.l.bf16 %v2492
        %v2525 = vunpack.c.l.bf16 %v2493
        %v2526 = vunpack.c.l.bf16 %v2494
        %v2527 = vunpack.c.l.bf16 %v2495
        %v2528 = vunpack.c.l.bf16 %v2496
        %v2529 = vunpack.c.l.bf16 %v2497
        %v2530 = vunpack.c.l.bf16 %v2498
        %v2531 = vunpack.c.l.bf16 %v2499
        %v2532 = vunpack.c.l.bf16 %v2500
        %v2533 = vunpack.c.l.bf16 %v2501
        %v2534 = vunpack.c.l.bf16 %v2502
        %v2535 = vunpack.c.l.bf16 %v2503
        %v2536 = vunpack.c.l.bf16 %v2504
        %v2537 = vunpack.c.l.bf16 %v2505
        %v2538 = vunpack.c.l.bf16 %v2506
        %v2539 = vld [vmem:[%s11] sm:$0x1]
        %v2541 = vlaneseq
        %v2542 = vshrl.u32 %v2541, 7
        %v2543 = vsub.s32 0, %v2542
        %v2544 = vrot.slane %v2539, %v2543
        %2546 = vmatprep.subr.mxu0 0.0
        %2547 = vmatpush1.msra.mxu0 %v2522
        %2548 = vmatprep.subr.mxu0 0.0
        %2549 = vmatpush1.msra.mxu0 %v2521
        %2550 = vmatprep.subr.mxu0 0.0
        %2551 = vmatpush1.msra.mxu0 %v2520
        %2552 = vmatprep.subr.mxu0 0.0
        %2553 = vmatpush1.msra.mxu0 %v2519
        %2554 = vmatprep.subr.mxu0 0.0
        %2555 = vmatpush1.msra.mxu0 %v2518
        %2556 = vmatprep.subr.mxu0 0.0
        %2557 = vmatpush1.msra.mxu0 %v2517
        %2558 = vmatprep.subr.mxu0 0.0
        %2559 = vmatpush1.msra.mxu0 %v2516
        %2560 = vmatprep.subr.mxu0 0.0
        %2561 = vmatpush1.msra.mxu0 %v2515
        %2562 = vmatprep.subr.mxu0 0.0
        %2563 = vmatpush1.msra.mxu0 %v2514
        %2564 = vmatprep.subr.mxu0 0.0
        %2565 = vmatpush1.msra.mxu0 %v2513
        %2566 = vmatprep.subr.mxu0 0.0
        %2567 = vmatpush1.msra.mxu0 %v2512
        %2568 = vmatprep.subr.mxu0 0.0
        %2569 = vmatpush1.msra.mxu0 %v2511
        %2570 = vmatprep.subr.mxu0 0.0
        %2571 = vmatpush1.msra.mxu0 %v2510
        %2572 = vmatprep.subr.mxu0 0.0
        %2573 = vmatpush1.msra.mxu0 %v2509
        %2574 = vmatprep.subr.mxu0 0.0
        %2575 = vmatpush1.msra.mxu0 %v2508
        %2576 = vmatprep.subr.mxu0 0.0
        %2577 = vmatpush1.msra.mxu0 %v2507
        %2578 = vmatprep.subr.mxu0 0.0
        %2579 = vmatpush2.msra.mxu0 %v2538
        %2580 = vmatprep.subr.mxu0 0.0
        %2581 = vmatpush2.msra.mxu0 %v2537
        %2582 = vmatprep.subr.mxu0 0.0
        %2583 = vmatpush2.msra.mxu0 %v2536
        %2584 = vmatprep.subr.mxu0 0.0
        %2585 = vmatpush2.msra.mxu0 %v2535
        %2586 = vmatprep.subr.mxu0 0.0
        %2587 = vmatpush2.msra.mxu0 %v2534
        %2588 = vmatprep.subr.mxu0 0.0
        %2589 = vmatpush2.msra.mxu0 %v2533
        %2590 = vmatprep.subr.mxu0 0.0
        %2591 = vmatpush2.msra.mxu0 %v2532
        %2592 = vmatprep.subr.mxu0 0.0
        %2593 = vmatpush2.msra.mxu0 %v2531
        %2594 = vmatprep.subr.mxu0 0.0
        %2595 = vmatpush2.msra.mxu0 %v2530
        %2596 = vmatprep.subr.mxu0 0.0
        %2597 = vmatpush2.msra.mxu0 %v2529
        %2598 = vmatprep.subr.mxu0 0.0
        %2599 = vmatpush2.msra.mxu0 %v2528
        %2600 = vmatprep.subr.mxu0 0.0
        %2601 = vmatpush2.msra.mxu0 %v2527
        %2602 = vmatprep.subr.mxu0 0.0
        %2603 = vmatpush2.msra.mxu0 %v2526
        %2604 = vmatprep.subr.mxu0 0.0
        %2605 = vmatpush2.msra.mxu0 %v2525
        %2606 = vmatprep.subr.mxu0 0.0
        %2607 = vmatpush2.msra.mxu0 %v2524
        %2608 = vmatprep.subr.mxu0 0.0
        %2609 = vmatpush2.msra.mxu0 %v2523
        %2610 = vmatprep.mubr.f32.mxu0 %v2442
        %2611 = vmatmul.mubr.f32.gmra.mxu0 %v2441
        %v2612 = vpop.f32.mrf.mxu0
        %v2613 = vadd.f32 %v2544, %v2612
        %v2614 = vpop.f32.mrf.mxu0
        %2615 = vmatprep.mubr.f32.mxu0 %v2444
        %2616 = vmatmul.mubr.f32.gmra.mxu0 %v2443
        %v2617 = vpop.f32.mrf.mxu0
        %v2618 = vadd.f32 %v2544, %v2617
        %v2619 = vpop.f32.mrf.mxu0
        %2620 = vmatprep.mubr.f32.mxu0 %v2446
        %2621 = vmatmul.mubr.f32.gmra.mxu0 %v2445
        %v2622 = vpop.f32.mrf.mxu0
        %v2623 = vadd.f32 %v2544, %v2622
        %v2624 = vpop.f32.mrf.mxu0
        %2625 = vmatprep.mubr.f32.mxu0 %v2448
        %2626 = vmatmul.mubr.f32.gmra.mxu0 %v2447
        %v2627 = vpop.f32.mrf.mxu0
        %v2628 = vadd.f32 %v2544, %v2627
        %v2629 = vpop.f32.mrf.mxu0
        %2630 = vmatprep.mubr.f32.mxu0 %v2450
        %2631 = vmatmul.mubr.f32.gmra.mxu0 %v2449
        %v2632 = vpop.f32.mrf.mxu0
        %v2633 = vadd.f32 %v2544, %v2632
        %v2634 = vpop.f32.mrf.mxu0
        %2635 = vmatprep.mubr.f32.mxu0 %v2452
        %2636 = vmatmul.mubr.f32.gmra.mxu0 %v2451
        %v2637 = vpop.f32.mrf.mxu0
        %v2638 = vadd.f32 %v2544, %v2637
        %v2639 = vpop.f32.mrf.mxu0
        %2640 = vmatprep.mubr.f32.mxu0 %v2454
        %2641 = vmatmul.mubr.f32.gmra.mxu0 %v2453
        %v2642 = vpop.f32.mrf.mxu0
        %v2643 = vadd.f32 %v2544, %v2642
        %v2644 = vpop.f32.mrf.mxu0
        %2645 = vmatprep.mubr.f32.mxu0 %v2456
        %2646 = vmatmul.mubr.f32.gmra.mxu0 %v2455
        %v2647 = vpop.f32.mrf.mxu0
        %v2648 = vadd.f32 %v2544, %v2647
        %v2649 = vpop.f32.mrf.mxu0
        %2650 = vmatprep.mubr.f32.mxu0 %v2458
        %2651 = vmatmul.mubr.f32.gmra.mxu0 %v2457
        %v2652 = vpop.f32.mrf.mxu0
        %v2653 = vadd.f32 %v2544, %v2652
        %v2654 = vpop.f32.mrf.mxu0
        %2655 = vmatprep.mubr.f32.mxu0 %v2460
        %2656 = vmatmul.mubr.f32.gmra.mxu0 %v2459
        %v2657 = vpop.f32.mrf.mxu0
        %v2658 = vadd.f32 %v2544, %v2657
        %v2659 = vpop.f32.mrf.mxu0
        %2660 = vmatprep.mubr.f32.mxu0 %v2462
        %2661 = vmatmul.mubr.f32.gmra.mxu0 %v2461
        %v2662 = vpop.f32.mrf.mxu0
        %v2663 = vadd.f32 %v2544, %v2662
        %v2664 = vpop.f32.mrf.mxu0
        %2665 = vmatprep.mubr.f32.mxu0 %v2464
        %2666 = vmatmul.mubr.f32.gmra.mxu0 %v2463
        %v2667 = vpop.f32.mrf.mxu0
        %v2668 = vadd.f32 %v2544, %v2667
        %v2669 = vpop.f32.mrf.mxu0
        %2670 = vmatprep.mubr.f32.mxu0 %v2466
        %2671 = vmatmul.mubr.f32.gmra.mxu0 %v2465
        %v2672 = vpop.f32.mrf.mxu0
        %v2673 = vadd.f32 %v2544, %v2672
        %v2674 = vpop.f32.mrf.mxu0
        %2675 = vmatprep.mubr.f32.mxu0 %v2468
        %2676 = vmatmul.mubr.f32.gmra.mxu0 %v2467
        %v2677 = vpop.f32.mrf.mxu0
        %v2678 = vadd.f32 %v2544, %v2677
        %v2679 = vpop.f32.mrf.mxu0
        %2680 = vmatprep.mubr.f32.mxu0 %v2470
        %2681 = vmatmul.mubr.f32.gmra.mxu0 %v2469
        %v2682 = vpop.f32.mrf.mxu0
        %v2683 = vadd.f32 %v2544, %v2682
        %v2684 = vpop.f32.mrf.mxu0
        %2685 = vmatprep.mubr.f32.mxu0 %v2472
        %2686 = vmatmul.mubr.f32.gmra.mxu0 %v2471
        %v2687 = vpop.f32.mrf.mxu0
        %v2688 = vadd.f32 %v2544, %v2687
        %v2689 = vpop.f32.mrf.mxu0
        %2690 = vmatprep.mubr.f32.mxu0 %v2474
        %2691 = vmatmul.mubr.f32.gmra.mxu0 %v2473
        %v2692 = vpop.f32.mrf.mxu0
        %v2693 = vadd.f32 %v2544, %v2692
        %v2694 = vpop.f32.mrf.mxu0
        %2695 = vdwg.mxu0
        %v2696 = vadd.f32 %v2128, %v2613
        %v2697 = vadd.f32 %v2129, %v2618
        %v2698 = vadd.f32 %v2130, %v2623
        %v2699 = vadd.f32 %v2131, %v2628
        %v2700 = vadd.f32 %v2132, %v2633
        %v2701 = vadd.f32 %v2133, %v2638
        %v2702 = vadd.f32 %v2134, %v2643
        %v2703 = vadd.f32 %v2135, %v2648
        %v2704 = vadd.f32 %v2136, %v2653
        %v2705 = vadd.f32 %v2137, %v2658
        %v2706 = vadd.f32 %v2138, %v2663
        %v2707 = vadd.f32 %v2139, %v2668
        %v2708 = vadd.f32 %v2140, %v2673
        %v2709 = vadd.f32 %v2141, %v2678
        %v2710 = vadd.f32 %v2142, %v2683
        %v2711 = vadd.f32 %v2143, %v2688
        %v2712 = vadd.f32 %v2144, %v2693
        %2713 = vst [vmem:[%s528] sm:$0xff] %v2696
        %2714 = vst [vmem:[%s528 + $0x8] sm:$0xff] %v2697
        %2715 = vst [vmem:[%s528 + $0x10] sm:$0xff] %v2698
        %2716 = vst [vmem:[%s528 + $0x18] sm:$0xff] %v2699
        %2717 = vst [vmem:[%s528 + $0x20] sm:$0xff] %v2700
        %2718 = vst [vmem:[%s528 + $0x28] sm:$0xff] %v2701
        %2719 = vst [vmem:[%s528 + $0x30] sm:$0xff] %v2702
        %2720 = vst [vmem:[%s528 + $0x38] sm:$0xff] %v2703
        %2721 = vst [vmem:[%s528 + $0x40] sm:$0xff] %v2704
        %2722 = vst [vmem:[%s528 + $0x48] sm:$0xff] %v2705
        %2723 = vst [vmem:[%s528 + $0x50] sm:$0xff] %v2706
        %2724 = vst [vmem:[%s528 + $0x58] sm:$0xff] %v2707
        %2725 = vst [vmem:[%s528 + $0x60] sm:$0xff] %v2708
        %2726 = vst [vmem:[%s528 + $0x68] sm:$0xff] %v2709
        %2727 = vst [vmem:[%s528 + $0x70] sm:$0xff] %v2710
        %2728 = vst [vmem:[%s528 + $0x78] sm:$0xff] %v2711
        %2729 = vst [vmem:[%s528 + $0x80] sm:$0xff] %v2712
        %s2730 = sand.u32 %s298, 1
        %s2731 = scalar_lea.sflag [#allocation4], %s2730
        %s2732 = sand.u32 %s298, 1
        %s2733 = smul.addr %s2732, 136
        %s2734 = scalar_lea.vmem [#allocation16], %s2733
        // Predicated region
        $region101: #{tpu_custom_call.1} parent=67 // pred_check
          %p2735 = pneg %p308
        $region102: #{tpu_custom_call.1} parent=67 // pred_check_branch
          %2737 = sbr.rel (%p2735) target = $region104
        $region103: #{tpu_custom_call.1} parent=67 // pred_region
          %s2738 = smul.u32 17, %s33
          %s2740 = ssub.s32 2176, 2176
          %2741 = vsyncadd %s2731, %s2740
          %s2742 = smul.addr %s2738, 128
          %s2743 = scalar_lea.hbm %s12, %s2742
          %s2744 = sshll.u32 %s2734, 4
          %s2745 = int_to_ptr.vmem [resolvable:$true] %s2744
          %2750 = dma.vmem_to_hbm [thread:$0]  %s2745, 2176, %s2743, %s2731, 128, 128, 8
        $region104: #{tpu_custom_call.1} parent=67 // pred_fallthru
          _
      $region68: #{tpu_custom_call.1} parent=5 // pred_fallthru
        _
      %p2751 = scmp.le.s32.totalorder 2, %s28
      // Predicated region
      $region105: #{tpu_custom_call.1} parent=5 // pred_check
        %p2752 = pneg %p2751
      $region106: #{tpu_custom_call.1} parent=5 // pred_check_branch
        %2754 = sbr.rel (%p2752) target = $region108
      $region107: #{tpu_custom_call.1} parent=5 // pred_region
        %s2755 = ssub.s32 %s28, 2
        // Predicated region
        $region109: #{tpu_custom_call.1} parent=107 // pred_check
          %p2756 = pneg %p314
        $region110: #{tpu_custom_call.1} parent=107 // pred_check_branch
          %2758 = sbr.rel (%p2756) target = $region112
        $region111: #{tpu_custom_call.1} parent=107 // pred_region
          %s2759 = sand.u32 %s299, 1
          %s2760 = scalar_lea.sflag [#allocation4], %s2759
          %s2761 = sand.u32 %s299, 1
          %s2762 = smul.addr %s2761, 136
          %s2763 = scalar_lea.vmem [#allocation16], %s2762
          %2764 = dma.done %s2760, 2176
        $region112: #{tpu_custom_call.1} parent=107 // pred_fallthru
          _
      $region108: #{tpu_custom_call.1} parent=5 // pred_fallthru
        _
    $region6: #{tpu_custom_call.1} parent=1 // loop_footer
      %s32 = sadd.s32 1, %s28
    $region7: #{tpu_custom_call.1} parent=1 // loop_footer_branch
      %27 = sbr.rel target = $region3
    $region8: #{tpu_custom_call.1} parent=1 // loop_exit
      _
    %2765 = vsyncpa [#allocation3], 1
    %s2766 = scalar_lea.sflag [#allocation3], 1
    %2767 = vsyncpa %s2766, 1
    %2768 = vsyncpa [#allocation8], 1
    %2769 = vsyncpa [#allocation11], 1
    %2770 = vsyncpa [#allocation14], 1
    %2771 = vsyncpa [#allocation4], 1
    %s2772 = scalar_lea.sflag [#allocation4], 1
    %2773 = vsyncpa %s2772, 1
    %2774 = vsyncpa [#allocation5], 1
    %s2775 = scalar_lea.sflag [#allocation5], 1
    %2776 = vsyncpa %s2775, 1

</llo_original>
